<compile_context>
chip_gen: v6e
topology: v6e:2x2x1
jax: 0.10.0
libtpu: 0.0.40
codegen_flags: <defaults>
</compile_context>

<pallas_src>
import math

import jax
import jax.numpy as jnp
from jax import lax
from jax.experimental import pallas as pl
from jax.experimental.pallas import tpu as pltpu


# ----------------------------------------------------------------------------
# helpers
# ----------------------------------------------------------------------------
def _divisors(n):
    return [d for d in range(1, n + 1) if n % d == 0]


def _vmem_budget():
    """(vmem_limit_bytes, soft tile-picker budget) derived from the chip."""
    try:
        cap = int(pltpu.get_tpu_info().vmem_capacity_bytes)
    except Exception:
        cap = 64 * 1024 * 1024          # conservative fallback
    limit = min(cap // 2, 96 * 1024 * 1024)   # 64 MiB on v5e/v6e, 32 MiB on v7x
    return limit, limit // 2


def _conv_live_bytes(d, W, C, isz):
    # 2x main input block + 2x (d,2,W,2C) output block + padded scratch tile
    # + per-phase (M,4C) concat / f32 accumulator + resident phase weights.
    return d * W * C * (24 * isz + 8) + 16 * C * C * isz + 8 * W * C * isz


def _pick_conv_tile_rows(H, W, C, isz, budget, hard_limit):
    fits = [d for d in _divisors(H) if _conv_live_bytes(d, W, C, isz) <= budget]
    if fits:
        return max(fits)
    if _conv_live_bytes(1, W, C, isz) <= hard_limit:
        return 1
    raise ValueError(
        "Upsample conv tile does not fit VMEM even at one row per grid step "
        f"(W={W}, C={C}); column tiling is required.")


def _nearest_live_bytes(tc, th, W, isz):
    # 2x input block + 2x (tc,th,4W) output block + f32 matmul result/cast
    # + the resident (W,4W) duplication matrix.
    return tc * th * W * (16 * isz + 16) + 8 * W * W * isz


def _pick_nearest_tiles(C, H, W, isz, budget, hard_limit,
                        tile_channels=None, tile_rows=None):
    sub = max(8, 32 // isz)          # sublane granularity for the row-tile dim
    if tile_rows is not None:
        th = tile_rows
        assert H % th == 0 and (th == H or th % sub == 0), (H, th, sub)
    else:
        cands = sorted(d for d in _divisors(H) if d == H or d % sub == 0)
        fits = [d for d in cands if _nearest_live_bytes(1, d, W, isz) <= budget]
        if fits:
            th = max(fits)
        elif _nearest_live_bytes(1, cands[0], W, isz) <= hard_limit:
            th = cands[0]
        else:
            raise ValueError(
                "Upsample nearest tile does not fit VMEM even at the smallest "
                f"row tile (H={H}, W={W}); column tiling is required.")
    if tile_channels is not None:
        tc = tile_channels
        assert C % tc == 0, (C, tc)
    else:
        tc = max(d for d in _divisors(C)
                 if d == 1 or _nearest_live_bytes(d, th, W, isz) <= budget)
    return tc, th


def _dup2_matrix(W, dtype):
    # E2[k, j] = 1 iff (j % 2W) // 2 == k, so (x2d @ E2)[i, j] = x2d[i, (j%2W)//2].
    # Writing rows of width 4W and reshaping (H, 4W) -> (2H, 2W) (free, element
    # order preserved) yields the full 2x2 nearest upsample in one matmul.
    k = jnp.arange(W)[:, None]
    j = jnp.arange(4 * W)[None, :]
    return (((j % (2 * W)) // 2) == k).astype(dtype)


def phase_weights(weight_oihw):
    """Fold nearest-2x upsample into the 3x3 conv: 4 sub-pixel phases with
    collapsed 2x2 filters.

    weight_oihw: (Cout, Cin, 3, 3)  ->  (4, 4, Cin, Cout)
      first index  f = 2*py + px   (output sub-pixel phase)
      second index k = 2*ry + rx   (2x2 tap; input offset = (py+ry-1, px+rx-1))
    """
    w = jnp.transpose(weight_oihw, (2, 3, 1, 0))              # (ky, kx, Ci, Co)
    row0 = jnp.stack([w[0], w[1] + w[2]], axis=0)             # py=0: (ry, kx, Ci, Co)
    row1 = jnp.stack([w[0] + w[1], w[2]], axis=0)             # py=1
    rows = jnp.stack([row0, row1], axis=0)                    # (py, ry, kx, Ci, Co)
    col0 = jnp.stack([rows[:, :, 0], rows[:, :, 1] + rows[:, :, 2]], axis=2)
    col1 = jnp.stack([rows[:, :, 0] + rows[:, :, 1], rows[:, :, 2]], axis=2)
    wp = jnp.stack([col0, col1], axis=1)                      # (py, px, ry, rx, Ci, Co)
    return wp.reshape(4, 4, wp.shape[-2], wp.shape[-1])


def phase_weights_cat(weight_oihw):
    """(Cout, Cin, 3, 3) -> (4, 4*Cin, Cout): per-phase K-concatenated taps,
    matching the in-kernel channel concat order k = 2*ry + rx."""
    wp = phase_weights(weight_oihw)                           # (4, 4, Ci, Co)
    return wp.reshape(4, 4 * wp.shape[2], wp.shape[3])


# ----------------------------------------------------------------------------
# Kernel 1: nearest-neighbor 2x upsample only (use_conv=False), NCHW layout
# ----------------------------------------------------------------------------
def _upsample_nearest_kernel(x_ref, e2_ref, o_ref):
    # x_ref : (TCc, TH, W)    NCHW channel/row tile (W in lanes)
    # e2_ref: (W, 4W)         0/1 duplication matrix (exact multiply-by-1 copy)
    # o_ref : (TCc, TH, 4W)   single dense, lane-rich store per tile
    TC, TH, W = x_ref.shape
    x2d = x_ref[...].reshape(TC * TH, W)
    up = jnp.dot(x2d, e2_ref[...], preferred_element_type=jnp.float32)
    o_ref[...] = up.astype(o_ref.dtype).reshape(TC, TH, 4 * W)


def upsample_nearest2x_pallas(x_nchw, *, tile_channels=None, tile_rows=None):
    N, C, H, W = x_nchw.shape
    limit, budget = _vmem_budget()
    isz = x_nchw.dtype.itemsize
    TCc, TH = _pick_nearest_tiles(C, H, W, isz, budget, limit,
                                  tile_channels, tile_rows)
    e2 = _dup2_matrix(W, x_nchw.dtype)

    y = pl.pallas_call(
        _upsample_nearest_kernel,
        out_shape=jax.ShapeDtypeStruct((N, C, H, 4 * W), x_nchw.dtype),
        grid_spec=pltpu.PrefetchScalarGridSpec(
            num_scalar_prefetch=0,
            grid=(N, C // TCc, H // TH),
            in_specs=[
                pl.BlockSpec((None, TCc, TH, W), lambda n, c, h: (n, c, h, 0)),
                pl.BlockSpec((W, 4 * W), lambda n, c, h: (0, 0)),
            ],
            out_specs=pl.BlockSpec((None, TCc, TH, 4 * W),
                                   lambda n, c, h: (n, c, h, 0)),
        ),
        compiler_params=pltpu.CompilerParams(
            dimension_semantics=("parallel", "parallel", "parallel"),
            vmem_limit_bytes=limit),
    )(x_nchw, e2)
    # free (element-order-preserving) reshape: (N, C, H, 4W) -> (N, C, 2H, 2W)
    return y.reshape(N, C, 2 * H, 2 * W)


# ----------------------------------------------------------------------------
# Kernel 2: fused nearest 2x upsample + 3x3 conv (use_conv=True), NHWC layout
#   sub-pixel formulation: 4 phases, each ONE (TIH*W, 4C) @ (4C, C) matmul
# ----------------------------------------------------------------------------
def _upsample_conv_kernel(xm_ref, xt_ref, xb_ref, w_ref, b_ref, o_ref, xp_scr):
    # xm_ref : (TIH, W, C)       current row tile (NHWC, C in lanes)
    # xt_ref : (1,  W, C)        row just above the tile (clamped at top)
    # xb_ref : (1,  W, C)        row just below the tile (clamped at bottom)
    # w_ref  : (4, 4*C, C)       per-phase K-concatenated collapsed 2x2 weights
    # b_ref  : (1, C)            f32 bias
    # o_ref  : (TIH, 2, W, 2*C)  o[i, py, w, px*C:(px+1)*C] = phase (py, px)
    # xp_scr : (TIH+2, W+2, C)   VMEM scratch: zero-padded input tile
    TIH, W, C = xm_ref.shape
    t = pl.program_id(1)
    n_t = pl.num_programs(1)
    dt = xm_ref.dtype

    # --- assemble the padded tile in VMEM (replaces wrapper-side jnp.pad) ----
    zrow = jnp.zeros((1, W, C), dt)
    top = jnp.where(t > 0, xt_ref[...], zrow)          # zero above image border
    bot = jnp.where(t < n_t - 1, xb_ref[...], zrow)    # zero below image border
    zcol = jnp.zeros((TIH + 2, 1, C), dt)
    xp_scr[:, 0:1, :] = zcol                           # left conv zero column
    xp_scr[:, W + 1:W + 2, :] = zcol                   # right conv zero column
    xp_scr[0:1, 1:W + 1, :] = top
    xp_scr[TIH + 1:TIH + 2, 1:W + 1, :] = bot
    xp_scr[1:TIH + 1, 1:W + 1, :] = xm_ref[...]

    M = TIH * W
    bias = b_ref[...].astype(jnp.float32)              # (1, C)

    # --- 4 sub-pixel phases; taps fused along K into a single MXU matmul -----
    for py in range(2):
        for px in range(2):
            xcat = jnp.concatenate(
                [xp_scr[py + ry:py + ry + TIH, px + rx:px + rx + W, :]
                 for ry in (0, 1) for rx in (0, 1)],
                axis=-1).reshape(M, 4 * C)
            acc = jnp.dot(xcat, w_ref[2 * py + px],
                          preferred_element_type=jnp.float32)
            res = (acc + bias).astype(o_ref.dtype).reshape(TIH, W, C)
            o_ref[:, py, :, px * C:(px + 1) * C] = res


def upsample_conv_nhwc(x_nhwc, w_cat, bias_2d, *, tile_in_rows=None):
    """Fused 2x nearest upsample + 3x3 conv.  NHWC in, NHWC out (N, 2H, 2W, C)."""
    N, H, W, C = x_nhwc.shape
    assert w_cat.shape == (4, 4 * C, C), w_cat.shape
    assert bias_2d.shape == (1, C), bias_2d.shape
    limit, budget = _vmem_budget()
    isz = x_nhwc.dtype.itemsize
    TIH = (tile_in_rows if tile_in_rows is not None
           else _pick_conv_tile_rows(H, W, C, isz, budget, limit))
    assert H % TIH == 0, (H, TIH)
    n_t = H // TIH

    # TODO(synk): add column (W) tiling + a pl.ANY manual-DMA path for row
    # tiles that do not fit VMEM even at TIH=1, and consider
    # pipeline_mode=pl.Buffered(3) on the main in/out specs at small C.
    out5 = pl.pallas_call(
        _upsample_conv_kernel,
        out_shape=jax.ShapeDtypeStruct((N, H, 2, W, 2 * C), x_nhwc.dtype),
        grid_spec=pltpu.PrefetchScalarGridSpec(
            num_scalar_prefetch=0,
            grid=(N, n_t),
            in_specs=[
                pl.BlockSpec((None, TIH, W, C), lambda n, t: (n, t, 0, 0)),
                # 1-row halos (clamped at the image border; zeroed in-kernel)
                pl.BlockSpec((None, 1, W, C),
                             lambda n, t: (n, jnp.maximum(t * TIH - 1, 0), 0, 0)),
                pl.BlockSpec((None, 1, W, C),
                             lambda n, t: (n, jnp.minimum((t + 1) * TIH, H - 1),
                                           0, 0)),
                pl.BlockSpec((4, 4 * C, C), lambda n, t: (0, 0, 0)),
                pl.BlockSpec((1, C), lambda n, t: (0, 0)),
            ],
            out_specs=pl.BlockSpec((None, TIH, 2, W, 2 * C),
                                   lambda n, t: (n, t, 0, 0, 0)),
            scratch_shapes=[pltpu.VMEM((TIH + 2, W + 2, C), x_nhwc.dtype)],
        ),
        compiler_params=pltpu.CompilerParams(
            dimension_semantics=("parallel", "parallel"),
            vmem_limit_bytes=limit),
    )(x_nhwc, x_nhwc, x_nhwc, w_cat, bias_2d)
    # free (element-order-preserving) reshape: (N,H,2,W,2C) -> (N,2H,2W,C)
    return out5.reshape(N, 2 * H, 2 * W, C)


# ----------------------------------------------------------------------------
# Module-equivalent wrapper (NCHW in / NCHW out, like the PyTorch module)
# ----------------------------------------------------------------------------
class Upsample:
    def __init__(self, channels, use_conv, key=None):
        self.channels = channels
        self.use_conv = use_conv
        if use_conv:
            if key is None:
                key = jax.random.PRNGKey(42)
            kw, kb = jax.random.split(key)
            fan_in = channels * 3 * 3
            bound = 1.0 / math.sqrt(fan_in)  # PyTorch Conv2d default-init bound
            # PyTorch weight layout: (Cout, Cin, kh, kw)
            self.weight = jax.random.uniform(kw, (channels, channels, 3, 3),
                                             jnp.float32, -bound, bound)
            self.bias = jax.random.uniform(kb, (channels,), jnp.float32,
                                           -bound, bound)

    def __call__(self, x_nchw):
        if not self.use_conv:
            return upsample_nearest2x_pallas(x_nchw)
        N, C, H, W = x_nchw.shape
        # NCHW <-> NHWC only at the module boundary; in an NHWC pipeline call
        # upsample_conv_nhwc directly and both transposes disappear.
        # TODO(synk): fold the NHWC->NCHW output transpose into the consumer's
        # input BlockSpec when this feeds another Pallas kernel.
        x_nhwc = jnp.transpose(x_nchw, (0, 2, 3, 1))
        w_cat = phase_weights_cat(self.weight).astype(x_nchw.dtype)
        b2d = self.bias.reshape(1, C).astype(jnp.float32)
        y_nhwc = upsample_conv_nhwc(x_nhwc, w_cat, b2d)
        return jnp.transpose(y_nhwc, (0, 3, 1, 2))


# ----------------------------------------------------------------------------
if __name__ == "__main__":
    key = jax.random.PRNGKey(0)
    kx, kp = jax.random.split(key)

    N, C, H, W = 2, 4, 16, 16
    x = jax.random.normal(kx, (N, C, H, W), jnp.float32)

    # pure-JAX reference for the upsample
    x_up = jnp.repeat(jnp.repeat(x, 2, axis=2), 2, axis=3)

    # --- use_conv=True path (single row tile) --------------------------------
    mod = Upsample(C, use_conv=True, key=kp)
    y = jax.block_until_ready(mod(x))
    assert y.shape == (N, C, 2 * H, 2 * W)
    y_ref = lax.conv_general_dilated(
        x_up, mod.weight, window_strides=(1, 1),
        padding=((1, 1), (1, 1)),
        dimension_numbers=("NCHW", "OIHW", "NCHW"),
    ) + mod.bias.reshape(1, C, 1, 1)
    assert jnp.allclose(y, y_ref, atol=1e-3, rtol=1e-3), \
        float(jnp.max(jnp.abs(y - y_ref)))

    # --- use_conv=True path, explicit multi row-tile (exercise halo logic) ---
    x_nhwc = jnp.transpose(x, (0, 2, 3, 1))
    w_cat = phase_weights_cat(mod.weight).astype(x.dtype)
    b2 = mod.bias.reshape(1, C).astype(jnp.float32)
    y_nhwc = upsample_conv_nhwc(x_nhwc, w_cat, b2, tile_in_rows=4)
    y_tiled = jax.block_until_ready(jnp.transpose(y_nhwc, (0, 3, 1, 2)))
    assert jnp.allclose(y_tiled, y_ref, atol=1e-3, rtol=1e-3), \
        float(jnp.max(jnp.abs(y_tiled - y_ref)))

    # --- use_conv=False path --------------------------------------------------
    mod2 = Upsample(C, use_conv=False)
    y2 = jax.block_until_ready(mod2(x))
    assert y2.shape == (N, C, 2 * H, 2 * W)
    assert jnp.allclose(y2, x_up, atol=1e-5, rtol=1e-5)

    # explicit channel / row tiling for coverage
    y2b = jax.block_until_ready(
        upsample_nearest2x_pallas(x, tile_channels=2, tile_rows=8))
    assert jnp.allclose(y2b, x_up, atol=1e-5, rtol=1e-5)

    print("KERNEL_OK")
</pallas_src>

<mosaic_0001>
module attributes {stable_mosaic.version = 11 : i64} {
  func.func @_upsample_conv_kernel(%arg0: i32, %arg1: i32, %arg2: memref<1x16x16x4xf32, #tpu.memory_space<vmem>>, %arg3: memref<1x1x16x4xf32, #tpu.memory_space<vmem>>, %arg4: memref<1x1x16x4xf32, #tpu.memory_space<vmem>>, %arg5: memref<4x16x4xf32, #tpu.memory_space<vmem>>, %arg6: memref<1x4xf32, #tpu.memory_space<vmem>>, %arg7: memref<1x16x2x16x8xf32, #tpu.memory_space<vmem>>, %arg8: memref<18x18x4xf32, #tpu.memory_space<vmem>>) attributes {dimension_semantics = [#tpu.dimension_semantics<parallel>, #tpu.dimension_semantics<parallel>], iteration_bounds = array<i64: 2, 1>, scalar_prefetch = 0 : i64, scratch_operands = 1 : i64, tpu.core_type = #tpu.core_type<tc>, window_params = [{transform_indices = @transform_0, window_bounds = array<i64: 1, 16, 16, 4>}, {transform_indices = @transform_1, window_bounds = array<i64: 1, 1, 16, 4>}, {transform_indices = @transform_2, window_bounds = array<i64: 1, 1, 16, 4>}, {pipeline_mode = #tpu.pipeline_mode<synchronous>, transform_indices = @transform_3, window_bounds = array<i64: 4, 16, 4>}, {pipeline_mode = #tpu.pipeline_mode<synchronous>, transform_indices = @transform_4, window_bounds = array<i64: 1, 4>}, {transform_indices = @transform_5, window_bounds = array<i64: 1, 16, 2, 16, 8>}]} {
    %cst = arith.constant 0.000000e+00 : f32
    %0 = vector.broadcast %cst : f32 to vector<1x16x4xf32>
    %c0_i32 = arith.constant 0 : i32
    %1 = arith.cmpi sgt, %arg1, %c0_i32 : i32
    %c0 = arith.constant 0 : index
    %c0_0 = arith.constant 0 : index
    %c0_1 = arith.constant 0 : index
    %c0_2 = arith.constant 0 : index
    %2 = vector.load %arg3[%c0, %c0_0, %c0_1, %c0_2] : memref<1x1x16x4xf32, #tpu.memory_space<vmem>>, vector<1x1x16x4xf32>
    %3 = vector.shape_cast %2 : vector<1x1x16x4xf32> to vector<1x16x4xf32>
    %4 = arith.select %1, %3, %0 : vector<1x16x4xf32>
    %c0_i32_3 = arith.constant 0 : i32
    %5 = arith.cmpi slt, %arg1, %c0_i32_3 : i32
    %c0_4 = arith.constant 0 : index
    %c0_5 = arith.constant 0 : index
    %c0_6 = arith.constant 0 : index
    %c0_7 = arith.constant 0 : index
    %6 = vector.load %arg4[%c0_4, %c0_5, %c0_6, %c0_7] : memref<1x1x16x4xf32, #tpu.memory_space<vmem>>, vector<1x1x16x4xf32>
    %7 = vector.shape_cast %6 : vector<1x1x16x4xf32> to vector<1x16x4xf32>
    %8 = arith.select %5, %7, %0 : vector<1x16x4xf32>
    %cst_8 = arith.constant 0.000000e+00 : f32
    %9 = vector.broadcast %cst_8 : f32 to vector<18x1x4xf32>
    %c0_9 = arith.constant 0 : index
    %c0_10 = arith.constant 0 : index
    %c0_11 = arith.constant 0 : index
    %10 = vector.load %arg8[%c0_9, %c0_10, %c0_11] : memref<18x18x4xf32, #tpu.memory_space<vmem>>, vector<18x1x4xf32>
    tpu.vector_store %arg8[%c0_9, %c0_10, %c0_11], %9 {strides = array<i32>} : memref<18x18x4xf32, #tpu.memory_space<vmem>>, vector<18x1x4xf32>,
    %c0_12 = arith.constant 0 : index
    %c17 = arith.constant 17 : index
    %c0_13 = arith.constant 0 : index
    %11 = vector.load %arg8[%c0_12, %c17, %c0_13] : memref<18x18x4xf32, #tpu.memory_space<vmem>>, vector<18x1x4xf32>
    tpu.vector_store %arg8[%c0_12, %c17, %c0_13], %9 {strides = array<i32>} : memref<18x18x4xf32, #tpu.memory_space<vmem>>, vector<18x1x4xf32>,
    %c0_14 = arith.constant 0 : index
    %c1 = arith.constant 1 : index
    %c0_15 = arith.constant 0 : index
    %12 = vector.load %arg8[%c0_14, %c1, %c0_15] : memref<18x18x4xf32, #tpu.memory_space<vmem>>, vector<1x16x4xf32>
    tpu.vector_store %arg8[%c0_14, %c1, %c0_15], %4 {strides = array<i32>} : memref<18x18x4xf32, #tpu.memory_space<vmem>>, vector<1x16x4xf32>,
    %c17_16 = arith.constant 17 : index
    %c1_17 = arith.constant 1 : index
    %c0_18 = arith.constant 0 : index
    %13 = vector.load %arg8[%c17_16, %c1_17, %c0_18] : memref<18x18x4xf32, #tpu.memory_space<vmem>>, vector<1x16x4xf32>
    tpu.vector_store %arg8[%c17_16, %c1_17, %c0_18], %8 {strides = array<i32>} : memref<18x18x4xf32, #tpu.memory_space<vmem>>, vector<1x16x4xf32>,
    %c0_19 = arith.constant 0 : index
    %c0_20 = arith.constant 0 : index
    %c0_21 = arith.constant 0 : index
    %c0_22 = arith.constant 0 : index
    %14 = vector.load %arg2[%c0_19, %c0_20, %c0_21, %c0_22] : memref<1x16x16x4xf32, #tpu.memory_space<vmem>>, vector<1x16x16x4xf32>
    %15 = vector.shape_cast %14 : vector<1x16x16x4xf32> to vector<16x16x4xf32>
    %c1_23 = arith.constant 1 : index
    %c1_24 = arith.constant 1 : index
    %c0_25 = arith.constant 0 : index
    %16 = vector.load %arg8[%c1_23, %c1_24, %c0_25] : memref<18x18x4xf32, #tpu.memory_space<vmem>>, vector<16x16x4xf32>
    tpu.vector_store %arg8[%c1_23, %c1_24, %c0_25], %15 {strides = array<i32>} : memref<18x18x4xf32, #tpu.memory_space<vmem>>, vector<16x16x4xf32>,
    %c0_26 = arith.constant 0 : index
    %c0_27 = arith.constant 0 : index
    %17 = vector.load %arg6[%c0_26, %c0_27] : memref<1x4xf32, #tpu.memory_space<vmem>>, vector<1x4xf32>
    %c0_28 = arith.constant 0 : index
    %c0_29 = arith.constant 0 : index
    %c0_30 = arith.constant 0 : index
    %18 = vector.load %arg8[%c0_28, %c0_29, %c0_30] : memref<18x18x4xf32, #tpu.memory_space<vmem>>, vector<16x16x4xf32>
    %c0_31 = arith.constant 0 : index
    %c1_32 = arith.constant 1 : index
    %c0_33 = arith.constant 0 : index
    %19 = vector.load %arg8[%c0_31, %c1_32, %c0_33] : memref<18x18x4xf32, #tpu.memory_space<vmem>>, vector<16x16x4xf32>
    %c1_34 = arith.constant 1 : index
    %c0_35 = arith.constant 0 : index
    %c0_36 = arith.constant 0 : index
    %20 = vector.load %arg8[%c1_34, %c0_35, %c0_36] : memref<18x18x4xf32, #tpu.memory_space<vmem>>, vector<16x16x4xf32>
    %c1_37 = arith.constant 1 : index
    %c1_38 = arith.constant 1 : index
    %c0_39 = arith.constant 0 : index
    %21 = vector.load %arg8[%c1_37, %c1_38, %c0_39] : memref<18x18x4xf32, #tpu.memory_space<vmem>>, vector<16x16x4xf32>
    %22 = tpu.concatenate %18, %19, %20, %21 in 2 : vector<16x16x4xf32>, vector<16x16x4xf32>, vector<16x16x4xf32>, vector<16x16x4xf32> -> vector<16x16x16xf32>
    %23 = vector.shape_cast %22 : vector<16x16x16xf32> to vector<256x16xf32>
    %c0_40 = arith.constant 0 : index
    %c0_41 = arith.constant 0 : index
    %c0_42 = arith.constant 0 : index
    %24 = vector.load %arg5[%c0_40, %c0_41, %c0_42] : memref<4x16x4xf32, #tpu.memory_space<vmem>>, vector<1x16x4xf32>
    %25 = vector.shape_cast %24 : vector<1x16x4xf32> to vector<16x4xf32>
    %cst_43 = arith.constant dense<0.000000e+00> : vector<256x4xf32>
    %26 = tpu.matmul %23, %25, %cst_43 {dimension_numbers = #tpu.dot_dimension_numbers<[1], [0], [0], [1], [0, 0, 1, 1], [], []>} : vector<256x16xf32>, vector<16x4xf32>, vector<256x4xf32> -> vector<256x4xf32>
    %27 = vector.broadcast %17 : vector<1x4xf32> to vector<256x4xf32>
    %28 = arith.addf %26, %27 : vector<256x4xf32>
    %29 = vector.shape_cast %28 : vector<256x4xf32> to vector<16x16x4xf32>
    %c0_44 = arith.constant 0 : index
    %c0_45 = arith.constant 0 : index
    %c0_46 = arith.constant 0 : index
    %c0_47 = arith.constant 0 : index
    %c0_48 = arith.constant 0 : index
    %30 = vector.load %arg7[%c0_44, %c0_45, %c0_46, %c0_47, %c0_48] : memref<1x16x2x16x8xf32, #tpu.memory_space<vmem>>, vector<1x16x1x16x4xf32>
    %31 = vector.shape_cast %30 : vector<1x16x1x16x4xf32> to vector<16x16x4xf32>
    %32 = vector.shape_cast %29 : vector<16x16x4xf32> to vector<1x16x1x16x4xf32>
    tpu.vector_store %arg7[%c0_44, %c0_45, %c0_46, %c0_47, %c0_48], %32 {strides = array<i32>} : memref<1x16x2x16x8xf32, #tpu.memory_space<vmem>>, vector<1x16x1x16x4xf32>,
    %c0_49 = arith.constant 0 : index
    %c1_50 = arith.constant 1 : index
    %c0_51 = arith.constant 0 : index
    %33 = vector.load %arg8[%c0_49, %c1_50, %c0_51] : memref<18x18x4xf32, #tpu.memory_space<vmem>>, vector<16x16x4xf32>
    %c0_52 = arith.constant 0 : index
    %c2 = arith.constant 2 : index
    %c0_53 = arith.constant 0 : index
    %34 = vector.load %arg8[%c0_52, %c2, %c0_53] : memref<18x18x4xf32, #tpu.memory_space<vmem>>, vector<16x16x4xf32>
    %c1_54 = arith.constant 1 : index
    %c1_55 = arith.constant 1 : index
    %c0_56 = arith.constant 0 : index
    %35 = vector.load %arg8[%c1_54, %c1_55, %c0_56] : memref<18x18x4xf32, #tpu.memory_space<vmem>>, vector<16x16x4xf32>
    %c1_57 = arith.constant 1 : index
    %c2_58 = arith.constant 2 : index
    %c0_59 = arith.constant 0 : index
    %36 = vector.load %arg8[%c1_57, %c2_58, %c0_59] : memref<18x18x4xf32, #tpu.memory_space<vmem>>, vector<16x16x4xf32>
    %37 = tpu.concatenate %33, %34, %35, %36 in 2 : vector<16x16x4xf32>, vector<16x16x4xf32>, vector<16x16x4xf32>, vector<16x16x4xf32> -> vector<16x16x16xf32>
    %38 = vector.shape_cast %37 : vector<16x16x16xf32> to vector<256x16xf32>
    %c1_60 = arith.constant 1 : index
    %c0_61 = arith.constant 0 : index
    %c0_62 = arith.constant 0 : index
    %39 = vector.load %arg5[%c1_60, %c0_61, %c0_62] : memref<4x16x4xf32, #tpu.memory_space<vmem>>, vector<1x16x4xf32>
    %40 = vector.shape_cast %39 : vector<1x16x4xf32> to vector<16x4xf32>
    %cst_63 = arith.constant dense<0.000000e+00> : vector<256x4xf32>
    %41 = tpu.matmul %38, %40, %cst_63 {dimension_numbers = #tpu.dot_dimension_numbers<[1], [0], [0], [1], [0, 0, 1, 1], [], []>} : vector<256x16xf32>, vector<16x4xf32>, vector<256x4xf32> -> vector<256x4xf32>
    %42 = vector.broadcast %17 : vector<1x4xf32> to vector<256x4xf32>
    %43 = arith.addf %41, %42 : vector<256x4xf32>
    %44 = vector.shape_cast %43 : vector<256x4xf32> to vector<16x16x4xf32>
    %c0_64 = arith.constant 0 : index
    %c0_65 = arith.constant 0 : index
    %c0_66 = arith.constant 0 : index
    %c0_67 = arith.constant 0 : index
    %c4 = arith.constant 4 : index
    %45 = vector.load %arg7[%c0_64, %c0_65, %c0_66, %c0_67, %c4] : memref<1x16x2x16x8xf32, #tpu.memory_space<vmem>>, vector<1x16x1x16x4xf32>
    %46 = vector.shape_cast %45 : vector<1x16x1x16x4xf32> to vector<16x16x4xf32>
    %47 = vector.shape_cast %44 : vector<16x16x4xf32> to vector<1x16x1x16x4xf32>
    tpu.vector_store %arg7[%c0_64, %c0_65, %c0_66, %c0_67, %c4], %47 {strides = array<i32>} : memref<1x16x2x16x8xf32, #tpu.memory_space<vmem>>, vector<1x16x1x16x4xf32>,
    %c1_68 = arith.constant 1 : index
    %c0_69 = arith.constant 0 : index
    %c0_70 = arith.constant 0 : index
    %48 = vector.load %arg8[%c1_68, %c0_69, %c0_70] : memref<18x18x4xf32, #tpu.memory_space<vmem>>, vector<16x16x4xf32>
    %c1_71 = arith.constant 1 : index
    %c1_72 = arith.constant 1 : index
    %c0_73 = arith.constant 0 : index
    %49 = vector.load %arg8[%c1_71, %c1_72, %c0_73] : memref<18x18x4xf32, #tpu.memory_space<vmem>>, vector<16x16x4xf32>
    %c2_74 = arith.constant 2 : index
    %c0_75 = arith.constant 0 : index
    %c0_76 = arith.constant 0 : index
    %50 = vector.load %arg8[%c2_74, %c0_75, %c0_76] : memref<18x18x4xf32, #tpu.memory_space<vmem>>, vector<16x16x4xf32>
    %c2_77 = arith.constant 2 : index
    %c1_78 = arith.constant 1 : index
    %c0_79 = arith.constant 0 : index
    %51 = vector.load %arg8[%c2_77, %c1_78, %c0_79] : memref<18x18x4xf32, #tpu.memory_space<vmem>>, vector<16x16x4xf32>
    %52 = tpu.concatenate %48, %49, %50, %51 in 2 : vector<16x16x4xf32>, vector<16x16x4xf32>, vector<16x16x4xf32>, vector<16x16x4xf32> -> vector<16x16x16xf32>
    %53 = vector.shape_cast %52 : vector<16x16x16xf32> to vector<256x16xf32>
    %c2_80 = arith.constant 2 : index
    %c0_81 = arith.constant 0 : index
    %c0_82 = arith.constant 0 : index
    %54 = vector.load %arg5[%c2_80, %c0_81, %c0_82] : memref<4x16x4xf32, #tpu.memory_space<vmem>>, vector<1x16x4xf32>
    %55 = vector.shape_cast %54 : vector<1x16x4xf32> to vector<16x4xf32>
    %cst_83 = arith.constant dense<0.000000e+00> : vector<256x4xf32>
    %56 = tpu.matmul %53, %55, %cst_83 {dimension_numbers = #tpu.dot_dimension_numbers<[1], [0], [0], [1], [0, 0, 1, 1], [], []>} : vector<256x16xf32>, vector<16x4xf32>, vector<256x4xf32> -> vector<256x4xf32>
    %57 = vector.broadcast %17 : vector<1x4xf32> to vector<256x4xf32>
    %58 = arith.addf %56, %57 : vector<256x4xf32>
    %59 = vector.shape_cast %58 : vector<256x4xf32> to vector<16x16x4xf32>
    %c0_84 = arith.constant 0 : index
    %c0_85 = arith.constant 0 : index
    %c1_86 = arith.constant 1 : index
    %c0_87 = arith.constant 0 : index
    %c0_88 = arith.constant 0 : index
    %60 = vector.load %arg7[%c0_84, %c0_85, %c1_86, %c0_87, %c0_88] : memref<1x16x2x16x8xf32, #tpu.memory_space<vmem>>, vector<1x16x1x16x4xf32>
    %61 = vector.shape_cast %60 : vector<1x16x1x16x4xf32> to vector<16x16x4xf32>
    %62 = vector.shape_cast %59 : vector<16x16x4xf32> to vector<1x16x1x16x4xf32>
    tpu.vector_store %arg7[%c0_84, %c0_85, %c1_86, %c0_87, %c0_88], %62 {strides = array<i32>} : memref<1x16x2x16x8xf32, #tpu.memory_space<vmem>>, vector<1x16x1x16x4xf32>,
    %c1_89 = arith.constant 1 : index
    %c1_90 = arith.constant 1 : index
    %c0_91 = arith.constant 0 : index
    %63 = vector.load %arg8[%c1_89, %c1_90, %c0_91] : memref<18x18x4xf32, #tpu.memory_space<vmem>>, vector<16x16x4xf32>
    %c1_92 = arith.constant 1 : index
    %c2_93 = arith.constant 2 : index
    %c0_94 = arith.constant 0 : index
    %64 = vector.load %arg8[%c1_92, %c2_93, %c0_94] : memref<18x18x4xf32, #tpu.memory_space<vmem>>, vector<16x16x4xf32>
    %c2_95 = arith.constant 2 : index
    %c1_96 = arith.constant 1 : index
    %c0_97 = arith.constant 0 : index
    %65 = vector.load %arg8[%c2_95, %c1_96, %c0_97] : memref<18x18x4xf32, #tpu.memory_space<vmem>>, vector<16x16x4xf32>
    %c2_98 = arith.constant 2 : index
    %c2_99 = arith.constant 2 : index
    %c0_100 = arith.constant 0 : index
    %66 = vector.load %arg8[%c2_98, %c2_99, %c0_100] : memref<18x18x4xf32, #tpu.memory_space<vmem>>, vector<16x16x4xf32>
    %67 = tpu.concatenate %63, %64, %65, %66 in 2 : vector<16x16x4xf32>, vector<16x16x4xf32>, vector<16x16x4xf32>, vector<16x16x4xf32> -> vector<16x16x16xf32>
    %68 = vector.shape_cast %67 : vector<16x16x16xf32> to vector<256x16xf32>
    %c3 = arith.constant 3 : index
    %c0_101 = arith.constant 0 : index
    %c0_102 = arith.constant 0 : index
    %69 = vector.load %arg5[%c3, %c0_101, %c0_102] : memref<4x16x4xf32, #tpu.memory_space<vmem>>, vector<1x16x4xf32>
    %70 = vector.shape_cast %69 : vector<1x16x4xf32> to vector<16x4xf32>
    %cst_103 = arith.constant dense<0.000000e+00> : vector<256x4xf32>
    %71 = tpu.matmul %68, %70, %cst_103 {dimension_numbers = #tpu.dot_dimension_numbers<[1], [0], [0], [1], [0, 0, 1, 1], [], []>} : vector<256x16xf32>, vector<16x4xf32>, vector<256x4xf32> -> vector<256x4xf32>
    %72 = vector.broadcast %17 : vector<1x4xf32> to vector<256x4xf32>
    %73 = arith.addf %71, %72 : vector<256x4xf32>
    %74 = vector.shape_cast %73 : vector<256x4xf32> to vector<16x16x4xf32>
    %c0_104 = arith.constant 0 : index
    %c0_105 = arith.constant 0 : index
    %c1_106 = arith.constant 1 : index
    %c0_107 = arith.constant 0 : index
    %c4_108 = arith.constant 4 : index
    %75 = vector.load %arg7[%c0_104, %c0_105, %c1_106, %c0_107, %c4_108] : memref<1x16x2x16x8xf32, #tpu.memory_space<vmem>>, vector<1x16x1x16x4xf32>
    %76 = vector.shape_cast %75 : vector<1x16x1x16x4xf32> to vector<16x16x4xf32>
    %77 = vector.shape_cast %74 : vector<16x16x4xf32> to vector<1x16x1x16x4xf32>
    tpu.vector_store %arg7[%c0_104, %c0_105, %c1_106, %c0_107, %c4_108], %77 {strides = array<i32>} : memref<1x16x2x16x8xf32, #tpu.memory_space<vmem>>, vector<1x16x1x16x4xf32>,
    return
  }
  func.func @transform_0(%arg0: i32, %arg1: i32) -> (i32, i32, i32, i32) {
    %c0_i32 = arith.constant 0 : i32
    %c0_i32_0 = arith.constant 0 : i32
    %c0_i32_1 = arith.constant 0 : i32
    return %arg0, %arg1, %c0_i32, %c0_i32_0 : i32, i32, i32, i32
  }
  func.func @transform_1(%arg0: i32, %arg1: i32) -> (i32, i32, i32, i32) {
    %c16_i32 = arith.constant 16 : i32
    %0 = arith.muli %arg1, %c16_i32 : i32
    %c1_i32 = arith.constant 1 : i32
    %1 = arith.subi %0, %c1_i32 : i32
    %c0_i32 = arith.constant 0 : i32
    %2 = arith.maxsi %1, %c0_i32 : i32
    %c0_i32_0 = arith.constant 0 : i32
    %c0_i32_1 = arith.constant 0 : i32
    %c0_i32_2 = arith.constant 0 : i32
    return %arg0, %2, %c0_i32_0, %c0_i32_1 : i32, i32, i32, i32
  }
  func.func @transform_2(%arg0: i32, %arg1: i32) -> (i32, i32, i32, i32) {
    %c1_i32 = arith.constant 1 : i32
    %0 = arith.addi %arg1, %c1_i32 : i32
    %c16_i32 = arith.constant 16 : i32
    %1 = arith.muli %0, %c16_i32 : i32
    %c15_i32 = arith.constant 15 : i32
    %2 = arith.minsi %1, %c15_i32 : i32
    %c0_i32 = arith.constant 0 : i32
    %c0_i32_0 = arith.constant 0 : i32
    %c0_i32_1 = arith.constant 0 : i32
    return %arg0, %2, %c0_i32, %c0_i32_0 : i32, i32, i32, i32
  }
  func.func @transform_3(%arg0: i32, %arg1: i32) -> (i32, i32, i32) {
    %c0_i32 = arith.constant 0 : i32
    %c0_i32_0 = arith.constant 0 : i32
    %c0_i32_1 = arith.constant 0 : i32
    %c0_i32_2 = arith.constant 0 : i32
    return %c0_i32, %c0_i32_0, %c0_i32_1 : i32, i32, i32
  }
  func.func @transform_4(%arg0: i32, %arg1: i32) -> (i32, i32) {
    %c0_i32 = arith.constant 0 : i32
    %c0_i32_0 = arith.constant 0 : i32
    %c0_i32_1 = arith.constant 0 : i32
    return %c0_i32, %c0_i32_0 : i32, i32
  }
  func.func @transform_5(%arg0: i32, %arg1: i32) -> (i32, i32, i32, i32, i32) {
    %c0_i32 = arith.constant 0 : i32
    %c0_i32_0 = arith.constant 0 : i32
    %c0_i32_1 = arith.constant 0 : i32
    %c0_i32_2 = arith.constant 0 : i32
    return %arg0, %arg1, %c0_i32, %c0_i32_0, %c0_i32_1 : i32, i32, i32, i32, i32
  }
}

</mosaic_0001>

<llo_original>
// kernel: tpu_custom_call.1
$region0: #{tpu_custom_call.1}
  #allocation0 [shape = 'u32[]', space=smem, size = 0x4, offset = 0x4, fixed_abs, tag = 'smem constant byte address 0x4 - core index']
  #allocation1 [shape = 'u32[144,128]{1,0:T(1,128)}', space=vmem, size = 0x12000, scoped, tag = 'internal scratch']
  #allocation2 [shape = 'f32[18,18,4]{2,1,0:T(8,128)}', space=vmem, size = 0x36000, scoped, tag = 'scratch operand']
  %s0 = inlined_call_operand.vmem [shape: f32[2,16,16,4], index: 0, kind: input, shape index: {}]
  %s1 = inlined_call_operand.vmem [shape: f32[2,16,16,4], index: 1, kind: input, shape index: {}]
  %s2 = inlined_call_operand.vmem [shape: f32[2,16,16,4], index: 2, kind: input, shape index: {}]
  %s3 = inlined_call_operand.vmem [shape: f32[4,16,4], index: 3, kind: input, shape index: {}]
  %s4 = inlined_call_operand.vmem [shape: f32[1,4], index: 4, kind: input, shape index: {}]
  %s5 = inlined_call_operand.vmem [shape: f32[2,16,2,16,8], index: 5, kind: output, shape index: {}]
  %s6 = sld [smem:[#allocation0]]
  $region53: #{tpu_custom_call.1} parent=0
    _
  %s8 = ssub.s32 1, %s6
  %s9 = scalar_select 0, %s8, %s6
  loop: start=0, step=1, limit=4
  $region2: #{tpu_custom_call.1} parent=0 // loop_pre_header
    _
  $region3: #{tpu_custom_call.1} parent=0 // loop_header
    %s11 = sphi 0, %s15
    %p12 = scmp.ge.s32.totalorder %s11, 4
    %s18 = sphi 0, %s30
    %s19 = sphi 0, %s26
    %s20 = sphi 0, %s18
    %s21 = sphi 0, %s19
    %s22 = sphi 0, %s20
    %s23 = sphi 0, %s21
    %s35 = sphi 0, %s37
    %s38 = sphi 0, %s35
    %s39 = sphi 0, %s38
    %s55 = sphi 0, %s39
    %s71 = sphi 0, %s73
    %s74 = sphi 0, %s71
    %s75 = sphi 0, %s74
    %s91 = sphi 0, %s75
    %s107 = sphi 0, %s109
    %s110 = sphi 0, %s107
    %s111 = sphi 0, %s110
    %s127 = sphi 0, %s111
    %s131 = sphi 0, %s131
    %s133 = sphi 0, %s131
    %s134 = sphi 0, %s133
    %s148 = sphi 0, %s134
    %s152 = sphi 0, %s152
    %s154 = sphi 0, %s152
    %s155 = sphi 0, %s154
    %s169 = sphi 0, %s155
    %s177 = sphi 0, %s179
    %s180 = sphi 0, %s177
    %s181 = sphi 0, %s180
    %s197 = sphi 0, %s181
  $region4: #{tpu_custom_call.1} parent=0 // loop_header_branch
    %14 = sbr.rel (%p12) target = $region8
  $region5: #{tpu_custom_call.1} parent=0 // loop_body
    %s16 = ssub.s32 %s11, 1
    %s17 = ssub.s32 %s11, 2
    %s24 = sadd.s32 1, %s19
    %p25 = scmp.ge.s32.totalorder %s24, 1
    %s26 = scalar_select %p25, 0, %s24
    %s27 = sadd.s32 1, %s18
    %s28 = scalar_select %p25, %s27, %s18
    %p29 = scmp.ge.s32.totalorder %s28, 2
    %s30 = scalar_select %p29, 0, %s28
    %s31 = ssub.s32 %s18, %s30
    %s32 = ssub.s32 %s19, %s26
    %s33 = sor.u32 %s31, %s32
    %p34 = scmp.eq.s32.totalorder %s33, 0
    %s36 = sadd.s32 %s35, 1
    %s37 = scalar_select %p34, %s35, %s36
    %p40 = pneg %p34
    %p41 = scmp.eq.s32.totalorder %s11, 1
    %p42 = por %p40, %p41
    %p43 = scmp.ne.s32.totalorder %s35, %s38
    %p44 = scmp.eq.s32.totalorder %s11, 0
    %p45 = por %p43, %p44
    %p46 = scmp.ne.s32.totalorder %s35, %s38
    %p47 = scmp.eq.s32.totalorder %s16, 1
    %p48 = por %p46, %p47
    %p49 = scmp.ne.s32.totalorder %s38, %s39
    %p50 = scmp.eq.s32.totalorder %s16, 0
    %p51 = por %p49, %p50
    %p52 = scmp.ne.s32.totalorder %s38, %s39
    %p53 = scmp.eq.s32.totalorder %s17, 1
    %p54 = por %p52, %p53
    %p56 = scmp.ne.s32.totalorder %s39, %s55
    %p57 = scmp.eq.s32.totalorder %s17, 0
    %p58 = por %p56, %p57
    %s59 = smul.u32 %s19, 16
    %s60 = ssub.s32 %s59, 1
    %p61 = scmp.gt.s32.totalorder %s60, 0
    %s62 = scalar_select %p61, %s60, 0
    %s63 = smul.u32 %s26, 16
    %s64 = ssub.s32 %s63, 1
    %p65 = scmp.gt.s32.totalorder %s64, 0
    %s66 = scalar_select %p65, %s64, 0
    %s67 = ssub.s32 %s18, %s30
    %s68 = ssub.s32 %s62, %s66
    %s69 = sor.u32 %s67, %s68
    %p70 = scmp.eq.s32.totalorder %s69, 0
    %s72 = sadd.s32 %s71, 1
    %s73 = scalar_select %p70, %s71, %s72
    %p76 = pneg %p70
    %p77 = scmp.eq.s32.totalorder %s11, 1
    %p78 = por %p76, %p77
    %p79 = scmp.ne.s32.totalorder %s71, %s74
    %p80 = scmp.eq.s32.totalorder %s11, 0
    %p81 = por %p79, %p80
    %p82 = scmp.ne.s32.totalorder %s71, %s74
    %p83 = scmp.eq.s32.totalorder %s16, 1
    %p84 = por %p82, %p83
    %p85 = scmp.ne.s32.totalorder %s74, %s75
    %p86 = scmp.eq.s32.totalorder %s16, 0
    %p87 = por %p85, %p86
    %p88 = scmp.ne.s32.totalorder %s74, %s75
    %p89 = scmp.eq.s32.totalorder %s17, 1
    %p90 = por %p88, %p89
    %p92 = scmp.ne.s32.totalorder %s75, %s91
    %p93 = scmp.eq.s32.totalorder %s17, 0
    %p94 = por %p92, %p93
    %s95 = sadd.s32 %s19, 1
    %s96 = smul.u32 %s95, 16
    %p97 = scmp.lt.s32.totalorder %s96, 15
    %s98 = scalar_select %p97, %s96, 15
    %s99 = sadd.s32 %s26, 1
    %s100 = smul.u32 %s99, 16
    %p101 = scmp.lt.s32.totalorder %s100, 15
    %s102 = scalar_select %p101, %s100, 15
    %s103 = ssub.s32 %s18, %s30
    %s104 = ssub.s32 %s98, %s102
    %s105 = sor.u32 %s103, %s104
    %p106 = scmp.eq.s32.totalorder %s105, 0
    %s108 = sadd.s32 %s107, 1
    %s109 = scalar_select %p106, %s107, %s108
    %p112 = pneg %p106
    %p113 = scmp.eq.s32.totalorder %s11, 1
    %p114 = por %p112, %p113
    %p115 = scmp.ne.s32.totalorder %s107, %s110
    %p116 = scmp.eq.s32.totalorder %s11, 0
    %p117 = por %p115, %p116
    %p118 = scmp.ne.s32.totalorder %s107, %s110
    %p119 = scmp.eq.s32.totalorder %s16, 1
    %p120 = por %p118, %p119
    %p121 = scmp.ne.s32.totalorder %s110, %s111
    %p122 = scmp.eq.s32.totalorder %s16, 0
    %p123 = por %p121, %p122
    %p124 = scmp.ne.s32.totalorder %s110, %s111
    %p125 = scmp.eq.s32.totalorder %s17, 1
    %p126 = por %p124, %p125
    %p128 = scmp.ne.s32.totalorder %s111, %s127
    %p129 = scmp.eq.s32.totalorder %s17, 0
    %p130 = por %p128, %p129
    %s132 = sadd.s32 %s131, 1
    %p135 = scmp.eq.s32.totalorder %s11, 1
    %p136 = scmp.ne.s32.totalorder %s131, %s133
    %p137 = scmp.eq.s32.totalorder %s11, 0
    %p138 = por %p136, %p137
    %p139 = scmp.ne.s32.totalorder %s131, %s133
    %p140 = scmp.eq.s32.totalorder %s16, 1
    %p141 = por %p139, %p140
    %p142 = scmp.ne.s32.totalorder %s133, %s134
    %p143 = scmp.eq.s32.totalorder %s16, 0
    %p144 = por %p142, %p143
    %p145 = scmp.ne.s32.totalorder %s133, %s134
    %p146 = scmp.eq.s32.totalorder %s17, 1
    %p147 = por %p145, %p146
    %p149 = scmp.ne.s32.totalorder %s134, %s148
    %p150 = scmp.eq.s32.totalorder %s17, 0
    %p151 = por %p149, %p150
    %s153 = sadd.s32 %s152, 1
    %p156 = scmp.eq.s32.totalorder %s11, 1
    %p157 = scmp.ne.s32.totalorder %s152, %s154
    %p158 = scmp.eq.s32.totalorder %s11, 0
    %p159 = por %p157, %p158
    %p160 = scmp.ne.s32.totalorder %s152, %s154
    %p161 = scmp.eq.s32.totalorder %s16, 1
    %p162 = por %p160, %p161
    %p163 = scmp.ne.s32.totalorder %s154, %s155
    %p164 = scmp.eq.s32.totalorder %s16, 0
    %p165 = por %p163, %p164
    %p166 = scmp.ne.s32.totalorder %s154, %s155
    %p167 = scmp.eq.s32.totalorder %s17, 1
    %p168 = por %p166, %p167
    %p170 = scmp.ne.s32.totalorder %s155, %s169
    %p171 = scmp.eq.s32.totalorder %s17, 0
    %p172 = por %p170, %p171
    %s173 = ssub.s32 %s18, %s30
    %s174 = ssub.s32 %s19, %s26
    %s175 = sor.u32 %s173, %s174
    %p176 = scmp.eq.s32.totalorder %s175, 0
    %s178 = sadd.s32 %s177, 1
    %s179 = scalar_select %p176, %s177, %s178
    %p182 = pneg %p176
    %p183 = scmp.eq.s32.totalorder %s11, 1
    %p184 = por %p182, %p183
    %p185 = scmp.ne.s32.totalorder %s177, %s180
    %p186 = scmp.eq.s32.totalorder %s11, 0
    %p187 = por %p185, %p186
    %p188 = scmp.ne.s32.totalorder %s177, %s180
    %p189 = scmp.eq.s32.totalorder %s16, 1
    %p190 = por %p188, %p189
    %p191 = scmp.ne.s32.totalorder %s180, %s181
    %p192 = scmp.eq.s32.totalorder %s16, 0
    %p193 = por %p191, %p192
    %p194 = scmp.ne.s32.totalorder %s180, %s181
    %p195 = scmp.eq.s32.totalorder %s17, 1
    %p196 = por %p194, %p195
    %p198 = scmp.ne.s32.totalorder %s181, %s197
    %p199 = scmp.eq.s32.totalorder %s17, 0
    %p200 = por %p198, %p199
    %p201 = scmp.le.s32.totalorder 1, %s11
    %p202 = scmp.lt.s32.totalorder %s11, 3
    %p203 = pnand %p201, %p202
    %p204 = pneg %p203
    // Predicated region
    $region9: #{tpu_custom_call.1} parent=5 // pred_check
      _
    $region10: #{tpu_custom_call.1} parent=5 // pred_check_branch
      %206 = sbr.rel (%p203) target = $region12
    $region11: #{tpu_custom_call.1} parent=5 // pred_region
      %s207 = ssub.s32 %s11, 1
      // Predicated region
      $region13: #{tpu_custom_call.1} parent=11 // pred_check
        %p208 = pneg %p144
      $region14: #{tpu_custom_call.1} parent=11 // pred_check_branch
        %210 = sbr.rel (%p208) target = $region16
      $region15: #{tpu_custom_call.1} parent=11 // pred_region
        _
      $region16: #{tpu_custom_call.1} parent=11 // pred_fallthru
        _
      // Predicated region
      $region17: #{tpu_custom_call.1} parent=11 // pred_check
        %p211 = pneg %p165
      $region18: #{tpu_custom_call.1} parent=11 // pred_check_branch
        %213 = sbr.rel (%p211) target = $region20
      $region19: #{tpu_custom_call.1} parent=11 // pred_region
        _
      $region20: #{tpu_custom_call.1} parent=11 // pred_fallthru
        _
    $region12: #{tpu_custom_call.1} parent=5 // pred_fallthru
      _
    %p214 = scmp.lt.s32.totalorder %s11, 2
    // Predicated region
    $region21: #{tpu_custom_call.1} parent=5 // pred_check
      %p215 = pneg %p214
    $region22: #{tpu_custom_call.1} parent=5 // pred_check_branch
      %217 = sbr.rel (%p215) target = $region24
    $region23: #{tpu_custom_call.1} parent=5 // pred_region
      // Predicated region
      $region25: #{tpu_custom_call.1} parent=23 // pred_check
        %p218 = pneg %p45
      $region26: #{tpu_custom_call.1} parent=23 // pred_check_branch
        %220 = sbr.rel (%p218) target = $region28
      $region27: #{tpu_custom_call.1} parent=23 // pred_region
        %s221 = smul.u32 16, %s19
        %p222 = scmp.lt.s32.totalorder %s18, 1
        %s223 = scalar_select %p222, %s18, 1
        %p224 = scmp.lt.s32.totalorder %s221, 15
        %s225 = scalar_select %p224, %s221, 15
        %s226 = smul.addr %s225, 2
        %s227 = smul.addr %s223, 32
        %s228 = sadd.s32 %s226, %s227
        %s229 = smul.addr %s228, 8
        %s230 = scalar_lea.vmem %s0, %s229
        %s231 = smul.u32 16, %s19
      $region28: #{tpu_custom_call.1} parent=23 // pred_fallthru
        _
      // Predicated region
      $region29: #{tpu_custom_call.1} parent=23 // pred_check
        %p232 = pneg %p81
      $region30: #{tpu_custom_call.1} parent=23 // pred_check_branch
        %234 = sbr.rel (%p232) target = $region32
      $region31: #{tpu_custom_call.1} parent=23 // pred_region
        %s235 = smul.u32 %s19, 16
        %s236 = ssub.s32 %s235, 1
        %p237 = scmp.gt.s32.totalorder %s236, 0
        %s238 = scalar_select %p237, %s236, 0
        %p239 = scmp.lt.s32.totalorder %s18, 1
        %s240 = scalar_select %p239, %s18, 1
        %p241 = scmp.lt.s32.totalorder %s238, 15
        %s242 = scalar_select %p241, %s238, 15
        %s243 = smul.addr %s242, 2
        %s244 = smul.addr %s240, 32
        %s245 = sadd.s32 %s243, %s244
        %s246 = smul.addr %s245, 8
        %s247 = scalar_lea.vmem %s1, %s246
        %s248 = smul.u32 %s19, 16
        %s249 = ssub.s32 %s248, 1
        %p250 = scmp.gt.s32.totalorder %s249, 0
        %s251 = scalar_select %p250, %s249, 0
      $region32: #{tpu_custom_call.1} parent=23 // pred_fallthru
        _
      // Predicated region
      $region33: #{tpu_custom_call.1} parent=23 // pred_check
        %p252 = pneg %p117
      $region34: #{tpu_custom_call.1} parent=23 // pred_check_branch
        %254 = sbr.rel (%p252) target = $region36
      $region35: #{tpu_custom_call.1} parent=23 // pred_region
        %s255 = sadd.s32 %s19, 1
        %s256 = smul.u32 %s255, 16
        %p257 = scmp.lt.s32.totalorder %s256, 15
        %s258 = scalar_select %p257, %s256, 15
        %p259 = scmp.lt.s32.totalorder %s18, 1
        %s260 = scalar_select %p259, %s18, 1
        %p261 = scmp.lt.s32.totalorder %s258, 15
        %s262 = scalar_select %p261, %s258, 15
        %s263 = smul.addr %s262, 2
        %s264 = smul.addr %s260, 32
        %s265 = sadd.s32 %s263, %s264
        %s266 = smul.addr %s265, 8
        %s267 = scalar_lea.vmem %s2, %s266
        %s268 = sadd.s32 %s19, 1
        %s269 = smul.u32 %s268, 16
        %p270 = scmp.lt.s32.totalorder %s269, 15
        %s271 = scalar_select %p270, %s269, 15
      $region36: #{tpu_custom_call.1} parent=23 // pred_fallthru
        _
    $region24: #{tpu_custom_call.1} parent=5 // pred_fallthru
      _
    %p272 = scmp.le.s32.totalorder 1, %s11
    %p273 = scmp.lt.s32.totalorder %s11, 3
    %p274 = pnand %p272, %p273
    %p275 = pneg %p274
    // Predicated region
    $region37: #{tpu_custom_call.1} parent=5 // pred_check
      _
    $region38: #{tpu_custom_call.1} parent=5 // pred_check_branch
      %277 = sbr.rel (%p274) target = $region40
    $region39: #{tpu_custom_call.1} parent=5 // pred_region
      %s278 = ssub.s32 %s11, 1
      %s279 = smul.u32 16, %s21
      %p280 = scmp.lt.s32.totalorder %s20, 1
      %s281 = scalar_select %p280, %s20, 1
      %p282 = scmp.lt.s32.totalorder %s279, 15
      %s283 = scalar_select %p282, %s279, 15
      %s284 = smul.addr %s283, 2
      %s285 = smul.addr %s281, 32
      %s286 = sadd.s32 %s284, %s285
      %s287 = smul.addr %s286, 8
      %s288 = scalar_lea.vmem %s0, %s287
      %p289 = pneg %p51
      %p290 = pneg %p48
      %s291 = smul.u32 %s21, 16
      %s292 = ssub.s32 %s291, 1
      %p293 = scmp.gt.s32.totalorder %s292, 0
      %s294 = scalar_select %p293, %s292, 0
      %p295 = scmp.lt.s32.totalorder %s20, 1
      %s296 = scalar_select %p295, %s20, 1
      %p297 = scmp.lt.s32.totalorder %s294, 15
      %s298 = scalar_select %p297, %s294, 15
      %s299 = smul.addr %s298, 2
      %s300 = smul.addr %s296, 32
      %s301 = sadd.s32 %s299, %s300
      %s302 = smul.addr %s301, 8
      %s303 = scalar_lea.vmem %s1, %s302
      %p304 = pneg %p87
      %p305 = pneg %p84
      %s306 = sadd.s32 %s21, 1
      %s307 = smul.u32 %s306, 16
      %p308 = scmp.lt.s32.totalorder %s307, 15
      %s309 = scalar_select %p308, %s307, 15
      %p310 = scmp.lt.s32.totalorder %s20, 1
      %s311 = scalar_select %p310, %s20, 1
      %p312 = scmp.lt.s32.totalorder %s309, 15
      %s313 = scalar_select %p312, %s309, 15
      %s314 = smul.addr %s313, 2
      %s315 = smul.addr %s311, 32
      %s316 = sadd.s32 %s314, %s315
      %s317 = smul.addr %s316, 8
      %s318 = scalar_lea.vmem %s2, %s317
      %p319 = pneg %p123
      %p320 = pneg %p120
      %p321 = pneg %p144
      %p322 = pneg %p141
      %p323 = pneg %p165
      %p324 = pneg %p162
      %p325 = pneg %p193
      %p326 = pneg %p190
      %s327 = smul.u32 16, %s21
      %p328 = scmp.lt.s32.totalorder %s20, 1
      %s329 = scalar_select %p328, %s20, 1
      %p330 = scmp.lt.s32.totalorder %s327, 15
      %s331 = scalar_select %p330, %s327, 15
      %s332 = smul.addr %s331, 4
      %s333 = smul.addr %s329, 64
      %s334 = sadd.s32 %s332, %s333
      %s335 = smul.addr %s334, 8
      %s336 = scalar_lea.vmem %s5, %s335
      %s337 = smul.u32 16, %s21
      %p338 = scmp.lt.s32.totalorder %s20, 1
      %s339 = scalar_select %p338, %s20, 1
      %p340 = scmp.lt.s32.totalorder %s337, 15
      %s341 = scalar_select %p340, %s337, 15
      %s342 = smul.addr %s341, 2
      %s343 = smul.addr %s339, 32
      %s344 = sadd.s32 %s342, %s343
      %s345 = smul.addr %s344, 8
      %s346 = scalar_lea.vmem %s0, %s345
      %s347 = smul.u32 16, %s21
      %s348 = smul.u32 %s21, 16
      %s349 = ssub.s32 %s348, 1
      %p350 = scmp.gt.s32.totalorder %s349, 0
      %s351 = scalar_select %p350, %s349, 0
      %p352 = scmp.lt.s32.totalorder %s20, 1
      %s353 = scalar_select %p352, %s20, 1
      %p354 = scmp.lt.s32.totalorder %s351, 15
      %s355 = scalar_select %p354, %s351, 15
      %s356 = smul.addr %s355, 2
      %s357 = smul.addr %s353, 32
      %s358 = sadd.s32 %s356, %s357
      %s359 = smul.addr %s358, 8
      %s360 = scalar_lea.vmem %s1, %s359
      %s361 = smul.u32 %s21, 16
      %s362 = ssub.s32 %s361, 1
      %p363 = scmp.gt.s32.totalorder %s362, 0
      %s364 = scalar_select %p363, %s362, 0
      %s365 = sadd.s32 %s21, 1
      %s366 = smul.u32 %s365, 16
      %p367 = scmp.lt.s32.totalorder %s366, 15
      %s368 = scalar_select %p367, %s366, 15
      %p369 = scmp.lt.s32.totalorder %s20, 1
      %s370 = scalar_select %p369, %s20, 1
      %p371 = scmp.lt.s32.totalorder %s368, 15
      %s372 = scalar_select %p371, %s368, 15
      %s373 = smul.addr %s372, 2
      %s374 = smul.addr %s370, 32
      %s375 = sadd.s32 %s373, %s374
      %s376 = smul.addr %s375, 8
      %s377 = scalar_lea.vmem %s2, %s376
      %s378 = sadd.s32 %s21, 1
      %s379 = smul.u32 %s378, 16
      %p380 = scmp.lt.s32.totalorder %s379, 15
      %s381 = scalar_select %p380, %s379, 15
      %s382 = smul.u32 16, %s21
      %p383 = scmp.lt.s32.totalorder %s20, 1
      %s384 = scalar_select %p383, %s20, 1
      %p385 = scmp.lt.s32.totalorder %s382, 15
      %s386 = scalar_select %p385, %s382, 15
      %s387 = smul.addr %s386, 4
      %s388 = smul.addr %s384, 64
      %s389 = sadd.s32 %s387, %s388
      %s390 = smul.addr %s389, 8
      %s391 = scalar_lea.vmem %s5, %s390
      %s392 = smul.u32 16, %s21
      %p393 = scmp.gt.s32.totalorder %s21, 0
      %v394 = vld [vmem:[%s360] sm:$0xff]
      %v395 = vld [vmem:[%s360 + $0x8] sm:$0xff]
      %s396 = scalar_select %p393, 1, 0
      %v397 = vstv %s396
      %vm398 = vcmp.eq.s32.totalorder %v397, 1
      %v399 = vsel %vm398, %v394, 0.0
      %v400 = vsel %vm398, %v395, 0.0
      %p401 = scmp.lt.s32.totalorder %s21, 0
      %v402 = vld [vmem:[%s377] sm:$0xff]
      %v403 = vld [vmem:[%s377 + $0x8] sm:$0xff]
      %s404 = scalar_select %p401, 1, 0
      %v405 = vstv %s404
      %vm406 = vcmp.eq.s32.totalorder %v405, 1
      %v407 = vsel %vm406, %v402, 0.0
      %v408 = vsel %vm406, %v403, 0.0
      %vm409 = vcmask 24576
      %410 = vst.msk [vmem:[#allocation2] sm:$0x1] %vm409, 0.0
      %411 = vst.msk [vmem:[#allocation2 + $0x18] sm:$0x1] %vm409, 0.0
      %412 = vst.msk [vmem:[#allocation2 + $0x30] sm:$0x1] %vm409, 0.0
      %413 = vst.msk [vmem:[#allocation2 + $0x48] sm:$0x1] %vm409, 0.0
      %414 = vst.msk [vmem:[#allocation2 + $0x60] sm:$0x1] %vm409, 0.0
      %415 = vst.msk [vmem:[#allocation2 + $0x78] sm:$0x1] %vm409, 0.0
      %416 = vst.msk [vmem:[#allocation2 + $0x90] sm:$0x1] %vm409, 0.0
      %417 = vst.msk [vmem:[#allocation2 + $0xa8] sm:$0x1] %vm409, 0.0
      %418 = vst.msk [vmem:[#allocation2 + $0xc0] sm:$0x1] %vm409, 0.0
      %419 = vst.msk [vmem:[#allocation2 + $0xd8] sm:$0x1] %vm409, 0.0
      %420 = vst.msk [vmem:[#allocation2 + $0xf0] sm:$0x1] %vm409, 0.0
      %421 = vst.msk [vmem:[#allocation2 + $0x108] sm:$0x1] %vm409, 0.0
      %422 = vst.msk [vmem:[#allocation2 + $0x120] sm:$0x1] %vm409, 0.0
      %423 = vst.msk [vmem:[#allocation2 + $0x138] sm:$0x1] %vm409, 0.0
      %424 = vst.msk [vmem:[#allocation2 + $0x150] sm:$0x1] %vm409, 0.0
      %425 = vst.msk [vmem:[#allocation2 + $0x168] sm:$0x1] %vm409, 0.0
      %426 = vst.msk [vmem:[#allocation2 + $0x180] sm:$0x1] %vm409, 0.0
      %427 = vst.msk [vmem:[#allocation2 + $0x198] sm:$0x1] %vm409, 0.0
      %428 = vst.msk [vmem:[#allocation2 + $0x11] sm:$0x1] %vm409, 0.0
      %429 = vst.msk [vmem:[#allocation2 + $0x29] sm:$0x1] %vm409, 0.0
      %430 = vst.msk [vmem:[#allocation2 + $0x41] sm:$0x1] %vm409, 0.0
      %431 = vst.msk [vmem:[#allocation2 + $0x59] sm:$0x1] %vm409, 0.0
      %432 = vst.msk [vmem:[#allocation2 + $0x71] sm:$0x1] %vm409, 0.0
      %433 = vst.msk [vmem:[#allocation2 + $0x89] sm:$0x1] %vm409, 0.0
      %434 = vst.msk [vmem:[#allocation2 + $0xa1] sm:$0x1] %vm409, 0.0
      %435 = vst.msk [vmem:[#allocation2 + $0xb9] sm:$0x1] %vm409, 0.0
      %436 = vst.msk [vmem:[#allocation2 + $0xd1] sm:$0x1] %vm409, 0.0
      %437 = vst.msk [vmem:[#allocation2 + $0xe9] sm:$0x1] %vm409, 0.0
      %438 = vst.msk [vmem:[#allocation2 + $0x101] sm:$0x1] %vm409, 0.0
      %439 = vst.msk [vmem:[#allocation2 + $0x119] sm:$0x1] %vm409, 0.0
      %440 = vst.msk [vmem:[#allocation2 + $0x131] sm:$0x1] %vm409, 0.0
      %441 = vst.msk [vmem:[#allocation2 + $0x149] sm:$0x1] %vm409, 0.0
      %442 = vst.msk [vmem:[#allocation2 + $0x161] sm:$0x1] %vm409, 0.0
      %443 = vst.msk [vmem:[#allocation2 + $0x179] sm:$0x1] %vm409, 0.0
      %444 = vst.msk [vmem:[#allocation2 + $0x191] sm:$0x1] %vm409, 0.0
      %445 = vst.msk [vmem:[#allocation2 + $0x1a9] sm:$0x1] %vm409, 0.0
      %vm446 = vcmask 31744
      %447 = vst.msk [vmem:[#allocation2 + $0x1] sm:$0xff] %vm446, %v399
      %448 = vst.msk [vmem:[#allocation2 + $0x9] sm:$0xff] %vm446, %v400
      %s449 = scalar_lea.vmem [#allocation2], 408
      %450 = vst.msk [vmem:[%s449 + $0x1] sm:$0xff] %vm446, %v407
      %451 = vst.msk [vmem:[%s449 + $0x9] sm:$0xff] %vm446, %v408
      %v452 = vld [vmem:[%s346] sm:$0xff]
      %v453 = vld [vmem:[%s346 + $0x8] sm:$0xff]
      %v454 = vld [vmem:[%s346 + $0x10] sm:$0xff]
      %v455 = vld [vmem:[%s346 + $0x18] sm:$0xff]
      %v456 = vld [vmem:[%s346 + $0x20] sm:$0xff]
      %v457 = vld [vmem:[%s346 + $0x28] sm:$0xff]
      %v458 = vld [vmem:[%s346 + $0x30] sm:$0xff]
      %v459 = vld [vmem:[%s346 + $0x38] sm:$0xff]
      %v460 = vld [vmem:[%s346 + $0x40] sm:$0xff]
      %v461 = vld [vmem:[%s346 + $0x48] sm:$0xff]
      %v462 = vld [vmem:[%s346 + $0x50] sm:$0xff]
      %v463 = vld [vmem:[%s346 + $0x58] sm:$0xff]
      %v464 = vld [vmem:[%s346 + $0x60] sm:$0xff]
      %v465 = vld [vmem:[%s346 + $0x68] sm:$0xff]
      %v466 = vld [vmem:[%s346 + $0x70] sm:$0xff]
      %v467 = vld [vmem:[%s346 + $0x78] sm:$0xff]
      %v468 = vld [vmem:[%s346 + $0x80] sm:$0xff]
      %v469 = vld [vmem:[%s346 + $0x88] sm:$0xff]
      %v470 = vld [vmem:[%s346 + $0x90] sm:$0xff]
      %v471 = vld [vmem:[%s346 + $0x98] sm:$0xff]
      %v472 = vld [vmem:[%s346 + $0xa0] sm:$0xff]
      %v473 = vld [vmem:[%s346 + $0xa8] sm:$0xff]
      %v474 = vld [vmem:[%s346 + $0xb0] sm:$0xff]
      %v475 = vld [vmem:[%s346 + $0xb8] sm:$0xff]
      %v476 = vld [vmem:[%s346 + $0xc0] sm:$0xff]
      %v477 = vld [vmem:[%s346 + $0xc8] sm:$0xff]
      %v478 = vld [vmem:[%s346 + $0xd0] sm:$0xff]
      %v479 = vld [vmem:[%s346 + $0xd8] sm:$0xff]
      %v480 = vld [vmem:[%s346 + $0xe0] sm:$0xff]
      %v481 = vld [vmem:[%s346 + $0xe8] sm:$0xff]
      %v482 = vld [vmem:[%s346 + $0xf0] sm:$0xff]
      %v483 = vld [vmem:[%s346 + $0xf8] sm:$0xff]
      %s484 = scalar_lea.vmem [#allocation2], 24
      %485 = vst.msk [vmem:[%s484 + $0x1] sm:$0xff] %vm446, %v452
      %486 = vst.msk [vmem:[%s484 + $0x9] sm:$0xff] %vm446, %v453
      %487 = vst.msk [vmem:[%s484 + $0x19] sm:$0xff] %vm446, %v454
      %488 = vst.msk [vmem:[%s484 + $0x21] sm:$0xff] %vm446, %v455
      %489 = vst.msk [vmem:[%s484 + $0x31] sm:$0xff] %vm446, %v456
      %490 = vst.msk [vmem:[%s484 + $0x39] sm:$0xff] %vm446, %v457
      %491 = vst.msk [vmem:[%s484 + $0x49] sm:$0xff] %vm446, %v458
      %492 = vst.msk [vmem:[%s484 + $0x51] sm:$0xff] %vm446, %v459
      %493 = vst.msk [vmem:[%s484 + $0x61] sm:$0xff] %vm446, %v460
      %494 = vst.msk [vmem:[%s484 + $0x69] sm:$0xff] %vm446, %v461
      %495 = vst.msk [vmem:[%s484 + $0x79] sm:$0xff] %vm446, %v462
      %496 = vst.msk [vmem:[%s484 + $0x81] sm:$0xff] %vm446, %v463
      %497 = vst.msk [vmem:[%s484 + $0x91] sm:$0xff] %vm446, %v464
      %498 = vst.msk [vmem:[%s484 + $0x99] sm:$0xff] %vm446, %v465
      %499 = vst.msk [vmem:[%s484 + $0xa9] sm:$0xff] %vm446, %v466
      %500 = vst.msk [vmem:[%s484 + $0xb1] sm:$0xff] %vm446, %v467
      %501 = vst.msk [vmem:[%s484 + $0xc1] sm:$0xff] %vm446, %v468
      %502 = vst.msk [vmem:[%s484 + $0xc9] sm:$0xff] %vm446, %v469
      %503 = vst.msk [vmem:[%s484 + $0xd9] sm:$0xff] %vm446, %v470
      %504 = vst.msk [vmem:[%s484 + $0xe1] sm:$0xff] %vm446, %v471
      %505 = vst.msk [vmem:[%s484 + $0xf1] sm:$0xff] %vm446, %v472
      %506 = vst.msk [vmem:[%s484 + $0xf9] sm:$0xff] %vm446, %v473
      %507 = vst.msk [vmem:[%s484 + $0x109] sm:$0xff] %vm446, %v474
      %508 = vst.msk [vmem:[%s484 + $0x111] sm:$0xff] %vm446, %v475
      %509 = vst.msk [vmem:[%s484 + $0x121] sm:$0xff] %vm446, %v476
      %510 = vst.msk [vmem:[%s484 + $0x129] sm:$0xff] %vm446, %v477
      %511 = vst.msk [vmem:[%s484 + $0x139] sm:$0xff] %vm446, %v478
      %512 = vst.msk [vmem:[%s484 + $0x141] sm:$0xff] %vm446, %v479
      %513 = vst.msk [vmem:[%s484 + $0x151] sm:$0xff] %vm446, %v480
      %514 = vst.msk [vmem:[%s484 + $0x159] sm:$0xff] %vm446, %v481
      %515 = vst.msk [vmem:[%s484 + $0x169] sm:$0xff] %vm446, %v482
      %516 = vst.msk [vmem:[%s484 + $0x171] sm:$0xff] %vm446, %v483
      %v517 = vld [vmem:[%s4] sm:$0x1]
      %v518 = vld [vmem:[#allocation2] sm:$0xff]
      %v519 = vld [vmem:[#allocation2 + $0x8] sm:$0xff]
      %v520 = vld [vmem:[#allocation2 + $0x18] sm:$0xff]
      %v521 = vld [vmem:[#allocation2 + $0x20] sm:$0xff]
      %v522 = vld [vmem:[#allocation2 + $0x30] sm:$0xff]
      %v523 = vld [vmem:[#allocation2 + $0x38] sm:$0xff]
      %v524 = vld [vmem:[#allocation2 + $0x48] sm:$0xff]
      %v525 = vld [vmem:[#allocation2 + $0x50] sm:$0xff]
      %v526 = vld [vmem:[#allocation2 + $0x60] sm:$0xff]
      %v527 = vld [vmem:[#allocation2 + $0x68] sm:$0xff]
      %v528 = vld [vmem:[#allocation2 + $0x78] sm:$0xff]
      %v529 = vld [vmem:[#allocation2 + $0x80] sm:$0xff]
      %v530 = vld [vmem:[#allocation2 + $0x90] sm:$0xff]
      %v531 = vld [vmem:[#allocation2 + $0x98] sm:$0xff]
      %v532 = vld [vmem:[#allocation2 + $0xa8] sm:$0xff]
      %v533 = vld [vmem:[#allocation2 + $0xb0] sm:$0xff]
      %v534 = vld [vmem:[#allocation2 + $0xc0] sm:$0xff]
      %v535 = vld [vmem:[#allocation2 + $0xc8] sm:$0xff]
      %v536 = vld [vmem:[#allocation2 + $0xd8] sm:$0xff]
      %v537 = vld [vmem:[#allocation2 + $0xe0] sm:$0xff]
      %v538 = vld [vmem:[#allocation2 + $0xf0] sm:$0xff]
      %v539 = vld [vmem:[#allocation2 + $0xf8] sm:$0xff]
      %v540 = vld [vmem:[#allocation2 + $0x108] sm:$0xff]
      %v541 = vld [vmem:[#allocation2 + $0x110] sm:$0xff]
      %v542 = vld [vmem:[#allocation2 + $0x120] sm:$0xff]
      %v543 = vld [vmem:[#allocation2 + $0x128] sm:$0xff]
      %v544 = vld [vmem:[#allocation2 + $0x138] sm:$0xff]
      %v545 = vld [vmem:[#allocation2 + $0x140] sm:$0xff]
      %v546 = vld [vmem:[#allocation2 + $0x150] sm:$0xff]
      %v547 = vld [vmem:[#allocation2 + $0x158] sm:$0xff]
      %v548 = vld [vmem:[#allocation2 + $0x168] sm:$0xff]
      %v549 = vld [vmem:[#allocation2 + $0x170] sm:$0xff]
      %v550 = vld [vmem:[#allocation2 + $0x1] sm:$0xff]
      %v551 = vld [vmem:[#allocation2 + $0x9] sm:$0xff]
      %v552 = vld [vmem:[#allocation2 + $0x19] sm:$0xff]
      %v553 = vld [vmem:[#allocation2 + $0x21] sm:$0xff]
      %v554 = vld [vmem:[#allocation2 + $0x31] sm:$0xff]
      %v555 = vld [vmem:[#allocation2 + $0x39] sm:$0xff]
      %v556 = vld [vmem:[#allocation2 + $0x49] sm:$0xff]
      %v557 = vld [vmem:[#allocation2 + $0x51] sm:$0xff]
      %v558 = vld [vmem:[#allocation2 + $0x61] sm:$0xff]
      %v559 = vld [vmem:[#allocation2 + $0x69] sm:$0xff]
      %v560 = vld [vmem:[#allocation2 + $0x79] sm:$0xff]
      %v561 = vld [vmem:[#allocation2 + $0x81] sm:$0xff]
      %v562 = vld [vmem:[#allocation2 + $0x91] sm:$0xff]
      %v563 = vld [vmem:[#allocation2 + $0x99] sm:$0xff]
      %v564 = vld [vmem:[#allocation2 + $0xa9] sm:$0xff]
      %v565 = vld [vmem:[#allocation2 + $0xb1] sm:$0xff]
      %v566 = vld [vmem:[#allocation2 + $0xc1] sm:$0xff]
      %v567 = vld [vmem:[#allocation2 + $0xc9] sm:$0xff]
      %v568 = vld [vmem:[#allocation2 + $0xd9] sm:$0xff]
      %v569 = vld [vmem:[#allocation2 + $0xe1] sm:$0xff]
      %v570 = vld [vmem:[#allocation2 + $0xf1] sm:$0xff]
      %v571 = vld [vmem:[#allocation2 + $0xf9] sm:$0xff]
      %v572 = vld [vmem:[#allocation2 + $0x109] sm:$0xff]
      %v573 = vld [vmem:[#allocation2 + $0x111] sm:$0xff]
      %v574 = vld [vmem:[#allocation2 + $0x121] sm:$0xff]
      %v575 = vld [vmem:[#allocation2 + $0x129] sm:$0xff]
      %v576 = vld [vmem:[#allocation2 + $0x139] sm:$0xff]
      %v577 = vld [vmem:[#allocation2 + $0x141] sm:$0xff]
      %v578 = vld [vmem:[#allocation2 + $0x151] sm:$0xff]
      %v579 = vld [vmem:[#allocation2 + $0x159] sm:$0xff]
      %v580 = vld [vmem:[#allocation2 + $0x169] sm:$0xff]
      %v581 = vld [vmem:[#allocation2 + $0x171] sm:$0xff]
      %v582 = vld [vmem:[%s484] sm:$0xff]
      %v583 = vld [vmem:[%s484 + $0x8] sm:$0xff]
      %v584 = vld [vmem:[%s484 + $0x18] sm:$0xff]
      %v585 = vld [vmem:[%s484 + $0x20] sm:$0xff]
      %v586 = vld [vmem:[%s484 + $0x30] sm:$0xff]
      %v587 = vld [vmem:[%s484 + $0x38] sm:$0xff]
      %v588 = vld [vmem:[%s484 + $0x48] sm:$0xff]
      %v589 = vld [vmem:[%s484 + $0x50] sm:$0xff]
      %v590 = vld [vmem:[%s484 + $0x60] sm:$0xff]
      %v591 = vld [vmem:[%s484 + $0x68] sm:$0xff]
      %v592 = vld [vmem:[%s484 + $0x78] sm:$0xff]
      %v593 = vld [vmem:[%s484 + $0x80] sm:$0xff]
      %v594 = vld [vmem:[%s484 + $0x90] sm:$0xff]
      %v595 = vld [vmem:[%s484 + $0x98] sm:$0xff]
      %v596 = vld [vmem:[%s484 + $0xa8] sm:$0xff]
      %v597 = vld [vmem:[%s484 + $0xb0] sm:$0xff]
      %v598 = vld [vmem:[%s484 + $0xc0] sm:$0xff]
      %v599 = vld [vmem:[%s484 + $0xc8] sm:$0xff]
      %v600 = vld [vmem:[%s484 + $0xd8] sm:$0xff]
      %v601 = vld [vmem:[%s484 + $0xe0] sm:$0xff]
      %v602 = vld [vmem:[%s484 + $0xf0] sm:$0xff]
      %v603 = vld [vmem:[%s484 + $0xf8] sm:$0xff]
      %v604 = vld [vmem:[%s484 + $0x108] sm:$0xff]
      %v605 = vld [vmem:[%s484 + $0x110] sm:$0xff]
      %v606 = vld [vmem:[%s484 + $0x120] sm:$0xff]
      %v607 = vld [vmem:[%s484 + $0x128] sm:$0xff]
      %v608 = vld [vmem:[%s484 + $0x138] sm:$0xff]
      %v609 = vld [vmem:[%s484 + $0x140] sm:$0xff]
      %v610 = vld [vmem:[%s484 + $0x150] sm:$0xff]
      %v611 = vld [vmem:[%s484 + $0x158] sm:$0xff]
      %v612 = vld [vmem:[%s484 + $0x168] sm:$0xff]
      %v613 = vld [vmem:[%s484 + $0x170] sm:$0xff]
      %v614 = vld [vmem:[%s484 + $0x1] sm:$0xff]
      %v615 = vld [vmem:[%s484 + $0x9] sm:$0xff]
      %v616 = vld [vmem:[%s484 + $0x19] sm:$0xff]
      %v617 = vld [vmem:[%s484 + $0x21] sm:$0xff]
      %v618 = vld [vmem:[%s484 + $0x31] sm:$0xff]
      %v619 = vld [vmem:[%s484 + $0x39] sm:$0xff]
      %v620 = vld [vmem:[%s484 + $0x49] sm:$0xff]
      %v621 = vld [vmem:[%s484 + $0x51] sm:$0xff]
      %v622 = vld [vmem:[%s484 + $0x61] sm:$0xff]
      %v623 = vld [vmem:[%s484 + $0x69] sm:$0xff]
      %v624 = vld [vmem:[%s484 + $0x79] sm:$0xff]
      %v625 = vld [vmem:[%s484 + $0x81] sm:$0xff]
      %v626 = vld [vmem:[%s484 + $0x91] sm:$0xff]
      %v627 = vld [vmem:[%s484 + $0x99] sm:$0xff]
      %v628 = vld [vmem:[%s484 + $0xa9] sm:$0xff]
      %v629 = vld [vmem:[%s484 + $0xb1] sm:$0xff]
      %v630 = vld [vmem:[%s484 + $0xc1] sm:$0xff]
      %v631 = vld [vmem:[%s484 + $0xc9] sm:$0xff]
      %v632 = vld [vmem:[%s484 + $0xd9] sm:$0xff]
      %v633 = vld [vmem:[%s484 + $0xe1] sm:$0xff]
      %v634 = vld [vmem:[%s484 + $0xf1] sm:$0xff]
      %v635 = vld [vmem:[%s484 + $0xf9] sm:$0xff]
      %v636 = vld [vmem:[%s484 + $0x109] sm:$0xff]
      %v637 = vld [vmem:[%s484 + $0x111] sm:$0xff]
      %v638 = vld [vmem:[%s484 + $0x121] sm:$0xff]
      %v639 = vld [vmem:[%s484 + $0x129] sm:$0xff]
      %v640 = vld [vmem:[%s484 + $0x139] sm:$0xff]
      %v641 = vld [vmem:[%s484 + $0x141] sm:$0xff]
      %v642 = vld [vmem:[%s484 + $0x151] sm:$0xff]
      %v643 = vld [vmem:[%s484 + $0x159] sm:$0xff]
      %v644 = vld [vmem:[%s484 + $0x169] sm:$0xff]
      %v645 = vld [vmem:[%s484 + $0x171] sm:$0xff]
      %678 = vrot.lane.b32.xlu0 %v550, 4
      %v679 = vpop.permute.xlu0 %678
      %680 = vrot.lane.b32.xlu0 %v551, 4
      %v681 = vpop.permute.xlu0 %680
      %682 = vrot.lane.b32.xlu0 %v552, 4
      %v683 = vpop.permute.xlu0 %682
      %684 = vrot.lane.b32.xlu0 %v553, 4
      %v685 = vpop.permute.xlu0 %684
      %686 = vrot.lane.b32.xlu0 %v554, 4
      %v687 = vpop.permute.xlu0 %686
      %688 = vrot.lane.b32.xlu0 %v555, 4
      %v689 = vpop.permute.xlu0 %688
      %690 = vrot.lane.b32.xlu0 %v556, 4
      %v691 = vpop.permute.xlu0 %690
      %692 = vrot.lane.b32.xlu0 %v557, 4
      %v693 = vpop.permute.xlu0 %692
      %694 = vrot.lane.b32.xlu0 %v558, 4
      %v695 = vpop.permute.xlu0 %694
      %696 = vrot.lane.b32.xlu0 %v559, 4
      %v697 = vpop.permute.xlu0 %696
      %698 = vrot.lane.b32.xlu0 %v560, 4
      %v699 = vpop.permute.xlu0 %698
      %700 = vrot.lane.b32.xlu0 %v561, 4
      %v701 = vpop.permute.xlu0 %700
      %702 = vrot.lane.b32.xlu0 %v562, 4
      %v703 = vpop.permute.xlu0 %702
      %704 = vrot.lane.b32.xlu0 %v563, 4
      %v705 = vpop.permute.xlu0 %704
      %706 = vrot.lane.b32.xlu0 %v564, 4
      %v707 = vpop.permute.xlu0 %706
      %708 = vrot.lane.b32.xlu0 %v565, 4
      %v709 = vpop.permute.xlu0 %708
      %710 = vrot.lane.b32.xlu0 %v566, 4
      %v711 = vpop.permute.xlu0 %710
      %712 = vrot.lane.b32.xlu0 %v567, 4
      %v713 = vpop.permute.xlu0 %712
      %714 = vrot.lane.b32.xlu0 %v568, 4
      %v715 = vpop.permute.xlu0 %714
      %716 = vrot.lane.b32.xlu0 %v569, 4
      %v717 = vpop.permute.xlu0 %716
      %718 = vrot.lane.b32.xlu0 %v570, 4
      %v719 = vpop.permute.xlu0 %718
      %720 = vrot.lane.b32.xlu0 %v571, 4
      %v721 = vpop.permute.xlu0 %720
      %722 = vrot.lane.b32.xlu0 %v572, 4
      %v723 = vpop.permute.xlu0 %722
      %724 = vrot.lane.b32.xlu0 %v573, 4
      %v725 = vpop.permute.xlu0 %724
      %726 = vrot.lane.b32.xlu0 %v574, 4
      %v727 = vpop.permute.xlu0 %726
      %728 = vrot.lane.b32.xlu0 %v575, 4
      %v729 = vpop.permute.xlu0 %728
      %730 = vrot.lane.b32.xlu0 %v576, 4
      %v731 = vpop.permute.xlu0 %730
      %732 = vrot.lane.b32.xlu0 %v577, 4
      %v733 = vpop.permute.xlu0 %732
      %734 = vrot.lane.b32.xlu0 %v578, 4
      %v735 = vpop.permute.xlu0 %734
      %736 = vrot.lane.b32.xlu0 %v579, 4
      %v737 = vpop.permute.xlu0 %736
      %738 = vrot.lane.b32.xlu0 %v580, 4
      %v739 = vpop.permute.xlu0 %738
      %740 = vrot.lane.b32.xlu0 %v581, 4
      %v741 = vpop.permute.xlu0 %740
      %806 = vrot.lane.b32.xlu0 %v582, 8
      %v807 = vpop.permute.xlu0 %806
      %808 = vrot.lane.b32.xlu0 %v583, 8
      %v809 = vpop.permute.xlu0 %808
      %810 = vrot.lane.b32.xlu0 %v584, 8
      %v811 = vpop.permute.xlu0 %810
      %812 = vrot.lane.b32.xlu0 %v585, 8
      %v813 = vpop.permute.xlu0 %812
      %814 = vrot.lane.b32.xlu0 %v586, 8
      %v815 = vpop.permute.xlu0 %814
      %816 = vrot.lane.b32.xlu0 %v587, 8
      %v817 = vpop.permute.xlu0 %816
      %818 = vrot.lane.b32.xlu0 %v588, 8
      %v819 = vpop.permute.xlu0 %818
      %820 = vrot.lane.b32.xlu0 %v589, 8
      %v821 = vpop.permute.xlu0 %820
      %822 = vrot.lane.b32.xlu0 %v590, 8
      %v823 = vpop.permute.xlu0 %822
      %824 = vrot.lane.b32.xlu0 %v591, 8
      %v825 = vpop.permute.xlu0 %824
      %826 = vrot.lane.b32.xlu0 %v592, 8
      %v827 = vpop.permute.xlu0 %826
      %828 = vrot.lane.b32.xlu0 %v593, 8
      %v829 = vpop.permute.xlu0 %828
      %830 = vrot.lane.b32.xlu0 %v594, 8
      %v831 = vpop.permute.xlu0 %830
      %832 = vrot.lane.b32.xlu0 %v595, 8
      %v833 = vpop.permute.xlu0 %832
      %834 = vrot.lane.b32.xlu0 %v596, 8
      %v835 = vpop.permute.xlu0 %834
      %836 = vrot.lane.b32.xlu0 %v597, 8
      %v837 = vpop.permute.xlu0 %836
      %838 = vrot.lane.b32.xlu0 %v598, 8
      %v839 = vpop.permute.xlu0 %838
      %840 = vrot.lane.b32.xlu0 %v599, 8
      %v841 = vpop.permute.xlu0 %840
      %842 = vrot.lane.b32.xlu0 %v600, 8
      %v843 = vpop.permute.xlu0 %842
      %844 = vrot.lane.b32.xlu0 %v601, 8
      %v845 = vpop.permute.xlu0 %844
      %846 = vrot.lane.b32.xlu0 %v602, 8
      %v847 = vpop.permute.xlu0 %846
      %848 = vrot.lane.b32.xlu0 %v603, 8
      %v849 = vpop.permute.xlu0 %848
      %850 = vrot.lane.b32.xlu0 %v604, 8
      %v851 = vpop.permute.xlu0 %850
      %852 = vrot.lane.b32.xlu0 %v605, 8
      %v853 = vpop.permute.xlu0 %852
      %854 = vrot.lane.b32.xlu0 %v606, 8
      %v855 = vpop.permute.xlu0 %854
      %856 = vrot.lane.b32.xlu0 %v607, 8
      %v857 = vpop.permute.xlu0 %856
      %858 = vrot.lane.b32.xlu0 %v608, 8
      %v859 = vpop.permute.xlu0 %858
      %860 = vrot.lane.b32.xlu0 %v609, 8
      %v861 = vpop.permute.xlu0 %860
      %862 = vrot.lane.b32.xlu0 %v610, 8
      %v863 = vpop.permute.xlu0 %862
      %864 = vrot.lane.b32.xlu0 %v611, 8
      %v865 = vpop.permute.xlu0 %864
      %866 = vrot.lane.b32.xlu0 %v612, 8
      %v867 = vpop.permute.xlu0 %866
      %868 = vrot.lane.b32.xlu0 %v613, 8
      %v869 = vpop.permute.xlu0 %868
      %934 = vrot.lane.b32.xlu0 %v614, 12
      %v935 = vpop.permute.xlu0 %934
      %936 = vrot.lane.b32.xlu0 %v615, 12
      %v937 = vpop.permute.xlu0 %936
      %938 = vrot.lane.b32.xlu0 %v616, 12
      %v939 = vpop.permute.xlu0 %938
      %940 = vrot.lane.b32.xlu0 %v617, 12
      %v941 = vpop.permute.xlu0 %940
      %942 = vrot.lane.b32.xlu0 %v618, 12
      %v943 = vpop.permute.xlu0 %942
      %944 = vrot.lane.b32.xlu0 %v619, 12
      %v945 = vpop.permute.xlu0 %944
      %946 = vrot.lane.b32.xlu0 %v620, 12
      %v947 = vpop.permute.xlu0 %946
      %948 = vrot.lane.b32.xlu0 %v621, 12
      %v949 = vpop.permute.xlu0 %948
      %950 = vrot.lane.b32.xlu0 %v622, 12
      %v951 = vpop.permute.xlu0 %950
      %952 = vrot.lane.b32.xlu0 %v623, 12
      %v953 = vpop.permute.xlu0 %952
      %954 = vrot.lane.b32.xlu0 %v624, 12
      %v955 = vpop.permute.xlu0 %954
      %956 = vrot.lane.b32.xlu0 %v625, 12
      %v957 = vpop.permute.xlu0 %956
      %958 = vrot.lane.b32.xlu0 %v626, 12
      %v959 = vpop.permute.xlu0 %958
      %960 = vrot.lane.b32.xlu0 %v627, 12
      %v961 = vpop.permute.xlu0 %960
      %962 = vrot.lane.b32.xlu0 %v628, 12
      %v963 = vpop.permute.xlu0 %962
      %964 = vrot.lane.b32.xlu0 %v629, 12
      %v965 = vpop.permute.xlu0 %964
      %966 = vrot.lane.b32.xlu0 %v630, 12
      %v967 = vpop.permute.xlu0 %966
      %968 = vrot.lane.b32.xlu0 %v631, 12
      %v969 = vpop.permute.xlu0 %968
      %970 = vrot.lane.b32.xlu0 %v632, 12
      %v971 = vpop.permute.xlu0 %970
      %972 = vrot.lane.b32.xlu0 %v633, 12
      %v973 = vpop.permute.xlu0 %972
      %974 = vrot.lane.b32.xlu0 %v634, 12
      %v975 = vpop.permute.xlu0 %974
      %976 = vrot.lane.b32.xlu0 %v635, 12
      %v977 = vpop.permute.xlu0 %976
      %978 = vrot.lane.b32.xlu0 %v636, 12
      %v979 = vpop.permute.xlu0 %978
      %980 = vrot.lane.b32.xlu0 %v637, 12
      %v981 = vpop.permute.xlu0 %980
      %982 = vrot.lane.b32.xlu0 %v638, 12
      %v983 = vpop.permute.xlu0 %982
      %984 = vrot.lane.b32.xlu0 %v639, 12
      %v985 = vpop.permute.xlu0 %984
      %986 = vrot.lane.b32.xlu0 %v640, 12
      %v987 = vpop.permute.xlu0 %986
      %988 = vrot.lane.b32.xlu0 %v641, 12
      %v989 = vpop.permute.xlu0 %988
      %990 = vrot.lane.b32.xlu0 %v642, 12
      %v991 = vpop.permute.xlu0 %990
      %992 = vrot.lane.b32.xlu0 %v643, 12
      %v993 = vpop.permute.xlu0 %992
      %994 = vrot.lane.b32.xlu0 %v644, 12
      %v995 = vpop.permute.xlu0 %994
      %996 = vrot.lane.b32.xlu0 %v645, 12
      %v997 = vpop.permute.xlu0 %996
      %v1030 = vsel %vm446, %v518, %v679
      %v1031 = vsel %vm446, %v519, %v681
      %v1032 = vsel %vm446, %v520, %v683
      %v1033 = vsel %vm446, %v521, %v685
      %v1034 = vsel %vm446, %v522, %v687
      %v1035 = vsel %vm446, %v523, %v689
      %v1036 = vsel %vm446, %v524, %v691
      %v1037 = vsel %vm446, %v525, %v693
      %v1038 = vsel %vm446, %v526, %v695
      %v1039 = vsel %vm446, %v527, %v697
      %v1040 = vsel %vm446, %v528, %v699
      %v1041 = vsel %vm446, %v529, %v701
      %v1042 = vsel %vm446, %v530, %v703
      %v1043 = vsel %vm446, %v531, %v705
      %v1044 = vsel %vm446, %v532, %v707
      %v1045 = vsel %vm446, %v533, %v709
      %v1046 = vsel %vm446, %v534, %v711
      %v1047 = vsel %vm446, %v535, %v713
      %v1048 = vsel %vm446, %v536, %v715
      %v1049 = vsel %vm446, %v537, %v717
      %v1050 = vsel %vm446, %v538, %v719
      %v1051 = vsel %vm446, %v539, %v721
      %v1052 = vsel %vm446, %v540, %v723
      %v1053 = vsel %vm446, %v541, %v725
      %v1054 = vsel %vm446, %v542, %v727
      %v1055 = vsel %vm446, %v543, %v729
      %v1056 = vsel %vm446, %v544, %v731
      %v1057 = vsel %vm446, %v545, %v733
      %v1058 = vsel %vm446, %v546, %v735
      %v1059 = vsel %vm446, %v547, %v737
      %v1060 = vsel %vm446, %v548, %v739
      %v1061 = vsel %vm446, %v549, %v741
      %vm1062 = vcmask 64512
      %v1063 = vsel %vm1062, %v1030, %v807
      %v1064 = vsel %vm1062, %v1031, %v809
      %v1065 = vsel %vm1062, %v1032, %v811
      %v1066 = vsel %vm1062, %v1033, %v813
      %v1067 = vsel %vm1062, %v1034, %v815
      %v1068 = vsel %vm1062, %v1035, %v817
      %v1069 = vsel %vm1062, %v1036, %v819
      %v1070 = vsel %vm1062, %v1037, %v821
      %v1071 = vsel %vm1062, %v1038, %v823
      %v1072 = vsel %vm1062, %v1039, %v825
      %v1073 = vsel %vm1062, %v1040, %v827
      %v1074 = vsel %vm1062, %v1041, %v829
      %v1075 = vsel %vm1062, %v1042, %v831
      %v1076 = vsel %vm1062, %v1043, %v833
      %v1077 = vsel %vm1062, %v1044, %v835
      %v1078 = vsel %vm1062, %v1045, %v837
      %v1079 = vsel %vm1062, %v1046, %v839
      %v1080 = vsel %vm1062, %v1047, %v841
      %v1081 = vsel %vm1062, %v1048, %v843
      %v1082 = vsel %vm1062, %v1049, %v845
      %v1083 = vsel %vm1062, %v1050, %v847
      %v1084 = vsel %vm1062, %v1051, %v849
      %v1085 = vsel %vm1062, %v1052, %v851
      %v1086 = vsel %vm1062, %v1053, %v853
      %v1087 = vsel %vm1062, %v1054, %v855
      %v1088 = vsel %vm1062, %v1055, %v857
      %v1089 = vsel %vm1062, %v1056, %v859
      %v1090 = vsel %vm1062, %v1057, %v861
      %v1091 = vsel %vm1062, %v1058, %v863
      %v1092 = vsel %vm1062, %v1059, %v865
      %v1093 = vsel %vm1062, %v1060, %v867
      %v1094 = vsel %vm1062, %v1061, %v869
      %vm1095 = vcmask 97280
      %v1096 = vsel %vm1095, %v1063, %v935
      %v1097 = vsel %vm1095, %v1064, %v937
      %v1098 = vsel %vm1095, %v1065, %v939
      %v1099 = vsel %vm1095, %v1066, %v941
      %v1100 = vsel %vm1095, %v1067, %v943
      %v1101 = vsel %vm1095, %v1068, %v945
      %v1102 = vsel %vm1095, %v1069, %v947
      %v1103 = vsel %vm1095, %v1070, %v949
      %v1104 = vsel %vm1095, %v1071, %v951
      %v1105 = vsel %vm1095, %v1072, %v953
      %v1106 = vsel %vm1095, %v1073, %v955
      %v1107 = vsel %vm1095, %v1074, %v957
      %v1108 = vsel %vm1095, %v1075, %v959
      %v1109 = vsel %vm1095, %v1076, %v961
      %v1110 = vsel %vm1095, %v1077, %v963
      %v1111 = vsel %vm1095, %v1078, %v965
      %v1112 = vsel %vm1095, %v1079, %v967
      %v1113 = vsel %vm1095, %v1080, %v969
      %v1114 = vsel %vm1095, %v1081, %v971
      %v1115 = vsel %vm1095, %v1082, %v973
      %v1116 = vsel %vm1095, %v1083, %v975
      %v1117 = vsel %vm1095, %v1084, %v977
      %v1118 = vsel %vm1095, %v1085, %v979
      %v1119 = vsel %vm1095, %v1086, %v981
      %v1120 = vsel %vm1095, %v1087, %v983
      %v1121 = vsel %vm1095, %v1088, %v985
      %v1122 = vsel %vm1095, %v1089, %v987
      %v1123 = vsel %vm1095, %v1090, %v989
      %v1124 = vsel %vm1095, %v1091, %v991
      %v1125 = vsel %vm1095, %v1092, %v993
      %v1126 = vsel %vm1095, %v1093, %v995
      %v1127 = vsel %vm1095, %v1094, %v997
      %v1128 = vld [vmem:[%s3] sm:$0xff]
      %v1129 = vld [vmem:[%s3 + $0x8] sm:$0xff]
      %v1131 = vlaneseq
      %v1132 = vshrl.u32 %v1131, 7
      %v1133 = vsub.s32 0, %v1132
      %v1134 = vrot.slane %v517, %v1133
      %vm1136 = vcmask 130048
      %v1138 = vsel %vm1136, %v1096, 0
      %v1141 = vsel %vm1136, %v1097, 0
      %v1144 = vsel %vm1136, %v1098, 0
      %v1147 = vsel %vm1136, %v1099, 0
      %v1150 = vsel %vm1136, %v1100, 0
      %v1153 = vsel %vm1136, %v1101, 0
      %v1156 = vsel %vm1136, %v1102, 0
      %v1159 = vsel %vm1136, %v1103, 0
      %v1162 = vsel %vm1136, %v1104, 0
      %v1165 = vsel %vm1136, %v1105, 0
      %v1168 = vsel %vm1136, %v1106, 0
      %v1171 = vsel %vm1136, %v1107, 0
      %v1174 = vsel %vm1136, %v1108, 0
      %v1177 = vsel %vm1136, %v1109, 0
      %v1180 = vsel %vm1136, %v1110, 0
      %v1183 = vsel %vm1136, %v1111, 0
      %v1186 = vsel %vm1136, %v1112, 0
      %v1189 = vsel %vm1136, %v1113, 0
      %v1192 = vsel %vm1136, %v1114, 0
      %v1195 = vsel %vm1136, %v1115, 0
      %v1198 = vsel %vm1136, %v1116, 0
      %v1201 = vsel %vm1136, %v1117, 0
      %v1204 = vsel %vm1136, %v1118, 0
      %v1207 = vsel %vm1136, %v1119, 0
      %v1210 = vsel %vm1136, %v1120, 0
      %v1213 = vsel %vm1136, %v1121, 0
      %v1216 = vsel %vm1136, %v1122, 0
      %v1219 = vsel %vm1136, %v1123, 0
      %v1222 = vsel %vm1136, %v1124, 0
      %v1225 = vsel %vm1136, %v1125, 0
      %v1228 = vsel %vm1136, %v1126, 0
      %v1231 = vsel %vm1136, %v1127, 0
      %1233 = vmatprep.subr.mxu0 0.0
      %1234 = vmatpush1.msra.mxu0 0.0
      %1235 = vmatprep.subr.mxu0 0.0
      %1236 = vmatpush1.msra.mxu0 0.0
      %1237 = vmatprep.subr.mxu0 0.0
      %1238 = vmatpush1.msra.mxu0 0.0
      %1239 = vmatprep.subr.mxu0 0.0
      %1240 = vmatpush1.msra.mxu0 0.0
      %1241 = vmatprep.subr.mxu0 0.0
      %1242 = vmatpush1.msra.mxu0 0.0
      %1243 = vmatprep.subr.mxu0 0.0
      %1244 = vmatpush1.msra.mxu0 0.0
      %1245 = vmatprep.subr.mxu0 0.0
      %1246 = vmatpush1.msra.mxu0 0.0
      %1247 = vmatprep.subr.mxu0 0.0
      %1248 = vmatpush1.msra.mxu0 0.0
      %1249 = vmatprep.subr.mxu0 0.0
      %1250 = vmatpush1.msra.mxu0 0.0
      %1251 = vmatprep.subr.mxu0 0.0
      %1252 = vmatpush1.msra.mxu0 0.0
      %1253 = vmatprep.subr.mxu0 0.0
      %1254 = vmatpush1.msra.mxu0 0.0
      %1255 = vmatprep.subr.mxu0 0.0
      %1256 = vmatpush1.msra.mxu0 0.0
      %1257 = vmatprep.subr.mxu0 0.0
      %1258 = vmatpush1.msra.mxu0 0.0
      %1259 = vmatprep.subr.mxu0 0.0
      %1260 = vmatpush1.msra.mxu0 0.0
      %1261 = vmatprep.subr.mxu0 0.0
      %1262 = vmatpush1.msra.mxu0 %v1129
      %1263 = vmatprep.subr.mxu0 0.0
      %1264 = vmatpush1.msra.mxu0 %v1128
      %1265 = vmatprep.subr.mxu0 0.0
      %1266 = vmatpush2.msra.mxu0 0.0
      %1267 = vmatprep.subr.mxu0 0.0
      %1268 = vmatpush2.msra.mxu0 0.0
      %1269 = vmatprep.subr.mxu0 0.0
      %1270 = vmatpush2.msra.mxu0 0.0
      %1271 = vmatprep.subr.mxu0 0.0
      %1272 = vmatpush2.msra.mxu0 0.0
      %1273 = vmatprep.subr.mxu0 0.0
      %1274 = vmatpush2.msra.mxu0 0.0
      %1275 = vmatprep.subr.mxu0 0.0
      %1276 = vmatpush2.msra.mxu0 0.0
      %1277 = vmatprep.subr.mxu0 0.0
      %1278 = vmatpush2.msra.mxu0 0.0
      %1279 = vmatprep.subr.mxu0 0.0
      %1280 = vmatpush2.msra.mxu0 0.0
      %1281 = vmatprep.subr.mxu0 0.0
      %1282 = vmatpush2.msra.mxu0 0.0
      %1283 = vmatprep.subr.mxu0 0.0
      %1284 = vmatpush2.msra.mxu0 0.0
      %1285 = vmatprep.subr.mxu0 0.0
      %1286 = vmatpush2.msra.mxu0 0.0
      %1287 = vmatprep.subr.mxu0 0.0
      %1288 = vmatpush2.msra.mxu0 0.0
      %1289 = vmatprep.subr.mxu0 0.0
      %1290 = vmatpush2.msra.mxu0 0.0
      %1291 = vmatprep.subr.mxu0 0.0
      %1292 = vmatpush2.msra.mxu0 0.0
      %1293 = vmatprep.subr.mxu0 0.0
      %1294 = vmatpush2.msra.mxu0 0.0
      %1295 = vmatprep.subr.mxu0 0.0
      %1296 = vmatpush2.msra.mxu0 0.0
      %1297 = vmatprep.mubr.f32.mxu0 0.0
      %1298 = vmatmul.mubr.f32.gmra.mxu0 %v1138
      %v1299 = vpop.f32.mrf.mxu0
      %v1300 = vadd.f32 %v1134, %v1299
      %v1301 = vpop.f32.mrf.mxu0
      %1302 = vmatprep.mubr.f32.mxu0 0.0
      %1303 = vmatmul.mubr.f32.gmra.mxu0 %v1141
      %v1304 = vpop.f32.mrf.mxu0
      %v1305 = vadd.f32 %v1134, %v1304
      %v1306 = vpop.f32.mrf.mxu0
      %1307 = vmatprep.mubr.f32.mxu0 0.0
      %1308 = vmatmul.mubr.f32.gmra.mxu0 %v1144
      %v1309 = vpop.f32.mrf.mxu0
      %v1310 = vadd.f32 %v1134, %v1309
      %v1311 = vpop.f32.mrf.mxu0
      %1312 = vmatprep.mubr.f32.mxu0 0.0
      %1313 = vmatmul.mubr.f32.gmra.mxu0 %v1147
      %v1314 = vpop.f32.mrf.mxu0
      %v1315 = vadd.f32 %v1134, %v1314
      %v1316 = vpop.f32.mrf.mxu0
      %1317 = vmatprep.mubr.f32.mxu0 0.0
      %1318 = vmatmul.mubr.f32.gmra.mxu0 %v1150
      %v1319 = vpop.f32.mrf.mxu0
      %v1320 = vadd.f32 %v1134, %v1319
      %v1321 = vpop.f32.mrf.mxu0
      %1322 = vmatprep.mubr.f32.mxu0 0.0
      %1323 = vmatmul.mubr.f32.gmra.mxu0 %v1153
      %v1324 = vpop.f32.mrf.mxu0
      %v1325 = vadd.f32 %v1134, %v1324
      %v1326 = vpop.f32.mrf.mxu0
      %1327 = vmatprep.mubr.f32.mxu0 0.0
      %1328 = vmatmul.mubr.f32.gmra.mxu0 %v1156
      %v1329 = vpop.f32.mrf.mxu0
      %v1330 = vadd.f32 %v1134, %v1329
      %v1331 = vpop.f32.mrf.mxu0
      %1332 = vmatprep.mubr.f32.mxu0 0.0
      %1333 = vmatmul.mubr.f32.gmra.mxu0 %v1159
      %v1334 = vpop.f32.mrf.mxu0
      %v1335 = vadd.f32 %v1134, %v1334
      %v1336 = vpop.f32.mrf.mxu0
      %1337 = vmatprep.mubr.f32.mxu0 0.0
      %1338 = vmatmul.mubr.f32.gmra.mxu0 %v1162
      %v1339 = vpop.f32.mrf.mxu0
      %v1340 = vadd.f32 %v1134, %v1339
      %v1341 = vpop.f32.mrf.mxu0
      %1342 = vmatprep.mubr.f32.mxu0 0.0
      %1343 = vmatmul.mubr.f32.gmra.mxu0 %v1165
      %v1344 = vpop.f32.mrf.mxu0
      %v1345 = vadd.f32 %v1134, %v1344
      %v1346 = vpop.f32.mrf.mxu0
      %1347 = vmatprep.mubr.f32.mxu0 0.0
      %1348 = vmatmul.mubr.f32.gmra.mxu0 %v1168
      %v1349 = vpop.f32.mrf.mxu0
      %v1350 = vadd.f32 %v1134, %v1349
      %v1351 = vpop.f32.mrf.mxu0
      %1352 = vmatprep.mubr.f32.mxu0 0.0
      %1353 = vmatmul.mubr.f32.gmra.mxu0 %v1171
      %v1354 = vpop.f32.mrf.mxu0
      %v1355 = vadd.f32 %v1134, %v1354
      %v1356 = vpop.f32.mrf.mxu0
      %1357 = vmatprep.mubr.f32.mxu0 0.0
      %1358 = vmatmul.mubr.f32.gmra.mxu0 %v1174
      %v1359 = vpop.f32.mrf.mxu0
      %v1360 = vadd.f32 %v1134, %v1359
      %v1361 = vpop.f32.mrf.mxu0
      %1362 = vmatprep.mubr.f32.mxu0 0.0
      %1363 = vmatmul.mubr.f32.gmra.mxu0 %v1177
      %v1364 = vpop.f32.mrf.mxu0
      %v1365 = vadd.f32 %v1134, %v1364
      %v1366 = vpop.f32.mrf.mxu0
      %1367 = vmatprep.mubr.f32.mxu0 0.0
      %1368 = vmatmul.mubr.f32.gmra.mxu0 %v1180
      %v1369 = vpop.f32.mrf.mxu0
      %v1370 = vadd.f32 %v1134, %v1369
      %v1371 = vpop.f32.mrf.mxu0
      %1372 = vmatprep.mubr.f32.mxu0 0.0
      %1373 = vmatmul.mubr.f32.gmra.mxu0 %v1183
      %v1374 = vpop.f32.mrf.mxu0
      %v1375 = vadd.f32 %v1134, %v1374
      %v1376 = vpop.f32.mrf.mxu0
      %1377 = vmatprep.mubr.f32.mxu0 0.0
      %1378 = vmatmul.mubr.f32.gmra.mxu0 %v1186
      %v1379 = vpop.f32.mrf.mxu0
      %v1380 = vadd.f32 %v1134, %v1379
      %v1381 = vpop.f32.mrf.mxu0
      %1382 = vmatprep.mubr.f32.mxu0 0.0
      %1383 = vmatmul.mubr.f32.gmra.mxu0 %v1189
      %v1384 = vpop.f32.mrf.mxu0
      %v1385 = vadd.f32 %v1134, %v1384
      %v1386 = vpop.f32.mrf.mxu0
      %1387 = vmatprep.mubr.f32.mxu0 0.0
      %1388 = vmatmul.mubr.f32.gmra.mxu0 %v1192
      %v1389 = vpop.f32.mrf.mxu0
      %v1390 = vadd.f32 %v1134, %v1389
      %v1391 = vpop.f32.mrf.mxu0
      %1392 = vmatprep.mubr.f32.mxu0 0.0
      %1393 = vmatmul.mubr.f32.gmra.mxu0 %v1195
      %v1394 = vpop.f32.mrf.mxu0
      %v1395 = vadd.f32 %v1134, %v1394
      %v1396 = vpop.f32.mrf.mxu0
      %1397 = vmatprep.mubr.f32.mxu0 0.0
      %1398 = vmatmul.mubr.f32.gmra.mxu0 %v1198
      %v1399 = vpop.f32.mrf.mxu0
      %v1400 = vadd.f32 %v1134, %v1399
      %v1401 = vpop.f32.mrf.mxu0
      %1402 = vmatprep.mubr.f32.mxu0 0.0
      %1403 = vmatmul.mubr.f32.gmra.mxu0 %v1201
      %v1404 = vpop.f32.mrf.mxu0
      %v1405 = vadd.f32 %v1134, %v1404
      %v1406 = vpop.f32.mrf.mxu0
      %1407 = vmatprep.mubr.f32.mxu0 0.0
      %1408 = vmatmul.mubr.f32.gmra.mxu0 %v1204
      %v1409 = vpop.f32.mrf.mxu0
      %v1410 = vadd.f32 %v1134, %v1409
      %v1411 = vpop.f32.mrf.mxu0
      %1412 = vmatprep.mubr.f32.mxu0 0.0
      %1413 = vmatmul.mubr.f32.gmra.mxu0 %v1207
      %v1414 = vpop.f32.mrf.mxu0
      %v1415 = vadd.f32 %v1134, %v1414
      %v1416 = vpop.f32.mrf.mxu0
      %1417 = vmatprep.mubr.f32.mxu0 0.0
      %1418 = vmatmul.mubr.f32.gmra.mxu0 %v1210
      %v1419 = vpop.f32.mrf.mxu0
      %v1420 = vadd.f32 %v1134, %v1419
      %v1421 = vpop.f32.mrf.mxu0
      %1422 = vmatprep.mubr.f32.mxu0 0.0
      %1423 = vmatmul.mubr.f32.gmra.mxu0 %v1213
      %v1424 = vpop.f32.mrf.mxu0
      %v1425 = vadd.f32 %v1134, %v1424
      %v1426 = vpop.f32.mrf.mxu0
      %1427 = vmatprep.mubr.f32.mxu0 0.0
      %1428 = vmatmul.mubr.f32.gmra.mxu0 %v1216
      %v1429 = vpop.f32.mrf.mxu0
      %v1430 = vadd.f32 %v1134, %v1429
      %v1431 = vpop.f32.mrf.mxu0
      %1432 = vmatprep.mubr.f32.mxu0 0.0
      %1433 = vmatmul.mubr.f32.gmra.mxu0 %v1219
      %v1434 = vpop.f32.mrf.mxu0
      %v1435 = vadd.f32 %v1134, %v1434
      %v1436 = vpop.f32.mrf.mxu0
      %1437 = vmatprep.mubr.f32.mxu0 0.0
      %1438 = vmatmul.mubr.f32.gmra.mxu0 %v1222
      %v1439 = vpop.f32.mrf.mxu0
      %v1440 = vadd.f32 %v1134, %v1439
      %v1441 = vpop.f32.mrf.mxu0
      %1442 = vmatprep.mubr.f32.mxu0 0.0
      %1443 = vmatmul.mubr.f32.gmra.mxu0 %v1225
      %v1444 = vpop.f32.mrf.mxu0
      %v1445 = vadd.f32 %v1134, %v1444
      %v1446 = vpop.f32.mrf.mxu0
      %1447 = vmatprep.mubr.f32.mxu0 0.0
      %1448 = vmatmul.mubr.f32.gmra.mxu0 %v1228
      %v1449 = vpop.f32.mrf.mxu0
      %v1450 = vadd.f32 %v1134, %v1449
      %v1451 = vpop.f32.mrf.mxu0
      %1452 = vmatprep.mubr.f32.mxu0 0.0
      %1453 = vmatmul.mubr.f32.gmra.mxu0 %v1231
      %v1454 = vpop.f32.mrf.mxu0
      %v1455 = vadd.f32 %v1134, %v1454
      %v1456 = vpop.f32.mrf.mxu0
      %1457 = vdwg.mxu0
      %1458 = vst.msk [vmem:[%s391] sm:$0xff] %vm446, %v1300
      %1459 = vst.msk [vmem:[%s391 + $0x8] sm:$0xff] %vm446, %v1305
      %1460 = vst.msk [vmem:[%s391 + $0x20] sm:$0xff] %vm446, %v1310
      %1461 = vst.msk [vmem:[%s391 + $0x28] sm:$0xff] %vm446, %v1315
      %1462 = vst.msk [vmem:[%s391 + $0x40] sm:$0xff] %vm446, %v1320
      %1463 = vst.msk [vmem:[%s391 + $0x48] sm:$0xff] %vm446, %v1325
      %1464 = vst.msk [vmem:[%s391 + $0x60] sm:$0xff] %vm446, %v1330
      %1465 = vst.msk [vmem:[%s391 + $0x68] sm:$0xff] %vm446, %v1335
      %1466 = vst.msk [vmem:[%s391 + $0x80] sm:$0xff] %vm446, %v1340
      %1467 = vst.msk [vmem:[%s391 + $0x88] sm:$0xff] %vm446, %v1345
      %1468 = vst.msk [vmem:[%s391 + $0xa0] sm:$0xff] %vm446, %v1350
      %1469 = vst.msk [vmem:[%s391 + $0xa8] sm:$0xff] %vm446, %v1355
      %1470 = vst.msk [vmem:[%s391 + $0xc0] sm:$0xff] %vm446, %v1360
      %1471 = vst.msk [vmem:[%s391 + $0xc8] sm:$0xff] %vm446, %v1365
      %1472 = vst.msk [vmem:[%s391 + $0xe0] sm:$0xff] %vm446, %v1370
      %1473 = vst.msk [vmem:[%s391 + $0xe8] sm:$0xff] %vm446, %v1375
      %1474 = vst.msk [vmem:[%s391 + $0x100] sm:$0xff] %vm446, %v1380
      %1475 = vst.msk [vmem:[%s391 + $0x108] sm:$0xff] %vm446, %v1385
      %1476 = vst.msk [vmem:[%s391 + $0x120] sm:$0xff] %vm446, %v1390
      %1477 = vst.msk [vmem:[%s391 + $0x128] sm:$0xff] %vm446, %v1395
      %1478 = vst.msk [vmem:[%s391 + $0x140] sm:$0xff] %vm446, %v1400
      %1479 = vst.msk [vmem:[%s391 + $0x148] sm:$0xff] %vm446, %v1405
      %1480 = vst.msk [vmem:[%s391 + $0x160] sm:$0xff] %vm446, %v1410
      %1481 = vst.msk [vmem:[%s391 + $0x168] sm:$0xff] %vm446, %v1415
      %1482 = vst.msk [vmem:[%s391 + $0x180] sm:$0xff] %vm446, %v1420
      %1483 = vst.msk [vmem:[%s391 + $0x188] sm:$0xff] %vm446, %v1425
      %1484 = vst.msk [vmem:[%s391 + $0x1a0] sm:$0xff] %vm446, %v1430
      %1485 = vst.msk [vmem:[%s391 + $0x1a8] sm:$0xff] %vm446, %v1435
      %1486 = vst.msk [vmem:[%s391 + $0x1c0] sm:$0xff] %vm446, %v1440
      %1487 = vst.msk [vmem:[%s391 + $0x1c8] sm:$0xff] %vm446, %v1445
      %1488 = vst.msk [vmem:[%s391 + $0x1e0] sm:$0xff] %vm446, %v1450
      %1489 = vst.msk [vmem:[%s391 + $0x1e8] sm:$0xff] %vm446, %v1455
      %v1490 = vld [vmem:[#allocation2 + $0x1] sm:$0xff]
      %v1491 = vld [vmem:[#allocation2 + $0x9] sm:$0xff]
      %v1492 = vld [vmem:[#allocation2 + $0x19] sm:$0xff]
      %v1493 = vld [vmem:[#allocation2 + $0x21] sm:$0xff]
      %v1494 = vld [vmem:[#allocation2 + $0x31] sm:$0xff]
      %v1495 = vld [vmem:[#allocation2 + $0x39] sm:$0xff]
      %v1496 = vld [vmem:[#allocation2 + $0x49] sm:$0xff]
      %v1497 = vld [vmem:[#allocation2 + $0x51] sm:$0xff]
      %v1498 = vld [vmem:[#allocation2 + $0x61] sm:$0xff]
      %v1499 = vld [vmem:[#allocation2 + $0x69] sm:$0xff]
      %v1500 = vld [vmem:[#allocation2 + $0x79] sm:$0xff]
      %v1501 = vld [vmem:[#allocation2 + $0x81] sm:$0xff]
      %v1502 = vld [vmem:[#allocation2 + $0x91] sm:$0xff]
      %v1503 = vld [vmem:[#allocation2 + $0x99] sm:$0xff]
      %v1504 = vld [vmem:[#allocation2 + $0xa9] sm:$0xff]
      %v1505 = vld [vmem:[#allocation2 + $0xb1] sm:$0xff]
      %v1506 = vld [vmem:[#allocation2 + $0xc1] sm:$0xff]
      %v1507 = vld [vmem:[#allocation2 + $0xc9] sm:$0xff]
      %v1508 = vld [vmem:[#allocation2 + $0xd9] sm:$0xff]
      %v1509 = vld [vmem:[#allocation2 + $0xe1] sm:$0xff]
      %v1510 = vld [vmem:[#allocation2 + $0xf1] sm:$0xff]
      %v1511 = vld [vmem:[#allocation2 + $0xf9] sm:$0xff]
      %v1512 = vld [vmem:[#allocation2 + $0x109] sm:$0xff]
      %v1513 = vld [vmem:[#allocation2 + $0x111] sm:$0xff]
      %v1514 = vld [vmem:[#allocation2 + $0x121] sm:$0xff]
      %v1515 = vld [vmem:[#allocation2 + $0x129] sm:$0xff]
      %v1516 = vld [vmem:[#allocation2 + $0x139] sm:$0xff]
      %v1517 = vld [vmem:[#allocation2 + $0x141] sm:$0xff]
      %v1518 = vld [vmem:[#allocation2 + $0x151] sm:$0xff]
      %v1519 = vld [vmem:[#allocation2 + $0x159] sm:$0xff]
      %v1520 = vld [vmem:[#allocation2 + $0x169] sm:$0xff]
      %v1521 = vld [vmem:[#allocation2 + $0x171] sm:$0xff]
      %v1522 = vld [vmem:[#allocation2 + $0x2] sm:$0xff]
      %v1523 = vld [vmem:[#allocation2 + $0xa] sm:$0xff]
      %v1524 = vld [vmem:[#allocation2 + $0x1a] sm:$0xff]
      %v1525 = vld [vmem:[#allocation2 + $0x22] sm:$0xff]
      %v1526 = vld [vmem:[#allocation2 + $0x32] sm:$0xff]
      %v1527 = vld [vmem:[#allocation2 + $0x3a] sm:$0xff]
      %v1528 = vld [vmem:[#allocation2 + $0x4a] sm:$0xff]
      %v1529 = vld [vmem:[#allocation2 + $0x52] sm:$0xff]
      %v1530 = vld [vmem:[#allocation2 + $0x62] sm:$0xff]
      %v1531 = vld [vmem:[#allocation2 + $0x6a] sm:$0xff]
      %v1532 = vld [vmem:[#allocation2 + $0x7a] sm:$0xff]
      %v1533 = vld [vmem:[#allocation2 + $0x82] sm:$0xff]
      %v1534 = vld [vmem:[#allocation2 + $0x92] sm:$0xff]
      %v1535 = vld [vmem:[#allocation2 + $0x9a] sm:$0xff]
      %v1536 = vld [vmem:[#allocation2 + $0xaa] sm:$0xff]
      %v1537 = vld [vmem:[#allocation2 + $0xb2] sm:$0xff]
      %v1538 = vld [vmem:[#allocation2 + $0xc2] sm:$0xff]
      %v1539 = vld [vmem:[#allocation2 + $0xca] sm:$0xff]
      %v1540 = vld [vmem:[#allocation2 + $0xda] sm:$0xff]
      %v1541 = vld [vmem:[#allocation2 + $0xe2] sm:$0xff]
      %v1542 = vld [vmem:[#allocation2 + $0xf2] sm:$0xff]
      %v1543 = vld [vmem:[#allocation2 + $0xfa] sm:$0xff]
      %v1544 = vld [vmem:[#allocation2 + $0x10a] sm:$0xff]
      %v1545 = vld [vmem:[#allocation2 + $0x112] sm:$0xff]
      %v1546 = vld [vmem:[#allocation2 + $0x122] sm:$0xff]
      %v1547 = vld [vmem:[#allocation2 + $0x12a] sm:$0xff]
      %v1548 = vld [vmem:[#allocation2 + $0x13a] sm:$0xff]
      %v1549 = vld [vmem:[#allocation2 + $0x142] sm:$0xff]
      %v1550 = vld [vmem:[#allocation2 + $0x152] sm:$0xff]
      %v1551 = vld [vmem:[#allocation2 + $0x15a] sm:$0xff]
      %v1552 = vld [vmem:[#allocation2 + $0x16a] sm:$0xff]
      %v1553 = vld [vmem:[#allocation2 + $0x172] sm:$0xff]
      %v1554 = vld [vmem:[%s484 + $0x1] sm:$0xff]
      %v1555 = vld [vmem:[%s484 + $0x9] sm:$0xff]
      %v1556 = vld [vmem:[%s484 + $0x19] sm:$0xff]
      %v1557 = vld [vmem:[%s484 + $0x21] sm:$0xff]
      %v1558 = vld [vmem:[%s484 + $0x31] sm:$0xff]
      %v1559 = vld [vmem:[%s484 + $0x39] sm:$0xff]
      %v1560 = vld [vmem:[%s484 + $0x49] sm:$0xff]
      %v1561 = vld [vmem:[%s484 + $0x51] sm:$0xff]
      %v1562 = vld [vmem:[%s484 + $0x61] sm:$0xff]
      %v1563 = vld [vmem:[%s484 + $0x69] sm:$0xff]
      %v1564 = vld [vmem:[%s484 + $0x79] sm:$0xff]
      %v1565 = vld [vmem:[%s484 + $0x81] sm:$0xff]
      %v1566 = vld [vmem:[%s484 + $0x91] sm:$0xff]
      %v1567 = vld [vmem:[%s484 + $0x99] sm:$0xff]
      %v1568 = vld [vmem:[%s484 + $0xa9] sm:$0xff]
      %v1569 = vld [vmem:[%s484 + $0xb1] sm:$0xff]
      %v1570 = vld [vmem:[%s484 + $0xc1] sm:$0xff]
      %v1571 = vld [vmem:[%s484 + $0xc9] sm:$0xff]
      %v1572 = vld [vmem:[%s484 + $0xd9] sm:$0xff]
      %v1573 = vld [vmem:[%s484 + $0xe1] sm:$0xff]
      %v1574 = vld [vmem:[%s484 + $0xf1] sm:$0xff]
      %v1575 = vld [vmem:[%s484 + $0xf9] sm:$0xff]
      %v1576 = vld [vmem:[%s484 + $0x109] sm:$0xff]
      %v1577 = vld [vmem:[%s484 + $0x111] sm:$0xff]
      %v1578 = vld [vmem:[%s484 + $0x121] sm:$0xff]
      %v1579 = vld [vmem:[%s484 + $0x129] sm:$0xff]
      %v1580 = vld [vmem:[%s484 + $0x139] sm:$0xff]
      %v1581 = vld [vmem:[%s484 + $0x141] sm:$0xff]
      %v1582 = vld [vmem:[%s484 + $0x151] sm:$0xff]
      %v1583 = vld [vmem:[%s484 + $0x159] sm:$0xff]
      %v1584 = vld [vmem:[%s484 + $0x169] sm:$0xff]
      %v1585 = vld [vmem:[%s484 + $0x171] sm:$0xff]
      %v1586 = vld [vmem:[%s484 + $0x2] sm:$0xff]
      %v1587 = vld [vmem:[%s484 + $0xa] sm:$0xff]
      %v1588 = vld [vmem:[%s484 + $0x1a] sm:$0xff]
      %v1589 = vld [vmem:[%s484 + $0x22] sm:$0xff]
      %v1590 = vld [vmem:[%s484 + $0x32] sm:$0xff]
      %v1591 = vld [vmem:[%s484 + $0x3a] sm:$0xff]
      %v1592 = vld [vmem:[%s484 + $0x4a] sm:$0xff]
      %v1593 = vld [vmem:[%s484 + $0x52] sm:$0xff]
      %v1594 = vld [vmem:[%s484 + $0x62] sm:$0xff]
      %v1595 = vld [vmem:[%s484 + $0x6a] sm:$0xff]
      %v1596 = vld [vmem:[%s484 + $0x7a] sm:$0xff]
      %v1597 = vld [vmem:[%s484 + $0x82] sm:$0xff]
      %v1598 = vld [vmem:[%s484 + $0x92] sm:$0xff]
      %v1599 = vld [vmem:[%s484 + $0x9a] sm:$0xff]
      %v1600 = vld [vmem:[%s484 + $0xaa] sm:$0xff]
      %v1601 = vld [vmem:[%s484 + $0xb2] sm:$0xff]
      %v1602 = vld [vmem:[%s484 + $0xc2] sm:$0xff]
      %v1603 = vld [vmem:[%s484 + $0xca] sm:$0xff]
      %v1604 = vld [vmem:[%s484 + $0xda] sm:$0xff]
      %v1605 = vld [vmem:[%s484 + $0xe2] sm:$0xff]
      %v1606 = vld [vmem:[%s484 + $0xf2] sm:$0xff]
      %v1607 = vld [vmem:[%s484 + $0xfa] sm:$0xff]
      %v1608 = vld [vmem:[%s484 + $0x10a] sm:$0xff]
      %v1609 = vld [vmem:[%s484 + $0x112] sm:$0xff]
      %v1610 = vld [vmem:[%s484 + $0x122] sm:$0xff]
      %v1611 = vld [vmem:[%s484 + $0x12a] sm:$0xff]
      %v1612 = vld [vmem:[%s484 + $0x13a] sm:$0xff]
      %v1613 = vld [vmem:[%s484 + $0x142] sm:$0xff]
      %v1614 = vld [vmem:[%s484 + $0x152] sm:$0xff]
      %v1615 = vld [vmem:[%s484 + $0x15a] sm:$0xff]
      %v1616 = vld [vmem:[%s484 + $0x16a] sm:$0xff]
      %v1617 = vld [vmem:[%s484 + $0x172] sm:$0xff]
      %1650 = vrot.lane.b32.xlu0 %v1522, 4
      %v1651 = vpop.permute.xlu0 %1650
      %1652 = vrot.lane.b32.xlu0 %v1523, 4
      %v1653 = vpop.permute.xlu0 %1652
      %1654 = vrot.lane.b32.xlu0 %v1524, 4
      %v1655 = vpop.permute.xlu0 %1654
      %1656 = vrot.lane.b32.xlu0 %v1525, 4
      %v1657 = vpop.permute.xlu0 %1656
      %1658 = vrot.lane.b32.xlu0 %v1526, 4
      %v1659 = vpop.permute.xlu0 %1658
      %1660 = vrot.lane.b32.xlu0 %v1527, 4
      %v1661 = vpop.permute.xlu0 %1660
      %1662 = vrot.lane.b32.xlu0 %v1528, 4
      %v1663 = vpop.permute.xlu0 %1662
      %1664 = vrot.lane.b32.xlu0 %v1529, 4
      %v1665 = vpop.permute.xlu0 %1664
      %1666 = vrot.lane.b32.xlu0 %v1530, 4
      %v1667 = vpop.permute.xlu0 %1666
      %1668 = vrot.lane.b32.xlu0 %v1531, 4
      %v1669 = vpop.permute.xlu0 %1668
      %1670 = vrot.lane.b32.xlu0 %v1532, 4
      %v1671 = vpop.permute.xlu0 %1670
      %1672 = vrot.lane.b32.xlu0 %v1533, 4
      %v1673 = vpop.permute.xlu0 %1672
      %1674 = vrot.lane.b32.xlu0 %v1534, 4
      %v1675 = vpop.permute.xlu0 %1674
      %1676 = vrot.lane.b32.xlu0 %v1535, 4
      %v1677 = vpop.permute.xlu0 %1676
      %1678 = vrot.lane.b32.xlu0 %v1536, 4
      %v1679 = vpop.permute.xlu0 %1678
      %1680 = vrot.lane.b32.xlu0 %v1537, 4
      %v1681 = vpop.permute.xlu0 %1680
      %1682 = vrot.lane.b32.xlu0 %v1538, 4
      %v1683 = vpop.permute.xlu0 %1682
      %1684 = vrot.lane.b32.xlu0 %v1539, 4
      %v1685 = vpop.permute.xlu0 %1684
      %1686 = vrot.lane.b32.xlu0 %v1540, 4
      %v1687 = vpop.permute.xlu0 %1686
      %1688 = vrot.lane.b32.xlu0 %v1541, 4
      %v1689 = vpop.permute.xlu0 %1688
      %1690 = vrot.lane.b32.xlu0 %v1542, 4
      %v1691 = vpop.permute.xlu0 %1690
      %1692 = vrot.lane.b32.xlu0 %v1543, 4
      %v1693 = vpop.permute.xlu0 %1692
      %1694 = vrot.lane.b32.xlu0 %v1544, 4
      %v1695 = vpop.permute.xlu0 %1694
      %1696 = vrot.lane.b32.xlu0 %v1545, 4
      %v1697 = vpop.permute.xlu0 %1696
      %1698 = vrot.lane.b32.xlu0 %v1546, 4
      %v1699 = vpop.permute.xlu0 %1698
      %1700 = vrot.lane.b32.xlu0 %v1547, 4
      %v1701 = vpop.permute.xlu0 %1700
      %1702 = vrot.lane.b32.xlu0 %v1548, 4
      %v1703 = vpop.permute.xlu0 %1702
      %1704 = vrot.lane.b32.xlu0 %v1549, 4
      %v1705 = vpop.permute.xlu0 %1704
      %1706 = vrot.lane.b32.xlu0 %v1550, 4
      %v1707 = vpop.permute.xlu0 %1706
      %1708 = vrot.lane.b32.xlu0 %v1551, 4
      %v1709 = vpop.permute.xlu0 %1708
      %1710 = vrot.lane.b32.xlu0 %v1552, 4
      %v1711 = vpop.permute.xlu0 %1710
      %1712 = vrot.lane.b32.xlu0 %v1553, 4
      %v1713 = vpop.permute.xlu0 %1712
      %1778 = vrot.lane.b32.xlu0 %v1554, 8
      %v1779 = vpop.permute.xlu0 %1778
      %1780 = vrot.lane.b32.xlu0 %v1555, 8
      %v1781 = vpop.permute.xlu0 %1780
      %1782 = vrot.lane.b32.xlu0 %v1556, 8
      %v1783 = vpop.permute.xlu0 %1782
      %1784 = vrot.lane.b32.xlu0 %v1557, 8
      %v1785 = vpop.permute.xlu0 %1784
      %1786 = vrot.lane.b32.xlu0 %v1558, 8
      %v1787 = vpop.permute.xlu0 %1786
      %1788 = vrot.lane.b32.xlu0 %v1559, 8
      %v1789 = vpop.permute.xlu0 %1788
      %1790 = vrot.lane.b32.xlu0 %v1560, 8
      %v1791 = vpop.permute.xlu0 %1790
      %1792 = vrot.lane.b32.xlu0 %v1561, 8
      %v1793 = vpop.permute.xlu0 %1792
      %1794 = vrot.lane.b32.xlu0 %v1562, 8
      %v1795 = vpop.permute.xlu0 %1794
      %1796 = vrot.lane.b32.xlu0 %v1563, 8
      %v1797 = vpop.permute.xlu0 %1796
      %1798 = vrot.lane.b32.xlu0 %v1564, 8
      %v1799 = vpop.permute.xlu0 %1798
      %1800 = vrot.lane.b32.xlu0 %v1565, 8
      %v1801 = vpop.permute.xlu0 %1800
      %1802 = vrot.lane.b32.xlu0 %v1566, 8
      %v1803 = vpop.permute.xlu0 %1802
      %1804 = vrot.lane.b32.xlu0 %v1567, 8
      %v1805 = vpop.permute.xlu0 %1804
      %1806 = vrot.lane.b32.xlu0 %v1568, 8
      %v1807 = vpop.permute.xlu0 %1806
      %1808 = vrot.lane.b32.xlu0 %v1569, 8
      %v1809 = vpop.permute.xlu0 %1808
      %1810 = vrot.lane.b32.xlu0 %v1570, 8
      %v1811 = vpop.permute.xlu0 %1810
      %1812 = vrot.lane.b32.xlu0 %v1571, 8
      %v1813 = vpop.permute.xlu0 %1812
      %1814 = vrot.lane.b32.xlu0 %v1572, 8
      %v1815 = vpop.permute.xlu0 %1814
      %1816 = vrot.lane.b32.xlu0 %v1573, 8
      %v1817 = vpop.permute.xlu0 %1816
      %1818 = vrot.lane.b32.xlu0 %v1574, 8
      %v1819 = vpop.permute.xlu0 %1818
      %1820 = vrot.lane.b32.xlu0 %v1575, 8
      %v1821 = vpop.permute.xlu0 %1820
      %1822 = vrot.lane.b32.xlu0 %v1576, 8
      %v1823 = vpop.permute.xlu0 %1822
      %1824 = vrot.lane.b32.xlu0 %v1577, 8
      %v1825 = vpop.permute.xlu0 %1824
      %1826 = vrot.lane.b32.xlu0 %v1578, 8
      %v1827 = vpop.permute.xlu0 %1826
      %1828 = vrot.lane.b32.xlu0 %v1579, 8
      %v1829 = vpop.permute.xlu0 %1828
      %1830 = vrot.lane.b32.xlu0 %v1580, 8
      %v1831 = vpop.permute.xlu0 %1830
      %1832 = vrot.lane.b32.xlu0 %v1581, 8
      %v1833 = vpop.permute.xlu0 %1832
      %1834 = vrot.lane.b32.xlu0 %v1582, 8
      %v1835 = vpop.permute.xlu0 %1834
      %1836 = vrot.lane.b32.xlu0 %v1583, 8
      %v1837 = vpop.permute.xlu0 %1836
      %1838 = vrot.lane.b32.xlu0 %v1584, 8
      %v1839 = vpop.permute.xlu0 %1838
      %1840 = vrot.lane.b32.xlu0 %v1585, 8
      %v1841 = vpop.permute.xlu0 %1840
      %1906 = vrot.lane.b32.xlu0 %v1586, 12
      %v1907 = vpop.permute.xlu0 %1906
      %1908 = vrot.lane.b32.xlu0 %v1587, 12
      %v1909 = vpop.permute.xlu0 %1908
      %1910 = vrot.lane.b32.xlu0 %v1588, 12
      %v1911 = vpop.permute.xlu0 %1910
      %1912 = vrot.lane.b32.xlu0 %v1589, 12
      %v1913 = vpop.permute.xlu0 %1912
      %1914 = vrot.lane.b32.xlu0 %v1590, 12
      %v1915 = vpop.permute.xlu0 %1914
      %1916 = vrot.lane.b32.xlu0 %v1591, 12
      %v1917 = vpop.permute.xlu0 %1916
      %1918 = vrot.lane.b32.xlu0 %v1592, 12
      %v1919 = vpop.permute.xlu0 %1918
      %1920 = vrot.lane.b32.xlu0 %v1593, 12
      %v1921 = vpop.permute.xlu0 %1920
      %1922 = vrot.lane.b32.xlu0 %v1594, 12
      %v1923 = vpop.permute.xlu0 %1922
      %1924 = vrot.lane.b32.xlu0 %v1595, 12
      %v1925 = vpop.permute.xlu0 %1924
      %1926 = vrot.lane.b32.xlu0 %v1596, 12
      %v1927 = vpop.permute.xlu0 %1926
      %1928 = vrot.lane.b32.xlu0 %v1597, 12
      %v1929 = vpop.permute.xlu0 %1928
      %1930 = vrot.lane.b32.xlu0 %v1598, 12
      %v1931 = vpop.permute.xlu0 %1930
      %1932 = vrot.lane.b32.xlu0 %v1599, 12
      %v1933 = vpop.permute.xlu0 %1932
      %1934 = vrot.lane.b32.xlu0 %v1600, 12
      %v1935 = vpop.permute.xlu0 %1934
      %1936 = vrot.lane.b32.xlu0 %v1601, 12
      %v1937 = vpop.permute.xlu0 %1936
      %1938 = vrot.lane.b32.xlu0 %v1602, 12
      %v1939 = vpop.permute.xlu0 %1938
      %1940 = vrot.lane.b32.xlu0 %v1603, 12
      %v1941 = vpop.permute.xlu0 %1940
      %1942 = vrot.lane.b32.xlu0 %v1604, 12
      %v1943 = vpop.permute.xlu0 %1942
      %1944 = vrot.lane.b32.xlu0 %v1605, 12
      %v1945 = vpop.permute.xlu0 %1944
      %1946 = vrot.lane.b32.xlu0 %v1606, 12
      %v1947 = vpop.permute.xlu0 %1946
      %1948 = vrot.lane.b32.xlu0 %v1607, 12
      %v1949 = vpop.permute.xlu0 %1948
      %1950 = vrot.lane.b32.xlu0 %v1608, 12
      %v1951 = vpop.permute.xlu0 %1950
      %1952 = vrot.lane.b32.xlu0 %v1609, 12
      %v1953 = vpop.permute.xlu0 %1952
      %1954 = vrot.lane.b32.xlu0 %v1610, 12
      %v1955 = vpop.permute.xlu0 %1954
      %1956 = vrot.lane.b32.xlu0 %v1611, 12
      %v1957 = vpop.permute.xlu0 %1956
      %1958 = vrot.lane.b32.xlu0 %v1612, 12
      %v1959 = vpop.permute.xlu0 %1958
      %1960 = vrot.lane.b32.xlu0 %v1613, 12
      %v1961 = vpop.permute.xlu0 %1960
      %1962 = vrot.lane.b32.xlu0 %v1614, 12
      %v1963 = vpop.permute.xlu0 %1962
      %1964 = vrot.lane.b32.xlu0 %v1615, 12
      %v1965 = vpop.permute.xlu0 %1964
      %1966 = vrot.lane.b32.xlu0 %v1616, 12
      %v1967 = vpop.permute.xlu0 %1966
      %1968 = vrot.lane.b32.xlu0 %v1617, 12
      %v1969 = vpop.permute.xlu0 %1968
      %v2002 = vsel %vm446, %v1490, %v1651
      %v2003 = vsel %vm446, %v1491, %v1653
      %v2004 = vsel %vm446, %v1492, %v1655
      %v2005 = vsel %vm446, %v1493, %v1657
      %v2006 = vsel %vm446, %v1494, %v1659
      %v2007 = vsel %vm446, %v1495, %v1661
      %v2008 = vsel %vm446, %v1496, %v1663
      %v2009 = vsel %vm446, %v1497, %v1665
      %v2010 = vsel %vm446, %v1498, %v1667
      %v2011 = vsel %vm446, %v1499, %v1669
      %v2012 = vsel %vm446, %v1500, %v1671
      %v2013 = vsel %vm446, %v1501, %v1673
      %v2014 = vsel %vm446, %v1502, %v1675
      %v2015 = vsel %vm446, %v1503, %v1677
      %v2016 = vsel %vm446, %v1504, %v1679
      %v2017 = vsel %vm446, %v1505, %v1681
      %v2018 = vsel %vm446, %v1506, %v1683
      %v2019 = vsel %vm446, %v1507, %v1685
      %v2020 = vsel %vm446, %v1508, %v1687
      %v2021 = vsel %vm446, %v1509, %v1689
      %v2022 = vsel %vm446, %v1510, %v1691
      %v2023 = vsel %vm446, %v1511, %v1693
      %v2024 = vsel %vm446, %v1512, %v1695
      %v2025 = vsel %vm446, %v1513, %v1697
      %v2026 = vsel %vm446, %v1514, %v1699
      %v2027 = vsel %vm446, %v1515, %v1701
      %v2028 = vsel %vm446, %v1516, %v1703
      %v2029 = vsel %vm446, %v1517, %v1705
      %v2030 = vsel %vm446, %v1518, %v1707
      %v2031 = vsel %vm446, %v1519, %v1709
      %v2032 = vsel %vm446, %v1520, %v1711
      %v2033 = vsel %vm446, %v1521, %v1713
      %v2034 = vsel %vm1062, %v2002, %v1779
      %v2035 = vsel %vm1062, %v2003, %v1781
      %v2036 = vsel %vm1062, %v2004, %v1783
      %v2037 = vsel %vm1062, %v2005, %v1785
      %v2038 = vsel %vm1062, %v2006, %v1787
      %v2039 = vsel %vm1062, %v2007, %v1789
      %v2040 = vsel %vm1062, %v2008, %v1791
      %v2041 = vsel %vm1062, %v2009, %v1793
      %v2042 = vsel %vm1062, %v2010, %v1795
      %v2043 = vsel %vm1062, %v2011, %v1797
      %v2044 = vsel %vm1062, %v2012, %v1799
      %v2045 = vsel %vm1062, %v2013, %v1801
      %v2046 = vsel %vm1062, %v2014, %v1803
      %v2047 = vsel %vm1062, %v2015, %v1805
      %v2048 = vsel %vm1062, %v2016, %v1807
      %v2049 = vsel %vm1062, %v2017, %v1809
      %v2050 = vsel %vm1062, %v2018, %v1811
      %v2051 = vsel %vm1062, %v2019, %v1813
      %v2052 = vsel %vm1062, %v2020, %v1815
      %v2053 = vsel %vm1062, %v2021, %v1817
      %v2054 = vsel %vm1062, %v2022, %v1819
      %v2055 = vsel %vm1062, %v2023, %v1821
      %v2056 = vsel %vm1062, %v2024, %v1823
      %v2057 = vsel %vm1062, %v2025, %v1825
      %v2058 = vsel %vm1062, %v2026, %v1827
      %v2059 = vsel %vm1062, %v2027, %v1829
      %v2060 = vsel %vm1062, %v2028, %v1831
      %v2061 = vsel %vm1062, %v2029, %v1833
      %v2062 = vsel %vm1062, %v2030, %v1835
      %v2063 = vsel %vm1062, %v2031, %v1837
      %v2064 = vsel %vm1062, %v2032, %v1839
      %v2065 = vsel %vm1062, %v2033, %v1841
      %v2066 = vsel %vm1095, %v2034, %v1907
      %v2067 = vsel %vm1095, %v2035, %v1909
      %v2068 = vsel %vm1095, %v2036, %v1911
      %v2069 = vsel %vm1095, %v2037, %v1913
      %v2070 = vsel %vm1095, %v2038, %v1915
      %v2071 = vsel %vm1095, %v2039, %v1917
      %v2072 = vsel %vm1095, %v2040, %v1919
      %v2073 = vsel %vm1095, %v2041, %v1921
      %v2074 = vsel %vm1095, %v2042, %v1923
      %v2075 = vsel %vm1095, %v2043, %v1925
      %v2076 = vsel %vm1095, %v2044, %v1927
      %v2077 = vsel %vm1095, %v2045, %v1929
      %v2078 = vsel %vm1095, %v2046, %v1931
      %v2079 = vsel %vm1095, %v2047, %v1933
      %v2080 = vsel %vm1095, %v2048, %v1935
      %v2081 = vsel %vm1095, %v2049, %v1937
      %v2082 = vsel %vm1095, %v2050, %v1939
      %v2083 = vsel %vm1095, %v2051, %v1941
      %v2084 = vsel %vm1095, %v2052, %v1943
      %v2085 = vsel %vm1095, %v2053, %v1945
      %v2086 = vsel %vm1095, %v2054, %v1947
      %v2087 = vsel %vm1095, %v2055, %v1949
      %v2088 = vsel %vm1095, %v2056, %v1951
      %v2089 = vsel %vm1095, %v2057, %v1953
      %v2090 = vsel %vm1095, %v2058, %v1955
      %v2091 = vsel %vm1095, %v2059, %v1957
      %v2092 = vsel %vm1095, %v2060, %v1959
      %v2093 = vsel %vm1095, %v2061, %v1961
      %v2094 = vsel %vm1095, %v2062, %v1963
      %v2095 = vsel %vm1095, %v2063, %v1965
      %v2096 = vsel %vm1095, %v2064, %v1967
      %v2097 = vsel %vm1095, %v2065, %v1969
      %s2098 = scalar_lea.vmem %s3, 16
      %v2099 = vld [vmem:[%s2098] sm:$0xff]
      %v2100 = vld [vmem:[%s2098 + $0x8] sm:$0xff]
      %v2102 = vsel %vm1136, %v2066, 0
      %v2105 = vsel %vm1136, %v2067, 0
      %v2108 = vsel %vm1136, %v2068, 0
      %v2111 = vsel %vm1136, %v2069, 0
      %v2114 = vsel %vm1136, %v2070, 0
      %v2117 = vsel %vm1136, %v2071, 0
      %v2120 = vsel %vm1136, %v2072, 0
      %v2123 = vsel %vm1136, %v2073, 0
      %v2126 = vsel %vm1136, %v2074, 0
      %v2129 = vsel %vm1136, %v2075, 0
      %v2132 = vsel %vm1136, %v2076, 0
      %v2135 = vsel %vm1136, %v2077, 0
      %v2138 = vsel %vm1136, %v2078, 0
      %v2141 = vsel %vm1136, %v2079, 0
      %v2144 = vsel %vm1136, %v2080, 0
      %v2147 = vsel %vm1136, %v2081, 0
      %v2150 = vsel %vm1136, %v2082, 0
      %v2153 = vsel %vm1136, %v2083, 0
      %v2156 = vsel %vm1136, %v2084, 0
      %v2159 = vsel %vm1136, %v2085, 0
      %v2162 = vsel %vm1136, %v2086, 0
      %v2165 = vsel %vm1136, %v2087, 0
      %v2168 = vsel %vm1136, %v2088, 0
      %v2171 = vsel %vm1136, %v2089, 0
      %v2174 = vsel %vm1136, %v2090, 0
      %v2177 = vsel %vm1136, %v2091, 0
      %v2180 = vsel %vm1136, %v2092, 0
      %v2183 = vsel %vm1136, %v2093, 0
      %v2186 = vsel %vm1136, %v2094, 0
      %v2189 = vsel %vm1136, %v2095, 0
      %v2192 = vsel %vm1136, %v2096, 0
      %v2195 = vsel %vm1136, %v2097, 0
      %2197 = vmatprep.subr.mxu0 0.0
      %2198 = vmatpush1.msra.mxu0 0.0
      %2199 = vmatprep.subr.mxu0 0.0
      %2200 = vmatpush1.msra.mxu0 0.0
      %2201 = vmatprep.subr.mxu0 0.0
      %2202 = vmatpush1.msra.mxu0 0.0
      %2203 = vmatprep.subr.mxu0 0.0
      %2204 = vmatpush1.msra.mxu0 0.0
      %2205 = vmatprep.subr.mxu0 0.0
      %2206 = vmatpush1.msra.mxu0 0.0
      %2207 = vmatprep.subr.mxu0 0.0
      %2208 = vmatpush1.msra.mxu0 0.0
      %2209 = vmatprep.subr.mxu0 0.0
      %2210 = vmatpush1.msra.mxu0 0.0
      %2211 = vmatprep.subr.mxu0 0.0
      %2212 = vmatpush1.msra.mxu0 0.0
      %2213 = vmatprep.subr.mxu0 0.0
      %2214 = vmatpush1.msra.mxu0 0.0
      %2215 = vmatprep.subr.mxu0 0.0
      %2216 = vmatpush1.msra.mxu0 0.0
      %2217 = vmatprep.subr.mxu0 0.0
      %2218 = vmatpush1.msra.mxu0 0.0
      %2219 = vmatprep.subr.mxu0 0.0
      %2220 = vmatpush1.msra.mxu0 0.0
      %2221 = vmatprep.subr.mxu0 0.0
      %2222 = vmatpush1.msra.mxu0 0.0
      %2223 = vmatprep.subr.mxu0 0.0
      %2224 = vmatpush1.msra.mxu0 0.0
      %2225 = vmatprep.subr.mxu0 0.0
      %2226 = vmatpush1.msra.mxu0 %v2100
      %2227 = vmatprep.subr.mxu0 0.0
      %2228 = vmatpush1.msra.mxu0 %v2099
      %2229 = vmatprep.subr.mxu0 0.0
      %2230 = vmatpush2.msra.mxu0 0.0
      %2231 = vmatprep.subr.mxu0 0.0
      %2232 = vmatpush2.msra.mxu0 0.0
      %2233 = vmatprep.subr.mxu0 0.0
      %2234 = vmatpush2.msra.mxu0 0.0
      %2235 = vmatprep.subr.mxu0 0.0
      %2236 = vmatpush2.msra.mxu0 0.0
      %2237 = vmatprep.subr.mxu0 0.0
      %2238 = vmatpush2.msra.mxu0 0.0
      %2239 = vmatprep.subr.mxu0 0.0
      %2240 = vmatpush2.msra.mxu0 0.0
      %2241 = vmatprep.subr.mxu0 0.0
      %2242 = vmatpush2.msra.mxu0 0.0
      %2243 = vmatprep.subr.mxu0 0.0
      %2244 = vmatpush2.msra.mxu0 0.0
      %2245 = vmatprep.subr.mxu0 0.0
      %2246 = vmatpush2.msra.mxu0 0.0
      %2247 = vmatprep.subr.mxu0 0.0
      %2248 = vmatpush2.msra.mxu0 0.0
      %2249 = vmatprep.subr.mxu0 0.0
      %2250 = vmatpush2.msra.mxu0 0.0
      %2251 = vmatprep.subr.mxu0 0.0
      %2252 = vmatpush2.msra.mxu0 0.0
      %2253 = vmatprep.subr.mxu0 0.0
      %2254 = vmatpush2.msra.mxu0 0.0
      %2255 = vmatprep.subr.mxu0 0.0
      %2256 = vmatpush2.msra.mxu0 0.0
      %2257 = vmatprep.subr.mxu0 0.0
      %2258 = vmatpush2.msra.mxu0 0.0
      %2259 = vmatprep.subr.mxu0 0.0
      %2260 = vmatpush2.msra.mxu0 0.0
      %2261 = vmatprep.mubr.f32.mxu0 0.0
      %2262 = vmatmul.mubr.f32.gmra.mxu0 %v2102
      %v2263 = vpop.f32.mrf.mxu0
      %v2264 = vadd.f32 %v1134, %v2263
      %v2265 = vpop.f32.mrf.mxu0
      %2266 = vmatprep.mubr.f32.mxu0 0.0
      %2267 = vmatmul.mubr.f32.gmra.mxu0 %v2105
      %v2268 = vpop.f32.mrf.mxu0
      %v2269 = vadd.f32 %v1134, %v2268
      %v2270 = vpop.f32.mrf.mxu0
      %2271 = vmatprep.mubr.f32.mxu0 0.0
      %2272 = vmatmul.mubr.f32.gmra.mxu0 %v2108
      %v2273 = vpop.f32.mrf.mxu0
      %v2274 = vadd.f32 %v1134, %v2273
      %v2275 = vpop.f32.mrf.mxu0
      %2276 = vmatprep.mubr.f32.mxu0 0.0
      %2277 = vmatmul.mubr.f32.gmra.mxu0 %v2111
      %v2278 = vpop.f32.mrf.mxu0
      %v2279 = vadd.f32 %v1134, %v2278
      %v2280 = vpop.f32.mrf.mxu0
      %2281 = vmatprep.mubr.f32.mxu0 0.0
      %2282 = vmatmul.mubr.f32.gmra.mxu0 %v2114
      %v2283 = vpop.f32.mrf.mxu0
      %v2284 = vadd.f32 %v1134, %v2283
      %v2285 = vpop.f32.mrf.mxu0
      %2286 = vmatprep.mubr.f32.mxu0 0.0
      %2287 = vmatmul.mubr.f32.gmra.mxu0 %v2117
      %v2288 = vpop.f32.mrf.mxu0
      %v2289 = vadd.f32 %v1134, %v2288
      %v2290 = vpop.f32.mrf.mxu0
      %2291 = vmatprep.mubr.f32.mxu0 0.0
      %2292 = vmatmul.mubr.f32.gmra.mxu0 %v2120
      %v2293 = vpop.f32.mrf.mxu0
      %v2294 = vadd.f32 %v1134, %v2293
      %v2295 = vpop.f32.mrf.mxu0
      %2296 = vmatprep.mubr.f32.mxu0 0.0
      %2297 = vmatmul.mubr.f32.gmra.mxu0 %v2123
      %v2298 = vpop.f32.mrf.mxu0
      %v2299 = vadd.f32 %v1134, %v2298
      %v2300 = vpop.f32.mrf.mxu0
      %2301 = vmatprep.mubr.f32.mxu0 0.0
      %2302 = vmatmul.mubr.f32.gmra.mxu0 %v2126
      %v2303 = vpop.f32.mrf.mxu0
      %v2304 = vadd.f32 %v1134, %v2303
      %v2305 = vpop.f32.mrf.mxu0
      %2306 = vmatprep.mubr.f32.mxu0 0.0
      %2307 = vmatmul.mubr.f32.gmra.mxu0 %v2129
      %v2308 = vpop.f32.mrf.mxu0
      %v2309 = vadd.f32 %v1134, %v2308
      %v2310 = vpop.f32.mrf.mxu0
      %2311 = vmatprep.mubr.f32.mxu0 0.0
      %2312 = vmatmul.mubr.f32.gmra.mxu0 %v2132
      %v2313 = vpop.f32.mrf.mxu0
      %v2314 = vadd.f32 %v1134, %v2313
      %v2315 = vpop.f32.mrf.mxu0
      %2316 = vmatprep.mubr.f32.mxu0 0.0
      %2317 = vmatmul.mubr.f32.gmra.mxu0 %v2135
      %v2318 = vpop.f32.mrf.mxu0
      %v2319 = vadd.f32 %v1134, %v2318
      %v2320 = vpop.f32.mrf.mxu0
      %2321 = vmatprep.mubr.f32.mxu0 0.0
      %2322 = vmatmul.mubr.f32.gmra.mxu0 %v2138
      %v2323 = vpop.f32.mrf.mxu0
      %v2324 = vadd.f32 %v1134, %v2323
      %v2325 = vpop.f32.mrf.mxu0
      %2326 = vmatprep.mubr.f32.mxu0 0.0
      %2327 = vmatmul.mubr.f32.gmra.mxu0 %v2141
      %v2328 = vpop.f32.mrf.mxu0
      %v2329 = vadd.f32 %v1134, %v2328
      %v2330 = vpop.f32.mrf.mxu0
      %2331 = vmatprep.mubr.f32.mxu0 0.0
      %2332 = vmatmul.mubr.f32.gmra.mxu0 %v2144
      %v2333 = vpop.f32.mrf.mxu0
      %v2334 = vadd.f32 %v1134, %v2333
      %v2335 = vpop.f32.mrf.mxu0
      %2336 = vmatprep.mubr.f32.mxu0 0.0
      %2337 = vmatmul.mubr.f32.gmra.mxu0 %v2147
      %v2338 = vpop.f32.mrf.mxu0
      %v2339 = vadd.f32 %v1134, %v2338
      %v2340 = vpop.f32.mrf.mxu0
      %2341 = vmatprep.mubr.f32.mxu0 0.0
      %2342 = vmatmul.mubr.f32.gmra.mxu0 %v2150
      %v2343 = vpop.f32.mrf.mxu0
      %v2344 = vadd.f32 %v1134, %v2343
      %v2345 = vpop.f32.mrf.mxu0
      %2346 = vmatprep.mubr.f32.mxu0 0.0
      %2347 = vmatmul.mubr.f32.gmra.mxu0 %v2153
      %v2348 = vpop.f32.mrf.mxu0
      %v2349 = vadd.f32 %v1134, %v2348
      %v2350 = vpop.f32.mrf.mxu0
      %2351 = vmatprep.mubr.f32.mxu0 0.0
      %2352 = vmatmul.mubr.f32.gmra.mxu0 %v2156
      %v2353 = vpop.f32.mrf.mxu0
      %v2354 = vadd.f32 %v1134, %v2353
      %v2355 = vpop.f32.mrf.mxu0
      %2356 = vmatprep.mubr.f32.mxu0 0.0
      %2357 = vmatmul.mubr.f32.gmra.mxu0 %v2159
      %v2358 = vpop.f32.mrf.mxu0
      %v2359 = vadd.f32 %v1134, %v2358
      %v2360 = vpop.f32.mrf.mxu0
      %2361 = vmatprep.mubr.f32.mxu0 0.0
      %2362 = vmatmul.mubr.f32.gmra.mxu0 %v2162
      %v2363 = vpop.f32.mrf.mxu0
      %v2364 = vadd.f32 %v1134, %v2363
      %v2365 = vpop.f32.mrf.mxu0
      %2366 = vmatprep.mubr.f32.mxu0 0.0
      %2367 = vmatmul.mubr.f32.gmra.mxu0 %v2165
      %v2368 = vpop.f32.mrf.mxu0
      %v2369 = vadd.f32 %v1134, %v2368
      %v2370 = vpop.f32.mrf.mxu0
      %2371 = vmatprep.mubr.f32.mxu0 0.0
      %2372 = vmatmul.mubr.f32.gmra.mxu0 %v2168
      %v2373 = vpop.f32.mrf.mxu0
      %v2374 = vadd.f32 %v1134, %v2373
      %v2375 = vpop.f32.mrf.mxu0
      %2376 = vmatprep.mubr.f32.mxu0 0.0
      %2377 = vmatmul.mubr.f32.gmra.mxu0 %v2171
      %v2378 = vpop.f32.mrf.mxu0
      %v2379 = vadd.f32 %v1134, %v2378
      %v2380 = vpop.f32.mrf.mxu0
      %2381 = vmatprep.mubr.f32.mxu0 0.0
      %2382 = vmatmul.mubr.f32.gmra.mxu0 %v2174
      %v2383 = vpop.f32.mrf.mxu0
      %v2384 = vadd.f32 %v1134, %v2383
      %v2385 = vpop.f32.mrf.mxu0
      %2386 = vmatprep.mubr.f32.mxu0 0.0
      %2387 = vmatmul.mubr.f32.gmra.mxu0 %v2177
      %v2388 = vpop.f32.mrf.mxu0
      %v2389 = vadd.f32 %v1134, %v2388
      %v2390 = vpop.f32.mrf.mxu0
      %2391 = vmatprep.mubr.f32.mxu0 0.0
      %2392 = vmatmul.mubr.f32.gmra.mxu0 %v2180
      %v2393 = vpop.f32.mrf.mxu0
      %v2394 = vadd.f32 %v1134, %v2393
      %v2395 = vpop.f32.mrf.mxu0
      %2396 = vmatprep.mubr.f32.mxu0 0.0
      %2397 = vmatmul.mubr.f32.gmra.mxu0 %v2183
      %v2398 = vpop.f32.mrf.mxu0
      %v2399 = vadd.f32 %v1134, %v2398
      %v2400 = vpop.f32.mrf.mxu0
      %2401 = vmatprep.mubr.f32.mxu0 0.0
      %2402 = vmatmul.mubr.f32.gmra.mxu0 %v2186
      %v2403 = vpop.f32.mrf.mxu0
      %v2404 = vadd.f32 %v1134, %v2403
      %v2405 = vpop.f32.mrf.mxu0
      %2406 = vmatprep.mubr.f32.mxu0 0.0
      %2407 = vmatmul.mubr.f32.gmra.mxu0 %v2189
      %v2408 = vpop.f32.mrf.mxu0
      %v2409 = vadd.f32 %v1134, %v2408
      %v2410 = vpop.f32.mrf.mxu0
      %2411 = vmatprep.mubr.f32.mxu0 0.0
      %2412 = vmatmul.mubr.f32.gmra.mxu0 %v2192
      %v2413 = vpop.f32.mrf.mxu0
      %v2414 = vadd.f32 %v1134, %v2413
      %v2415 = vpop.f32.mrf.mxu0
      %2416 = vmatprep.mubr.f32.mxu0 0.0
      %2417 = vmatmul.mubr.f32.gmra.mxu0 %v2195
      %v2418 = vpop.f32.mrf.mxu0
      %v2419 = vadd.f32 %v1134, %v2418
      %v2420 = vpop.f32.mrf.mxu0
      %2421 = vdwg.mxu0
      %2454 = vrot.lane.b32.xlu0 %v2264, 4
      %v2455 = vpop.permute.xlu0 %2454
      %2456 = vrot.lane.b32.xlu0 %v2269, 4
      %v2457 = vpop.permute.xlu0 %2456
      %2458 = vrot.lane.b32.xlu0 %v2274, 4
      %v2459 = vpop.permute.xlu0 %2458
      %2460 = vrot.lane.b32.xlu0 %v2279, 4
      %v2461 = vpop.permute.xlu0 %2460
      %2462 = vrot.lane.b32.xlu0 %v2284, 4
      %v2463 = vpop.permute.xlu0 %2462
      %2464 = vrot.lane.b32.xlu0 %v2289, 4
      %v2465 = vpop.permute.xlu0 %2464
      %2466 = vrot.lane.b32.xlu0 %v2294, 4
      %v2467 = vpop.permute.xlu0 %2466
      %2468 = vrot.lane.b32.xlu0 %v2299, 4
      %v2469 = vpop.permute.xlu0 %2468
      %2470 = vrot.lane.b32.xlu0 %v2304, 4
      %v2471 = vpop.permute.xlu0 %2470
      %2472 = vrot.lane.b32.xlu0 %v2309, 4
      %v2473 = vpop.permute.xlu0 %2472
      %2474 = vrot.lane.b32.xlu0 %v2314, 4
      %v2475 = vpop.permute.xlu0 %2474
      %2476 = vrot.lane.b32.xlu0 %v2319, 4
      %v2477 = vpop.permute.xlu0 %2476
      %2478 = vrot.lane.b32.xlu0 %v2324, 4
      %v2479 = vpop.permute.xlu0 %2478
      %2480 = vrot.lane.b32.xlu0 %v2329, 4
      %v2481 = vpop.permute.xlu0 %2480
      %2482 = vrot.lane.b32.xlu0 %v2334, 4
      %v2483 = vpop.permute.xlu0 %2482
      %2484 = vrot.lane.b32.xlu0 %v2339, 4
      %v2485 = vpop.permute.xlu0 %2484
      %2486 = vrot.lane.b32.xlu0 %v2344, 4
      %v2487 = vpop.permute.xlu0 %2486
      %2488 = vrot.lane.b32.xlu0 %v2349, 4
      %v2489 = vpop.permute.xlu0 %2488
      %2490 = vrot.lane.b32.xlu0 %v2354, 4
      %v2491 = vpop.permute.xlu0 %2490
      %2492 = vrot.lane.b32.xlu0 %v2359, 4
      %v2493 = vpop.permute.xlu0 %2492
      %2494 = vrot.lane.b32.xlu0 %v2364, 4
      %v2495 = vpop.permute.xlu0 %2494
      %2496 = vrot.lane.b32.xlu0 %v2369, 4
      %v2497 = vpop.permute.xlu0 %2496
      %2498 = vrot.lane.b32.xlu0 %v2374, 4
      %v2499 = vpop.permute.xlu0 %2498
      %2500 = vrot.lane.b32.xlu0 %v2379, 4
      %v2501 = vpop.permute.xlu0 %2500
      %2502 = vrot.lane.b32.xlu0 %v2384, 4
      %v2503 = vpop.permute.xlu0 %2502
      %2504 = vrot.lane.b32.xlu0 %v2389, 4
      %v2505 = vpop.permute.xlu0 %2504
      %2506 = vrot.lane.b32.xlu0 %v2394, 4
      %v2507 = vpop.permute.xlu0 %2506
      %2508 = vrot.lane.b32.xlu0 %v2399, 4
      %v2509 = vpop.permute.xlu0 %2508
      %2510 = vrot.lane.b32.xlu0 %v2404, 4
      %v2511 = vpop.permute.xlu0 %2510
      %2512 = vrot.lane.b32.xlu0 %v2409, 4
      %v2513 = vpop.permute.xlu0 %2512
      %2514 = vrot.lane.b32.xlu0 %v2414, 4
      %v2515 = vpop.permute.xlu0 %2514
      %2516 = vrot.lane.b32.xlu0 %v2419, 4
      %v2517 = vpop.permute.xlu0 %2516
      %vm2550 = vcmask 64544
      %2551 = vst.msk [vmem:[%s391] sm:$0xff] %vm2550, %v2455
      %2552 = vst.msk [vmem:[%s391 + $0x8] sm:$0xff] %vm2550, %v2457
      %2553 = vst.msk [vmem:[%s391 + $0x20] sm:$0xff] %vm2550, %v2459
      %2554 = vst.msk [vmem:[%s391 + $0x28] sm:$0xff] %vm2550, %v2461
      %2555 = vst.msk [vmem:[%s391 + $0x40] sm:$0xff] %vm2550, %v2463
      %2556 = vst.msk [vmem:[%s391 + $0x48] sm:$0xff] %vm2550, %v2465
      %2557 = vst.msk [vmem:[%s391 + $0x60] sm:$0xff] %vm2550, %v2467
      %2558 = vst.msk [vmem:[%s391 + $0x68] sm:$0xff] %vm2550, %v2469
      %2559 = vst.msk [vmem:[%s391 + $0x80] sm:$0xff] %vm2550, %v2471
      %2560 = vst.msk [vmem:[%s391 + $0x88] sm:$0xff] %vm2550, %v2473
      %2561 = vst.msk [vmem:[%s391 + $0xa0] sm:$0xff] %vm2550, %v2475
      %2562 = vst.msk [vmem:[%s391 + $0xa8] sm:$0xff] %vm2550, %v2477
      %2563 = vst.msk [vmem:[%s391 + $0xc0] sm:$0xff] %vm2550, %v2479
      %2564 = vst.msk [vmem:[%s391 + $0xc8] sm:$0xff] %vm2550, %v2481
      %2565 = vst.msk [vmem:[%s391 + $0xe0] sm:$0xff] %vm2550, %v2483
      %2566 = vst.msk [vmem:[%s391 + $0xe8] sm:$0xff] %vm2550, %v2485
      %2567 = vst.msk [vmem:[%s391 + $0x100] sm:$0xff] %vm2550, %v2487
      %2568 = vst.msk [vmem:[%s391 + $0x108] sm:$0xff] %vm2550, %v2489
      %2569 = vst.msk [vmem:[%s391 + $0x120] sm:$0xff] %vm2550, %v2491
      %2570 = vst.msk [vmem:[%s391 + $0x128] sm:$0xff] %vm2550, %v2493
      %2571 = vst.msk [vmem:[%s391 + $0x140] sm:$0xff] %vm2550, %v2495
      %2572 = vst.msk [vmem:[%s391 + $0x148] sm:$0xff] %vm2550, %v2497
      %2573 = vst.msk [vmem:[%s391 + $0x160] sm:$0xff] %vm2550, %v2499
      %2574 = vst.msk [vmem:[%s391 + $0x168] sm:$0xff] %vm2550, %v2501
      %2575 = vst.msk [vmem:[%s391 + $0x180] sm:$0xff] %vm2550, %v2503
      %2576 = vst.msk [vmem:[%s391 + $0x188] sm:$0xff] %vm2550, %v2505
      %2577 = vst.msk [vmem:[%s391 + $0x1a0] sm:$0xff] %vm2550, %v2507
      %2578 = vst.msk [vmem:[%s391 + $0x1a8] sm:$0xff] %vm2550, %v2509
      %2579 = vst.msk [vmem:[%s391 + $0x1c0] sm:$0xff] %vm2550, %v2511
      %2580 = vst.msk [vmem:[%s391 + $0x1c8] sm:$0xff] %vm2550, %v2513
      %2581 = vst.msk [vmem:[%s391 + $0x1e0] sm:$0xff] %vm2550, %v2515
      %2582 = vst.msk [vmem:[%s391 + $0x1e8] sm:$0xff] %vm2550, %v2517
      %v2583 = vld [vmem:[%s484] sm:$0xff]
      %v2584 = vld [vmem:[%s484 + $0x8] sm:$0xff]
      %v2585 = vld [vmem:[%s484 + $0x18] sm:$0xff]
      %v2586 = vld [vmem:[%s484 + $0x20] sm:$0xff]
      %v2587 = vld [vmem:[%s484 + $0x30] sm:$0xff]
      %v2588 = vld [vmem:[%s484 + $0x38] sm:$0xff]
      %v2589 = vld [vmem:[%s484 + $0x48] sm:$0xff]
      %v2590 = vld [vmem:[%s484 + $0x50] sm:$0xff]
      %v2591 = vld [vmem:[%s484 + $0x60] sm:$0xff]
      %v2592 = vld [vmem:[%s484 + $0x68] sm:$0xff]
      %v2593 = vld [vmem:[%s484 + $0x78] sm:$0xff]
      %v2594 = vld [vmem:[%s484 + $0x80] sm:$0xff]
      %v2595 = vld [vmem:[%s484 + $0x90] sm:$0xff]
      %v2596 = vld [vmem:[%s484 + $0x98] sm:$0xff]
      %v2597 = vld [vmem:[%s484 + $0xa8] sm:$0xff]
      %v2598 = vld [vmem:[%s484 + $0xb0] sm:$0xff]
      %v2599 = vld [vmem:[%s484 + $0xc0] sm:$0xff]
      %v2600 = vld [vmem:[%s484 + $0xc8] sm:$0xff]
      %v2601 = vld [vmem:[%s484 + $0xd8] sm:$0xff]
      %v2602 = vld [vmem:[%s484 + $0xe0] sm:$0xff]
      %v2603 = vld [vmem:[%s484 + $0xf0] sm:$0xff]
      %v2604 = vld [vmem:[%s484 + $0xf8] sm:$0xff]
      %v2605 = vld [vmem:[%s484 + $0x108] sm:$0xff]
      %v2606 = vld [vmem:[%s484 + $0x110] sm:$0xff]
      %v2607 = vld [vmem:[%s484 + $0x120] sm:$0xff]
      %v2608 = vld [vmem:[%s484 + $0x128] sm:$0xff]
      %v2609 = vld [vmem:[%s484 + $0x138] sm:$0xff]
      %v2610 = vld [vmem:[%s484 + $0x140] sm:$0xff]
      %v2611 = vld [vmem:[%s484 + $0x150] sm:$0xff]
      %v2612 = vld [vmem:[%s484 + $0x158] sm:$0xff]
      %v2613 = vld [vmem:[%s484 + $0x168] sm:$0xff]
      %v2614 = vld [vmem:[%s484 + $0x170] sm:$0xff]
      %v2615 = vld [vmem:[%s484 + $0x1] sm:$0xff]
      %v2616 = vld [vmem:[%s484 + $0x9] sm:$0xff]
      %v2617 = vld [vmem:[%s484 + $0x19] sm:$0xff]
      %v2618 = vld [vmem:[%s484 + $0x21] sm:$0xff]
      %v2619 = vld [vmem:[%s484 + $0x31] sm:$0xff]
      %v2620 = vld [vmem:[%s484 + $0x39] sm:$0xff]
      %v2621 = vld [vmem:[%s484 + $0x49] sm:$0xff]
      %v2622 = vld [vmem:[%s484 + $0x51] sm:$0xff]
      %v2623 = vld [vmem:[%s484 + $0x61] sm:$0xff]
      %v2624 = vld [vmem:[%s484 + $0x69] sm:$0xff]
      %v2625 = vld [vmem:[%s484 + $0x79] sm:$0xff]
      %v2626 = vld [vmem:[%s484 + $0x81] sm:$0xff]
      %v2627 = vld [vmem:[%s484 + $0x91] sm:$0xff]
      %v2628 = vld [vmem:[%s484 + $0x99] sm:$0xff]
      %v2629 = vld [vmem:[%s484 + $0xa9] sm:$0xff]
      %v2630 = vld [vmem:[%s484 + $0xb1] sm:$0xff]
      %v2631 = vld [vmem:[%s484 + $0xc1] sm:$0xff]
      %v2632 = vld [vmem:[%s484 + $0xc9] sm:$0xff]
      %v2633 = vld [vmem:[%s484 + $0xd9] sm:$0xff]
      %v2634 = vld [vmem:[%s484 + $0xe1] sm:$0xff]
      %v2635 = vld [vmem:[%s484 + $0xf1] sm:$0xff]
      %v2636 = vld [vmem:[%s484 + $0xf9] sm:$0xff]
      %v2637 = vld [vmem:[%s484 + $0x109] sm:$0xff]
      %v2638 = vld [vmem:[%s484 + $0x111] sm:$0xff]
      %v2639 = vld [vmem:[%s484 + $0x121] sm:$0xff]
      %v2640 = vld [vmem:[%s484 + $0x129] sm:$0xff]
      %v2641 = vld [vmem:[%s484 + $0x139] sm:$0xff]
      %v2642 = vld [vmem:[%s484 + $0x141] sm:$0xff]
      %v2643 = vld [vmem:[%s484 + $0x151] sm:$0xff]
      %v2644 = vld [vmem:[%s484 + $0x159] sm:$0xff]
      %v2645 = vld [vmem:[%s484 + $0x169] sm:$0xff]
      %v2646 = vld [vmem:[%s484 + $0x171] sm:$0xff]
      %s2647 = scalar_lea.vmem [#allocation2], 48
      %v2648 = vld [vmem:[%s2647] sm:$0xff]
      %v2649 = vld [vmem:[%s2647 + $0x8] sm:$0xff]
      %v2650 = vld [vmem:[%s2647 + $0x18] sm:$0xff]
      %v2651 = vld [vmem:[%s2647 + $0x20] sm:$0xff]
      %v2652 = vld [vmem:[%s2647 + $0x30] sm:$0xff]
      %v2653 = vld [vmem:[%s2647 + $0x38] sm:$0xff]
      %v2654 = vld [vmem:[%s2647 + $0x48] sm:$0xff]
      %v2655 = vld [vmem:[%s2647 + $0x50] sm:$0xff]
      %v2656 = vld [vmem:[%s2647 + $0x60] sm:$0xff]
      %v2657 = vld [vmem:[%s2647 + $0x68] sm:$0xff]
      %v2658 = vld [vmem:[%s2647 + $0x78] sm:$0xff]
      %v2659 = vld [vmem:[%s2647 + $0x80] sm:$0xff]
      %v2660 = vld [vmem:[%s2647 + $0x90] sm:$0xff]
      %v2661 = vld [vmem:[%s2647 + $0x98] sm:$0xff]
      %v2662 = vld [vmem:[%s2647 + $0xa8] sm:$0xff]
      %v2663 = vld [vmem:[%s2647 + $0xb0] sm:$0xff]
      %v2664 = vld [vmem:[%s2647 + $0xc0] sm:$0xff]
      %v2665 = vld [vmem:[%s2647 + $0xc8] sm:$0xff]
      %v2666 = vld [vmem:[%s2647 + $0xd8] sm:$0xff]
      %v2667 = vld [vmem:[%s2647 + $0xe0] sm:$0xff]
      %v2668 = vld [vmem:[%s2647 + $0xf0] sm:$0xff]
      %v2669 = vld [vmem:[%s2647 + $0xf8] sm:$0xff]
      %v2670 = vld [vmem:[%s2647 + $0x108] sm:$0xff]
      %v2671 = vld [vmem:[%s2647 + $0x110] sm:$0xff]
      %v2672 = vld [vmem:[%s2647 + $0x120] sm:$0xff]
      %v2673 = vld [vmem:[%s2647 + $0x128] sm:$0xff]
      %v2674 = vld [vmem:[%s2647 + $0x138] sm:$0xff]
      %v2675 = vld [vmem:[%s2647 + $0x140] sm:$0xff]
      %v2676 = vld [vmem:[%s2647 + $0x150] sm:$0xff]
      %v2677 = vld [vmem:[%s2647 + $0x158] sm:$0xff]
      %v2678 = vld [vmem:[%s2647 + $0x168] sm:$0xff]
      %v2679 = vld [vmem:[%s2647 + $0x170] sm:$0xff]
      %v2680 = vld [vmem:[%s2647 + $0x1] sm:$0xff]
      %v2681 = vld [vmem:[%s2647 + $0x9] sm:$0xff]
      %v2682 = vld [vmem:[%s2647 + $0x19] sm:$0xff]
      %v2683 = vld [vmem:[%s2647 + $0x21] sm:$0xff]
      %v2684 = vld [vmem:[%s2647 + $0x31] sm:$0xff]
      %v2685 = vld [vmem:[%s2647 + $0x39] sm:$0xff]
      %v2686 = vld [vmem:[%s2647 + $0x49] sm:$0xff]
      %v2687 = vld [vmem:[%s2647 + $0x51] sm:$0xff]
      %v2688 = vld [vmem:[%s2647 + $0x61] sm:$0xff]
      %v2689 = vld [vmem:[%s2647 + $0x69] sm:$0xff]
      %v2690 = vld [vmem:[%s2647 + $0x79] sm:$0xff]
      %v2691 = vld [vmem:[%s2647 + $0x81] sm:$0xff]
      %v2692 = vld [vmem:[%s2647 + $0x91] sm:$0xff]
      %v2693 = vld [vmem:[%s2647 + $0x99] sm:$0xff]
      %v2694 = vld [vmem:[%s2647 + $0xa9] sm:$0xff]
      %v2695 = vld [vmem:[%s2647 + $0xb1] sm:$0xff]
      %v2696 = vld [vmem:[%s2647 + $0xc1] sm:$0xff]
      %v2697 = vld [vmem:[%s2647 + $0xc9] sm:$0xff]
      %v2698 = vld [vmem:[%s2647 + $0xd9] sm:$0xff]
      %v2699 = vld [vmem:[%s2647 + $0xe1] sm:$0xff]
      %v2700 = vld [vmem:[%s2647 + $0xf1] sm:$0xff]
      %v2701 = vld [vmem:[%s2647 + $0xf9] sm:$0xff]
      %v2702 = vld [vmem:[%s2647 + $0x109] sm:$0xff]
      %v2703 = vld [vmem:[%s2647 + $0x111] sm:$0xff]
      %v2704 = vld [vmem:[%s2647 + $0x121] sm:$0xff]
      %v2705 = vld [vmem:[%s2647 + $0x129] sm:$0xff]
      %v2706 = vld [vmem:[%s2647 + $0x139] sm:$0xff]
      %v2707 = vld [vmem:[%s2647 + $0x141] sm:$0xff]
      %v2708 = vld [vmem:[%s2647 + $0x151] sm:$0xff]
      %v2709 = vld [vmem:[%s2647 + $0x159] sm:$0xff]
      %v2710 = vld [vmem:[%s2647 + $0x169] sm:$0xff]
      %v2711 = vld [vmem:[%s2647 + $0x171] sm:$0xff]
      %2744 = vrot.lane.b32.xlu0 %v2615, 4
      %v2745 = vpop.permute.xlu0 %2744
      %2746 = vrot.lane.b32.xlu0 %v2616, 4
      %v2747 = vpop.permute.xlu0 %2746
      %2748 = vrot.lane.b32.xlu0 %v2617, 4
      %v2749 = vpop.permute.xlu0 %2748
      %2750 = vrot.lane.b32.xlu0 %v2618, 4
      %v2751 = vpop.permute.xlu0 %2750
      %2752 = vrot.lane.b32.xlu0 %v2619, 4
      %v2753 = vpop.permute.xlu0 %2752
      %2754 = vrot.lane.b32.xlu0 %v2620, 4
      %v2755 = vpop.permute.xlu0 %2754
      %2756 = vrot.lane.b32.xlu0 %v2621, 4
      %v2757 = vpop.permute.xlu0 %2756
      %2758 = vrot.lane.b32.xlu0 %v2622, 4
      %v2759 = vpop.permute.xlu0 %2758
      %2760 = vrot.lane.b32.xlu0 %v2623, 4
      %v2761 = vpop.permute.xlu0 %2760
      %2762 = vrot.lane.b32.xlu0 %v2624, 4
      %v2763 = vpop.permute.xlu0 %2762
      %2764 = vrot.lane.b32.xlu0 %v2625, 4
      %v2765 = vpop.permute.xlu0 %2764
      %2766 = vrot.lane.b32.xlu0 %v2626, 4
      %v2767 = vpop.permute.xlu0 %2766
      %2768 = vrot.lane.b32.xlu0 %v2627, 4
      %v2769 = vpop.permute.xlu0 %2768
      %2770 = vrot.lane.b32.xlu0 %v2628, 4
      %v2771 = vpop.permute.xlu0 %2770
      %2772 = vrot.lane.b32.xlu0 %v2629, 4
      %v2773 = vpop.permute.xlu0 %2772
      %2774 = vrot.lane.b32.xlu0 %v2630, 4
      %v2775 = vpop.permute.xlu0 %2774
      %2776 = vrot.lane.b32.xlu0 %v2631, 4
      %v2777 = vpop.permute.xlu0 %2776
      %2778 = vrot.lane.b32.xlu0 %v2632, 4
      %v2779 = vpop.permute.xlu0 %2778
      %2780 = vrot.lane.b32.xlu0 %v2633, 4
      %v2781 = vpop.permute.xlu0 %2780
      %2782 = vrot.lane.b32.xlu0 %v2634, 4
      %v2783 = vpop.permute.xlu0 %2782
      %2784 = vrot.lane.b32.xlu0 %v2635, 4
      %v2785 = vpop.permute.xlu0 %2784
      %2786 = vrot.lane.b32.xlu0 %v2636, 4
      %v2787 = vpop.permute.xlu0 %2786
      %2788 = vrot.lane.b32.xlu0 %v2637, 4
      %v2789 = vpop.permute.xlu0 %2788
      %2790 = vrot.lane.b32.xlu0 %v2638, 4
      %v2791 = vpop.permute.xlu0 %2790
      %2792 = vrot.lane.b32.xlu0 %v2639, 4
      %v2793 = vpop.permute.xlu0 %2792
      %2794 = vrot.lane.b32.xlu0 %v2640, 4
      %v2795 = vpop.permute.xlu0 %2794
      %2796 = vrot.lane.b32.xlu0 %v2641, 4
      %v2797 = vpop.permute.xlu0 %2796
      %2798 = vrot.lane.b32.xlu0 %v2642, 4
      %v2799 = vpop.permute.xlu0 %2798
      %2800 = vrot.lane.b32.xlu0 %v2643, 4
      %v2801 = vpop.permute.xlu0 %2800
      %2802 = vrot.lane.b32.xlu0 %v2644, 4
      %v2803 = vpop.permute.xlu0 %2802
      %2804 = vrot.lane.b32.xlu0 %v2645, 4
      %v2805 = vpop.permute.xlu0 %2804
      %2806 = vrot.lane.b32.xlu0 %v2646, 4
      %v2807 = vpop.permute.xlu0 %2806
      %2872 = vrot.lane.b32.xlu0 %v2648, 8
      %v2873 = vpop.permute.xlu0 %2872
      %2874 = vrot.lane.b32.xlu0 %v2649, 8
      %v2875 = vpop.permute.xlu0 %2874
      %2876 = vrot.lane.b32.xlu0 %v2650, 8
      %v2877 = vpop.permute.xlu0 %2876
      %2878 = vrot.lane.b32.xlu0 %v2651, 8
      %v2879 = vpop.permute.xlu0 %2878
      %2880 = vrot.lane.b32.xlu0 %v2652, 8
      %v2881 = vpop.permute.xlu0 %2880
      %2882 = vrot.lane.b32.xlu0 %v2653, 8
      %v2883 = vpop.permute.xlu0 %2882
      %2884 = vrot.lane.b32.xlu0 %v2654, 8
      %v2885 = vpop.permute.xlu0 %2884
      %2886 = vrot.lane.b32.xlu0 %v2655, 8
      %v2887 = vpop.permute.xlu0 %2886
      %2888 = vrot.lane.b32.xlu0 %v2656, 8
      %v2889 = vpop.permute.xlu0 %2888
      %2890 = vrot.lane.b32.xlu0 %v2657, 8
      %v2891 = vpop.permute.xlu0 %2890
      %2892 = vrot.lane.b32.xlu0 %v2658, 8
      %v2893 = vpop.permute.xlu0 %2892
      %2894 = vrot.lane.b32.xlu0 %v2659, 8
      %v2895 = vpop.permute.xlu0 %2894
      %2896 = vrot.lane.b32.xlu0 %v2660, 8
      %v2897 = vpop.permute.xlu0 %2896
      %2898 = vrot.lane.b32.xlu0 %v2661, 8
      %v2899 = vpop.permute.xlu0 %2898
      %2900 = vrot.lane.b32.xlu0 %v2662, 8
      %v2901 = vpop.permute.xlu0 %2900
      %2902 = vrot.lane.b32.xlu0 %v2663, 8
      %v2903 = vpop.permute.xlu0 %2902
      %2904 = vrot.lane.b32.xlu0 %v2664, 8
      %v2905 = vpop.permute.xlu0 %2904
      %2906 = vrot.lane.b32.xlu0 %v2665, 8
      %v2907 = vpop.permute.xlu0 %2906
      %2908 = vrot.lane.b32.xlu0 %v2666, 8
      %v2909 = vpop.permute.xlu0 %2908
      %2910 = vrot.lane.b32.xlu0 %v2667, 8
      %v2911 = vpop.permute.xlu0 %2910
      %2912 = vrot.lane.b32.xlu0 %v2668, 8
      %v2913 = vpop.permute.xlu0 %2912
      %2914 = vrot.lane.b32.xlu0 %v2669, 8
      %v2915 = vpop.permute.xlu0 %2914
      %2916 = vrot.lane.b32.xlu0 %v2670, 8
      %v2917 = vpop.permute.xlu0 %2916
      %2918 = vrot.lane.b32.xlu0 %v2671, 8
      %v2919 = vpop.permute.xlu0 %2918
      %2920 = vrot.lane.b32.xlu0 %v2672, 8
      %v2921 = vpop.permute.xlu0 %2920
      %2922 = vrot.lane.b32.xlu0 %v2673, 8
      %v2923 = vpop.permute.xlu0 %2922
      %2924 = vrot.lane.b32.xlu0 %v2674, 8
      %v2925 = vpop.permute.xlu0 %2924
      %2926 = vrot.lane.b32.xlu0 %v2675, 8
      %v2927 = vpop.permute.xlu0 %2926
      %2928 = vrot.lane.b32.xlu0 %v2676, 8
      %v2929 = vpop.permute.xlu0 %2928
      %2930 = vrot.lane.b32.xlu0 %v2677, 8
      %v2931 = vpop.permute.xlu0 %2930
      %2932 = vrot.lane.b32.xlu0 %v2678, 8
      %v2933 = vpop.permute.xlu0 %2932
      %2934 = vrot.lane.b32.xlu0 %v2679, 8
      %v2935 = vpop.permute.xlu0 %2934
      %3000 = vrot.lane.b32.xlu0 %v2680, 12
      %v3001 = vpop.permute.xlu0 %3000
      %3002 = vrot.lane.b32.xlu0 %v2681, 12
      %v3003 = vpop.permute.xlu0 %3002
      %3004 = vrot.lane.b32.xlu0 %v2682, 12
      %v3005 = vpop.permute.xlu0 %3004
      %3006 = vrot.lane.b32.xlu0 %v2683, 12
      %v3007 = vpop.permute.xlu0 %3006
      %3008 = vrot.lane.b32.xlu0 %v2684, 12
      %v3009 = vpop.permute.xlu0 %3008
      %3010 = vrot.lane.b32.xlu0 %v2685, 12
      %v3011 = vpop.permute.xlu0 %3010
      %3012 = vrot.lane.b32.xlu0 %v2686, 12
      %v3013 = vpop.permute.xlu0 %3012
      %3014 = vrot.lane.b32.xlu0 %v2687, 12
      %v3015 = vpop.permute.xlu0 %3014
      %3016 = vrot.lane.b32.xlu0 %v2688, 12
      %v3017 = vpop.permute.xlu0 %3016
      %3018 = vrot.lane.b32.xlu0 %v2689, 12
      %v3019 = vpop.permute.xlu0 %3018
      %3020 = vrot.lane.b32.xlu0 %v2690, 12
      %v3021 = vpop.permute.xlu0 %3020
      %3022 = vrot.lane.b32.xlu0 %v2691, 12
      %v3023 = vpop.permute.xlu0 %3022
      %3024 = vrot.lane.b32.xlu0 %v2692, 12
      %v3025 = vpop.permute.xlu0 %3024
      %3026 = vrot.lane.b32.xlu0 %v2693, 12
      %v3027 = vpop.permute.xlu0 %3026
      %3028 = vrot.lane.b32.xlu0 %v2694, 12
      %v3029 = vpop.permute.xlu0 %3028
      %3030 = vrot.lane.b32.xlu0 %v2695, 12
      %v3031 = vpop.permute.xlu0 %3030
      %3032 = vrot.lane.b32.xlu0 %v2696, 12
      %v3033 = vpop.permute.xlu0 %3032
      %3034 = vrot.lane.b32.xlu0 %v2697, 12
      %v3035 = vpop.permute.xlu0 %3034
      %3036 = vrot.lane.b32.xlu0 %v2698, 12
      %v3037 = vpop.permute.xlu0 %3036
      %3038 = vrot.lane.b32.xlu0 %v2699, 12
      %v3039 = vpop.permute.xlu0 %3038
      %3040 = vrot.lane.b32.xlu0 %v2700, 12
      %v3041 = vpop.permute.xlu0 %3040
      %3042 = vrot.lane.b32.xlu0 %v2701, 12
      %v3043 = vpop.permute.xlu0 %3042
      %3044 = vrot.lane.b32.xlu0 %v2702, 12
      %v3045 = vpop.permute.xlu0 %3044
      %3046 = vrot.lane.b32.xlu0 %v2703, 12
      %v3047 = vpop.permute.xlu0 %3046
      %3048 = vrot.lane.b32.xlu0 %v2704, 12
      %v3049 = vpop.permute.xlu0 %3048
      %3050 = vrot.lane.b32.xlu0 %v2705, 12
      %v3051 = vpop.permute.xlu0 %3050
      %3052 = vrot.lane.b32.xlu0 %v2706, 12
      %v3053 = vpop.permute.xlu0 %3052
      %3054 = vrot.lane.b32.xlu0 %v2707, 12
      %v3055 = vpop.permute.xlu0 %3054
      %3056 = vrot.lane.b32.xlu0 %v2708, 12
      %v3057 = vpop.permute.xlu0 %3056
      %3058 = vrot.lane.b32.xlu0 %v2709, 12
      %v3059 = vpop.permute.xlu0 %3058
      %3060 = vrot.lane.b32.xlu0 %v2710, 12
      %v3061 = vpop.permute.xlu0 %3060
      %3062 = vrot.lane.b32.xlu0 %v2711, 12
      %v3063 = vpop.permute.xlu0 %3062
      %v3096 = vsel %vm446, %v2583, %v2745
      %v3097 = vsel %vm446, %v2584, %v2747
      %v3098 = vsel %vm446, %v2585, %v2749
      %v3099 = vsel %vm446, %v2586, %v2751
      %v3100 = vsel %vm446, %v2587, %v2753
      %v3101 = vsel %vm446, %v2588, %v2755
      %v3102 = vsel %vm446, %v2589, %v2757
      %v3103 = vsel %vm446, %v2590, %v2759
      %v3104 = vsel %vm446, %v2591, %v2761
      %v3105 = vsel %vm446, %v2592, %v2763
      %v3106 = vsel %vm446, %v2593, %v2765
      %v3107 = vsel %vm446, %v2594, %v2767
      %v3108 = vsel %vm446, %v2595, %v2769
      %v3109 = vsel %vm446, %v2596, %v2771
      %v3110 = vsel %vm446, %v2597, %v2773
      %v3111 = vsel %vm446, %v2598, %v2775
      %v3112 = vsel %vm446, %v2599, %v2777
      %v3113 = vsel %vm446, %v2600, %v2779
      %v3114 = vsel %vm446, %v2601, %v2781
      %v3115 = vsel %vm446, %v2602, %v2783
      %v3116 = vsel %vm446, %v2603, %v2785
      %v3117 = vsel %vm446, %v2604, %v2787
      %v3118 = vsel %vm446, %v2605, %v2789
      %v3119 = vsel %vm446, %v2606, %v2791
      %v3120 = vsel %vm446, %v2607, %v2793
      %v3121 = vsel %vm446, %v2608, %v2795
      %v3122 = vsel %vm446, %v2609, %v2797
      %v3123 = vsel %vm446, %v2610, %v2799
      %v3124 = vsel %vm446, %v2611, %v2801
      %v3125 = vsel %vm446, %v2612, %v2803
      %v3126 = vsel %vm446, %v2613, %v2805
      %v3127 = vsel %vm446, %v2614, %v2807
      %v3128 = vsel %vm1062, %v3096, %v2873
      %v3129 = vsel %vm1062, %v3097, %v2875
      %v3130 = vsel %vm1062, %v3098, %v2877
      %v3131 = vsel %vm1062, %v3099, %v2879
      %v3132 = vsel %vm1062, %v3100, %v2881
      %v3133 = vsel %vm1062, %v3101, %v2883
      %v3134 = vsel %vm1062, %v3102, %v2885
      %v3135 = vsel %vm1062, %v3103, %v2887
      %v3136 = vsel %vm1062, %v3104, %v2889
      %v3137 = vsel %vm1062, %v3105, %v2891
      %v3138 = vsel %vm1062, %v3106, %v2893
      %v3139 = vsel %vm1062, %v3107, %v2895
      %v3140 = vsel %vm1062, %v3108, %v2897
      %v3141 = vsel %vm1062, %v3109, %v2899
      %v3142 = vsel %vm1062, %v3110, %v2901
      %v3143 = vsel %vm1062, %v3111, %v2903
      %v3144 = vsel %vm1062, %v3112, %v2905
      %v3145 = vsel %vm1062, %v3113, %v2907
      %v3146 = vsel %vm1062, %v3114, %v2909
      %v3147 = vsel %vm1062, %v3115, %v2911
      %v3148 = vsel %vm1062, %v3116, %v2913
      %v3149 = vsel %vm1062, %v3117, %v2915
      %v3150 = vsel %vm1062, %v3118, %v2917
      %v3151 = vsel %vm1062, %v3119, %v2919
      %v3152 = vsel %vm1062, %v3120, %v2921
      %v3153 = vsel %vm1062, %v3121, %v2923
      %v3154 = vsel %vm1062, %v3122, %v2925
      %v3155 = vsel %vm1062, %v3123, %v2927
      %v3156 = vsel %vm1062, %v3124, %v2929
      %v3157 = vsel %vm1062, %v3125, %v2931
      %v3158 = vsel %vm1062, %v3126, %v2933
      %v3159 = vsel %vm1062, %v3127, %v2935
      %v3160 = vsel %vm1095, %v3128, %v3001
      %v3161 = vsel %vm1095, %v3129, %v3003
      %v3162 = vsel %vm1095, %v3130, %v3005
      %v3163 = vsel %vm1095, %v3131, %v3007
      %v3164 = vsel %vm1095, %v3132, %v3009
      %v3165 = vsel %vm1095, %v3133, %v3011
      %v3166 = vsel %vm1095, %v3134, %v3013
      %v3167 = vsel %vm1095, %v3135, %v3015
      %v3168 = vsel %vm1095, %v3136, %v3017
      %v3169 = vsel %vm1095, %v3137, %v3019
      %v3170 = vsel %vm1095, %v3138, %v3021
      %v3171 = vsel %vm1095, %v3139, %v3023
      %v3172 = vsel %vm1095, %v3140, %v3025
      %v3173 = vsel %vm1095, %v3141, %v3027
      %v3174 = vsel %vm1095, %v3142, %v3029
      %v3175 = vsel %vm1095, %v3143, %v3031
      %v3176 = vsel %vm1095, %v3144, %v3033
      %v3177 = vsel %vm1095, %v3145, %v3035
      %v3178 = vsel %vm1095, %v3146, %v3037
      %v3179 = vsel %vm1095, %v3147, %v3039
      %v3180 = vsel %vm1095, %v3148, %v3041
      %v3181 = vsel %vm1095, %v3149, %v3043
      %v3182 = vsel %vm1095, %v3150, %v3045
      %v3183 = vsel %vm1095, %v3151, %v3047
      %v3184 = vsel %vm1095, %v3152, %v3049
      %v3185 = vsel %vm1095, %v3153, %v3051
      %v3186 = vsel %vm1095, %v3154, %v3053
      %v3187 = vsel %vm1095, %v3155, %v3055
      %v3188 = vsel %vm1095, %v3156, %v3057
      %v3189 = vsel %vm1095, %v3157, %v3059
      %v3190 = vsel %vm1095, %v3158, %v3061
      %v3191 = vsel %vm1095, %v3159, %v3063
      %s3192 = scalar_lea.vmem %s3, 32
      %v3193 = vld [vmem:[%s3192] sm:$0xff]
      %v3194 = vld [vmem:[%s3192 + $0x8] sm:$0xff]
      %v3196 = vsel %vm1136, %v3160, 0
      %v3199 = vsel %vm1136, %v3161, 0
      %v3202 = vsel %vm1136, %v3162, 0
      %v3205 = vsel %vm1136, %v3163, 0
      %v3208 = vsel %vm1136, %v3164, 0
      %v3211 = vsel %vm1136, %v3165, 0
      %v3214 = vsel %vm1136, %v3166, 0
      %v3217 = vsel %vm1136, %v3167, 0
      %v3220 = vsel %vm1136, %v3168, 0
      %v3223 = vsel %vm1136, %v3169, 0
      %v3226 = vsel %vm1136, %v3170, 0
      %v3229 = vsel %vm1136, %v3171, 0
      %v3232 = vsel %vm1136, %v3172, 0
      %v3235 = vsel %vm1136, %v3173, 0
      %v3238 = vsel %vm1136, %v3174, 0
      %v3241 = vsel %vm1136, %v3175, 0
      %v3244 = vsel %vm1136, %v3176, 0
      %v3247 = vsel %vm1136, %v3177, 0
      %v3250 = vsel %vm1136, %v3178, 0
      %v3253 = vsel %vm1136, %v3179, 0
      %v3256 = vsel %vm1136, %v3180, 0
      %v3259 = vsel %vm1136, %v3181, 0
      %v3262 = vsel %vm1136, %v3182, 0
      %v3265 = vsel %vm1136, %v3183, 0
      %v3268 = vsel %vm1136, %v3184, 0
      %v3271 = vsel %vm1136, %v3185, 0
      %v3274 = vsel %vm1136, %v3186, 0
      %v3277 = vsel %vm1136, %v3187, 0
      %v3280 = vsel %vm1136, %v3188, 0
      %v3283 = vsel %vm1136, %v3189, 0
      %v3286 = vsel %vm1136, %v3190, 0
      %v3289 = vsel %vm1136, %v3191, 0
      %3291 = vmatprep.subr.mxu0 0.0
      %3292 = vmatpush1.msra.mxu0 0.0
      %3293 = vmatprep.subr.mxu0 0.0
      %3294 = vmatpush1.msra.mxu0 0.0
      %3295 = vmatprep.subr.mxu0 0.0
      %3296 = vmatpush1.msra.mxu0 0.0
      %3297 = vmatprep.subr.mxu0 0.0
      %3298 = vmatpush1.msra.mxu0 0.0
      %3299 = vmatprep.subr.mxu0 0.0
      %3300 = vmatpush1.msra.mxu0 0.0
      %3301 = vmatprep.subr.mxu0 0.0
      %3302 = vmatpush1.msra.mxu0 0.0
      %3303 = vmatprep.subr.mxu0 0.0
      %3304 = vmatpush1.msra.mxu0 0.0
      %3305 = vmatprep.subr.mxu0 0.0
      %3306 = vmatpush1.msra.mxu0 0.0
      %3307 = vmatprep.subr.mxu0 0.0
      %3308 = vmatpush1.msra.mxu0 0.0
      %3309 = vmatprep.subr.mxu0 0.0
      %3310 = vmatpush1.msra.mxu0 0.0
      %3311 = vmatprep.subr.mxu0 0.0
      %3312 = vmatpush1.msra.mxu0 0.0
      %3313 = vmatprep.subr.mxu0 0.0
      %3314 = vmatpush1.msra.mxu0 0.0
      %3315 = vmatprep.subr.mxu0 0.0
      %3316 = vmatpush1.msra.mxu0 0.0
      %3317 = vmatprep.subr.mxu0 0.0
      %3318 = vmatpush1.msra.mxu0 0.0
      %3319 = vmatprep.subr.mxu0 0.0
      %3320 = vmatpush1.msra.mxu0 %v3194
      %3321 = vmatprep.subr.mxu0 0.0
      %3322 = vmatpush1.msra.mxu0 %v3193
      %3323 = vmatprep.subr.mxu0 0.0
      %3324 = vmatpush2.msra.mxu0 0.0
      %3325 = vmatprep.subr.mxu0 0.0
      %3326 = vmatpush2.msra.mxu0 0.0
      %3327 = vmatprep.subr.mxu0 0.0
      %3328 = vmatpush2.msra.mxu0 0.0
      %3329 = vmatprep.subr.mxu0 0.0
      %3330 = vmatpush2.msra.mxu0 0.0
      %3331 = vmatprep.subr.mxu0 0.0
      %3332 = vmatpush2.msra.mxu0 0.0
      %3333 = vmatprep.subr.mxu0 0.0
      %3334 = vmatpush2.msra.mxu0 0.0
      %3335 = vmatprep.subr.mxu0 0.0
      %3336 = vmatpush2.msra.mxu0 0.0
      %3337 = vmatprep.subr.mxu0 0.0
      %3338 = vmatpush2.msra.mxu0 0.0
      %3339 = vmatprep.subr.mxu0 0.0
      %3340 = vmatpush2.msra.mxu0 0.0
      %3341 = vmatprep.subr.mxu0 0.0
      %3342 = vmatpush2.msra.mxu0 0.0
      %3343 = vmatprep.subr.mxu0 0.0
      %3344 = vmatpush2.msra.mxu0 0.0
      %3345 = vmatprep.subr.mxu0 0.0
      %3346 = vmatpush2.msra.mxu0 0.0
      %3347 = vmatprep.subr.mxu0 0.0
      %3348 = vmatpush2.msra.mxu0 0.0
      %3349 = vmatprep.subr.mxu0 0.0
      %3350 = vmatpush2.msra.mxu0 0.0
      %3351 = vmatprep.subr.mxu0 0.0
      %3352 = vmatpush2.msra.mxu0 0.0
      %3353 = vmatprep.subr.mxu0 0.0
      %3354 = vmatpush2.msra.mxu0 0.0
      %3355 = vmatprep.mubr.f32.mxu0 0.0
      %3356 = vmatmul.mubr.f32.gmra.mxu0 %v3196
      %v3357 = vpop.f32.mrf.mxu0
      %v3358 = vadd.f32 %v1134, %v3357
      %v3359 = vpop.f32.mrf.mxu0
      %3360 = vmatprep.mubr.f32.mxu0 0.0
      %3361 = vmatmul.mubr.f32.gmra.mxu0 %v3199
      %v3362 = vpop.f32.mrf.mxu0
      %v3363 = vadd.f32 %v1134, %v3362
      %v3364 = vpop.f32.mrf.mxu0
      %3365 = vmatprep.mubr.f32.mxu0 0.0
      %3366 = vmatmul.mubr.f32.gmra.mxu0 %v3202
      %v3367 = vpop.f32.mrf.mxu0
      %v3368 = vadd.f32 %v1134, %v3367
      %v3369 = vpop.f32.mrf.mxu0
      %3370 = vmatprep.mubr.f32.mxu0 0.0
      %3371 = vmatmul.mubr.f32.gmra.mxu0 %v3205
      %v3372 = vpop.f32.mrf.mxu0
      %v3373 = vadd.f32 %v1134, %v3372
      %v3374 = vpop.f32.mrf.mxu0
      %3375 = vmatprep.mubr.f32.mxu0 0.0
      %3376 = vmatmul.mubr.f32.gmra.mxu0 %v3208
      %v3377 = vpop.f32.mrf.mxu0
      %v3378 = vadd.f32 %v1134, %v3377
      %v3379 = vpop.f32.mrf.mxu0
      %3380 = vmatprep.mubr.f32.mxu0 0.0
      %3381 = vmatmul.mubr.f32.gmra.mxu0 %v3211
      %v3382 = vpop.f32.mrf.mxu0
      %v3383 = vadd.f32 %v1134, %v3382
      %v3384 = vpop.f32.mrf.mxu0
      %3385 = vmatprep.mubr.f32.mxu0 0.0
      %3386 = vmatmul.mubr.f32.gmra.mxu0 %v3214
      %v3387 = vpop.f32.mrf.mxu0
      %v3388 = vadd.f32 %v1134, %v3387
      %v3389 = vpop.f32.mrf.mxu0
      %3390 = vmatprep.mubr.f32.mxu0 0.0
      %3391 = vmatmul.mubr.f32.gmra.mxu0 %v3217
      %v3392 = vpop.f32.mrf.mxu0
      %v3393 = vadd.f32 %v1134, %v3392
      %v3394 = vpop.f32.mrf.mxu0
      %3395 = vmatprep.mubr.f32.mxu0 0.0
      %3396 = vmatmul.mubr.f32.gmra.mxu0 %v3220
      %v3397 = vpop.f32.mrf.mxu0
      %v3398 = vadd.f32 %v1134, %v3397
      %v3399 = vpop.f32.mrf.mxu0
      %3400 = vmatprep.mubr.f32.mxu0 0.0
      %3401 = vmatmul.mubr.f32.gmra.mxu0 %v3223
      %v3402 = vpop.f32.mrf.mxu0
      %v3403 = vadd.f32 %v1134, %v3402
      %v3404 = vpop.f32.mrf.mxu0
      %3405 = vmatprep.mubr.f32.mxu0 0.0
      %3406 = vmatmul.mubr.f32.gmra.mxu0 %v3226
      %v3407 = vpop.f32.mrf.mxu0
      %v3408 = vadd.f32 %v1134, %v3407
      %v3409 = vpop.f32.mrf.mxu0
      %3410 = vmatprep.mubr.f32.mxu0 0.0
      %3411 = vmatmul.mubr.f32.gmra.mxu0 %v3229
      %v3412 = vpop.f32.mrf.mxu0
      %v3413 = vadd.f32 %v1134, %v3412
      %v3414 = vpop.f32.mrf.mxu0
      %3415 = vmatprep.mubr.f32.mxu0 0.0
      %3416 = vmatmul.mubr.f32.gmra.mxu0 %v3232
      %v3417 = vpop.f32.mrf.mxu0
      %v3418 = vadd.f32 %v1134, %v3417
      %v3419 = vpop.f32.mrf.mxu0
      %3420 = vmatprep.mubr.f32.mxu0 0.0
      %3421 = vmatmul.mubr.f32.gmra.mxu0 %v3235
      %v3422 = vpop.f32.mrf.mxu0
      %v3423 = vadd.f32 %v1134, %v3422
      %v3424 = vpop.f32.mrf.mxu0
      %3425 = vmatprep.mubr.f32.mxu0 0.0
      %3426 = vmatmul.mubr.f32.gmra.mxu0 %v3238
      %v3427 = vpop.f32.mrf.mxu0
      %v3428 = vadd.f32 %v1134, %v3427
      %v3429 = vpop.f32.mrf.mxu0
      %3430 = vmatprep.mubr.f32.mxu0 0.0
      %3431 = vmatmul.mubr.f32.gmra.mxu0 %v3241
      %v3432 = vpop.f32.mrf.mxu0
      %v3433 = vadd.f32 %v1134, %v3432
      %v3434 = vpop.f32.mrf.mxu0
      %3435 = vmatprep.mubr.f32.mxu0 0.0
      %3436 = vmatmul.mubr.f32.gmra.mxu0 %v3244
      %v3437 = vpop.f32.mrf.mxu0
      %v3438 = vadd.f32 %v1134, %v3437
      %v3439 = vpop.f32.mrf.mxu0
      %3440 = vmatprep.mubr.f32.mxu0 0.0
      %3441 = vmatmul.mubr.f32.gmra.mxu0 %v3247
      %v3442 = vpop.f32.mrf.mxu0
      %v3443 = vadd.f32 %v1134, %v3442
      %v3444 = vpop.f32.mrf.mxu0
      %3445 = vmatprep.mubr.f32.mxu0 0.0
      %3446 = vmatmul.mubr.f32.gmra.mxu0 %v3250
      %v3447 = vpop.f32.mrf.mxu0
      %v3448 = vadd.f32 %v1134, %v3447
      %v3449 = vpop.f32.mrf.mxu0
      %3450 = vmatprep.mubr.f32.mxu0 0.0
      %3451 = vmatmul.mubr.f32.gmra.mxu0 %v3253
      %v3452 = vpop.f32.mrf.mxu0
      %v3453 = vadd.f32 %v1134, %v3452
      %v3454 = vpop.f32.mrf.mxu0
      %3455 = vmatprep.mubr.f32.mxu0 0.0
      %3456 = vmatmul.mubr.f32.gmra.mxu0 %v3256
      %v3457 = vpop.f32.mrf.mxu0
      %v3458 = vadd.f32 %v1134, %v3457
      %v3459 = vpop.f32.mrf.mxu0
      %3460 = vmatprep.mubr.f32.mxu0 0.0
      %3461 = vmatmul.mubr.f32.gmra.mxu0 %v3259
      %v3462 = vpop.f32.mrf.mxu0
      %v3463 = vadd.f32 %v1134, %v3462
      %v3464 = vpop.f32.mrf.mxu0
      %3465 = vmatprep.mubr.f32.mxu0 0.0
      %3466 = vmatmul.mubr.f32.gmra.mxu0 %v3262
      %v3467 = vpop.f32.mrf.mxu0
      %v3468 = vadd.f32 %v1134, %v3467
      %v3469 = vpop.f32.mrf.mxu0
      %3470 = vmatprep.mubr.f32.mxu0 0.0
      %3471 = vmatmul.mubr.f32.gmra.mxu0 %v3265
      %v3472 = vpop.f32.mrf.mxu0
      %v3473 = vadd.f32 %v1134, %v3472
      %v3474 = vpop.f32.mrf.mxu0
      %3475 = vmatprep.mubr.f32.mxu0 0.0
      %3476 = vmatmul.mubr.f32.gmra.mxu0 %v3268
      %v3477 = vpop.f32.mrf.mxu0
      %v3478 = vadd.f32 %v1134, %v3477
      %v3479 = vpop.f32.mrf.mxu0
      %3480 = vmatprep.mubr.f32.mxu0 0.0
      %3481 = vmatmul.mubr.f32.gmra.mxu0 %v3271
      %v3482 = vpop.f32.mrf.mxu0
      %v3483 = vadd.f32 %v1134, %v3482
      %v3484 = vpop.f32.mrf.mxu0
      %3485 = vmatprep.mubr.f32.mxu0 0.0
      %3486 = vmatmul.mubr.f32.gmra.mxu0 %v3274
      %v3487 = vpop.f32.mrf.mxu0
      %v3488 = vadd.f32 %v1134, %v3487
      %v3489 = vpop.f32.mrf.mxu0
      %3490 = vmatprep.mubr.f32.mxu0 0.0
      %3491 = vmatmul.mubr.f32.gmra.mxu0 %v3277
      %v3492 = vpop.f32.mrf.mxu0
      %v3493 = vadd.f32 %v1134, %v3492
      %v3494 = vpop.f32.mrf.mxu0
      %3495 = vmatprep.mubr.f32.mxu0 0.0
      %3496 = vmatmul.mubr.f32.gmra.mxu0 %v3280
      %v3497 = vpop.f32.mrf.mxu0
      %v3498 = vadd.f32 %v1134, %v3497
      %v3499 = vpop.f32.mrf.mxu0
      %3500 = vmatprep.mubr.f32.mxu0 0.0
      %3501 = vmatmul.mubr.f32.gmra.mxu0 %v3283
      %v3502 = vpop.f32.mrf.mxu0
      %v3503 = vadd.f32 %v1134, %v3502
      %v3504 = vpop.f32.mrf.mxu0
      %3505 = vmatprep.mubr.f32.mxu0 0.0
      %3506 = vmatmul.mubr.f32.gmra.mxu0 %v3286
      %v3507 = vpop.f32.mrf.mxu0
      %v3508 = vadd.f32 %v1134, %v3507
      %v3509 = vpop.f32.mrf.mxu0
      %3510 = vmatprep.mubr.f32.mxu0 0.0
      %3511 = vmatmul.mubr.f32.gmra.mxu0 %v3289
      %v3512 = vpop.f32.mrf.mxu0
      %v3513 = vadd.f32 %v1134, %v3512
      %v3514 = vpop.f32.mrf.mxu0
      %3515 = vdwg.mxu0
      %s3516 = scalar_lea.vmem %s391, 16
      %3517 = vst.msk [vmem:[%s3516] sm:$0xff] %vm446, %v3358
      %3518 = vst.msk [vmem:[%s3516 + $0x8] sm:$0xff] %vm446, %v3363
      %3519 = vst.msk [vmem:[%s3516 + $0x20] sm:$0xff] %vm446, %v3368
      %3520 = vst.msk [vmem:[%s3516 + $0x28] sm:$0xff] %vm446, %v3373
      %3521 = vst.msk [vmem:[%s3516 + $0x40] sm:$0xff] %vm446, %v3378
      %3522 = vst.msk [vmem:[%s3516 + $0x48] sm:$0xff] %vm446, %v3383
      %3523 = vst.msk [vmem:[%s3516 + $0x60] sm:$0xff] %vm446, %v3388
      %3524 = vst.msk [vmem:[%s3516 + $0x68] sm:$0xff] %vm446, %v3393
      %3525 = vst.msk [vmem:[%s3516 + $0x80] sm:$0xff] %vm446, %v3398
      %3526 = vst.msk [vmem:[%s3516 + $0x88] sm:$0xff] %vm446, %v3403
      %3527 = vst.msk [vmem:[%s3516 + $0xa0] sm:$0xff] %vm446, %v3408
      %3528 = vst.msk [vmem:[%s3516 + $0xa8] sm:$0xff] %vm446, %v3413
      %3529 = vst.msk [vmem:[%s3516 + $0xc0] sm:$0xff] %vm446, %v3418
      %3530 = vst.msk [vmem:[%s3516 + $0xc8] sm:$0xff] %vm446, %v3423
      %3531 = vst.msk [vmem:[%s3516 + $0xe0] sm:$0xff] %vm446, %v3428
      %3532 = vst.msk [vmem:[%s3516 + $0xe8] sm:$0xff] %vm446, %v3433
      %3533 = vst.msk [vmem:[%s3516 + $0x100] sm:$0xff] %vm446, %v3438
      %3534 = vst.msk [vmem:[%s3516 + $0x108] sm:$0xff] %vm446, %v3443
      %3535 = vst.msk [vmem:[%s3516 + $0x120] sm:$0xff] %vm446, %v3448
      %3536 = vst.msk [vmem:[%s3516 + $0x128] sm:$0xff] %vm446, %v3453
      %3537 = vst.msk [vmem:[%s3516 + $0x140] sm:$0xff] %vm446, %v3458
      %3538 = vst.msk [vmem:[%s3516 + $0x148] sm:$0xff] %vm446, %v3463
      %3539 = vst.msk [vmem:[%s3516 + $0x160] sm:$0xff] %vm446, %v3468
      %3540 = vst.msk [vmem:[%s3516 + $0x168] sm:$0xff] %vm446, %v3473
      %3541 = vst.msk [vmem:[%s3516 + $0x180] sm:$0xff] %vm446, %v3478
      %3542 = vst.msk [vmem:[%s3516 + $0x188] sm:$0xff] %vm446, %v3483
      %3543 = vst.msk [vmem:[%s3516 + $0x1a0] sm:$0xff] %vm446, %v3488
      %3544 = vst.msk [vmem:[%s3516 + $0x1a8] sm:$0xff] %vm446, %v3493
      %3545 = vst.msk [vmem:[%s3516 + $0x1c0] sm:$0xff] %vm446, %v3498
      %3546 = vst.msk [vmem:[%s3516 + $0x1c8] sm:$0xff] %vm446, %v3503
      %3547 = vst.msk [vmem:[%s3516 + $0x1e0] sm:$0xff] %vm446, %v3508
      %3548 = vst.msk [vmem:[%s3516 + $0x1e8] sm:$0xff] %vm446, %v3513
      %v3549 = vld [vmem:[%s484 + $0x1] sm:$0xff]
      %v3550 = vld [vmem:[%s484 + $0x9] sm:$0xff]
      %v3551 = vld [vmem:[%s484 + $0x19] sm:$0xff]
      %v3552 = vld [vmem:[%s484 + $0x21] sm:$0xff]
      %v3553 = vld [vmem:[%s484 + $0x31] sm:$0xff]
      %v3554 = vld [vmem:[%s484 + $0x39] sm:$0xff]
      %v3555 = vld [vmem:[%s484 + $0x49] sm:$0xff]
      %v3556 = vld [vmem:[%s484 + $0x51] sm:$0xff]
      %v3557 = vld [vmem:[%s484 + $0x61] sm:$0xff]
      %v3558 = vld [vmem:[%s484 + $0x69] sm:$0xff]
      %v3559 = vld [vmem:[%s484 + $0x79] sm:$0xff]
      %v3560 = vld [vmem:[%s484 + $0x81] sm:$0xff]
      %v3561 = vld [vmem:[%s484 + $0x91] sm:$0xff]
      %v3562 = vld [vmem:[%s484 + $0x99] sm:$0xff]
      %v3563 = vld [vmem:[%s484 + $0xa9] sm:$0xff]
      %v3564 = vld [vmem:[%s484 + $0xb1] sm:$0xff]
      %v3565 = vld [vmem:[%s484 + $0xc1] sm:$0xff]
      %v3566 = vld [vmem:[%s484 + $0xc9] sm:$0xff]
      %v3567 = vld [vmem:[%s484 + $0xd9] sm:$0xff]
      %v3568 = vld [vmem:[%s484 + $0xe1] sm:$0xff]
      %v3569 = vld [vmem:[%s484 + $0xf1] sm:$0xff]
      %v3570 = vld [vmem:[%s484 + $0xf9] sm:$0xff]
      %v3571 = vld [vmem:[%s484 + $0x109] sm:$0xff]
      %v3572 = vld [vmem:[%s484 + $0x111] sm:$0xff]
      %v3573 = vld [vmem:[%s484 + $0x121] sm:$0xff]
      %v3574 = vld [vmem:[%s484 + $0x129] sm:$0xff]
      %v3575 = vld [vmem:[%s484 + $0x139] sm:$0xff]
      %v3576 = vld [vmem:[%s484 + $0x141] sm:$0xff]
      %v3577 = vld [vmem:[%s484 + $0x151] sm:$0xff]
      %v3578 = vld [vmem:[%s484 + $0x159] sm:$0xff]
      %v3579 = vld [vmem:[%s484 + $0x169] sm:$0xff]
      %v3580 = vld [vmem:[%s484 + $0x171] sm:$0xff]
      %v3581 = vld [vmem:[%s484 + $0x2] sm:$0xff]
      %v3582 = vld [vmem:[%s484 + $0xa] sm:$0xff]
      %v3583 = vld [vmem:[%s484 + $0x1a] sm:$0xff]
      %v3584 = vld [vmem:[%s484 + $0x22] sm:$0xff]
      %v3585 = vld [vmem:[%s484 + $0x32] sm:$0xff]
      %v3586 = vld [vmem:[%s484 + $0x3a] sm:$0xff]
      %v3587 = vld [vmem:[%s484 + $0x4a] sm:$0xff]
      %v3588 = vld [vmem:[%s484 + $0x52] sm:$0xff]
      %v3589 = vld [vmem:[%s484 + $0x62] sm:$0xff]
      %v3590 = vld [vmem:[%s484 + $0x6a] sm:$0xff]
      %v3591 = vld [vmem:[%s484 + $0x7a] sm:$0xff]
      %v3592 = vld [vmem:[%s484 + $0x82] sm:$0xff]
      %v3593 = vld [vmem:[%s484 + $0x92] sm:$0xff]
      %v3594 = vld [vmem:[%s484 + $0x9a] sm:$0xff]
      %v3595 = vld [vmem:[%s484 + $0xaa] sm:$0xff]
      %v3596 = vld [vmem:[%s484 + $0xb2] sm:$0xff]
      %v3597 = vld [vmem:[%s484 + $0xc2] sm:$0xff]
      %v3598 = vld [vmem:[%s484 + $0xca] sm:$0xff]
      %v3599 = vld [vmem:[%s484 + $0xda] sm:$0xff]
      %v3600 = vld [vmem:[%s484 + $0xe2] sm:$0xff]
      %v3601 = vld [vmem:[%s484 + $0xf2] sm:$0xff]
      %v3602 = vld [vmem:[%s484 + $0xfa] sm:$0xff]
      %v3603 = vld [vmem:[%s484 + $0x10a] sm:$0xff]
      %v3604 = vld [vmem:[%s484 + $0x112] sm:$0xff]
      %v3605 = vld [vmem:[%s484 + $0x122] sm:$0xff]
      %v3606 = vld [vmem:[%s484 + $0x12a] sm:$0xff]
      %v3607 = vld [vmem:[%s484 + $0x13a] sm:$0xff]
      %v3608 = vld [vmem:[%s484 + $0x142] sm:$0xff]
      %v3609 = vld [vmem:[%s484 + $0x152] sm:$0xff]
      %v3610 = vld [vmem:[%s484 + $0x15a] sm:$0xff]
      %v3611 = vld [vmem:[%s484 + $0x16a] sm:$0xff]
      %v3612 = vld [vmem:[%s484 + $0x172] sm:$0xff]
      %v3613 = vld [vmem:[%s2647 + $0x1] sm:$0xff]
      %v3614 = vld [vmem:[%s2647 + $0x9] sm:$0xff]
      %v3615 = vld [vmem:[%s2647 + $0x19] sm:$0xff]
      %v3616 = vld [vmem:[%s2647 + $0x21] sm:$0xff]
      %v3617 = vld [vmem:[%s2647 + $0x31] sm:$0xff]
      %v3618 = vld [vmem:[%s2647 + $0x39] sm:$0xff]
      %v3619 = vld [vmem:[%s2647 + $0x49] sm:$0xff]
      %v3620 = vld [vmem:[%s2647 + $0x51] sm:$0xff]
      %v3621 = vld [vmem:[%s2647 + $0x61] sm:$0xff]
      %v3622 = vld [vmem:[%s2647 + $0x69] sm:$0xff]
      %v3623 = vld [vmem:[%s2647 + $0x79] sm:$0xff]
      %v3624 = vld [vmem:[%s2647 + $0x81] sm:$0xff]
      %v3625 = vld [vmem:[%s2647 + $0x91] sm:$0xff]
      %v3626 = vld [vmem:[%s2647 + $0x99] sm:$0xff]
      %v3627 = vld [vmem:[%s2647 + $0xa9] sm:$0xff]
      %v3628 = vld [vmem:[%s2647 + $0xb1] sm:$0xff]
      %v3629 = vld [vmem:[%s2647 + $0xc1] sm:$0xff]
      %v3630 = vld [vmem:[%s2647 + $0xc9] sm:$0xff]
      %v3631 = vld [vmem:[%s2647 + $0xd9] sm:$0xff]
      %v3632 = vld [vmem:[%s2647 + $0xe1] sm:$0xff]
      %v3633 = vld [vmem:[%s2647 + $0xf1] sm:$0xff]
      %v3634 = vld [vmem:[%s2647 + $0xf9] sm:$0xff]
      %v3635 = vld [vmem:[%s2647 + $0x109] sm:$0xff]
      %v3636 = vld [vmem:[%s2647 + $0x111] sm:$0xff]
      %v3637 = vld [vmem:[%s2647 + $0x121] sm:$0xff]
      %v3638 = vld [vmem:[%s2647 + $0x129] sm:$0xff]
      %v3639 = vld [vmem:[%s2647 + $0x139] sm:$0xff]
      %v3640 = vld [vmem:[%s2647 + $0x141] sm:$0xff]
      %v3641 = vld [vmem:[%s2647 + $0x151] sm:$0xff]
      %v3642 = vld [vmem:[%s2647 + $0x159] sm:$0xff]
      %v3643 = vld [vmem:[%s2647 + $0x169] sm:$0xff]
      %v3644 = vld [vmem:[%s2647 + $0x171] sm:$0xff]
      %v3645 = vld [vmem:[%s2647 + $0x2] sm:$0xff]
      %v3646 = vld [vmem:[%s2647 + $0xa] sm:$0xff]
      %v3647 = vld [vmem:[%s2647 + $0x1a] sm:$0xff]
      %v3648 = vld [vmem:[%s2647 + $0x22] sm:$0xff]
      %v3649 = vld [vmem:[%s2647 + $0x32] sm:$0xff]
      %v3650 = vld [vmem:[%s2647 + $0x3a] sm:$0xff]
      %v3651 = vld [vmem:[%s2647 + $0x4a] sm:$0xff]
      %v3652 = vld [vmem:[%s2647 + $0x52] sm:$0xff]
      %v3653 = vld [vmem:[%s2647 + $0x62] sm:$0xff]
      %v3654 = vld [vmem:[%s2647 + $0x6a] sm:$0xff]
      %v3655 = vld [vmem:[%s2647 + $0x7a] sm:$0xff]
      %v3656 = vld [vmem:[%s2647 + $0x82] sm:$0xff]
      %v3657 = vld [vmem:[%s2647 + $0x92] sm:$0xff]
      %v3658 = vld [vmem:[%s2647 + $0x9a] sm:$0xff]
      %v3659 = vld [vmem:[%s2647 + $0xaa] sm:$0xff]
      %v3660 = vld [vmem:[%s2647 + $0xb2] sm:$0xff]
      %v3661 = vld [vmem:[%s2647 + $0xc2] sm:$0xff]
      %v3662 = vld [vmem:[%s2647 + $0xca] sm:$0xff]
      %v3663 = vld [vmem:[%s2647 + $0xda] sm:$0xff]
      %v3664 = vld [vmem:[%s2647 + $0xe2] sm:$0xff]
      %v3665 = vld [vmem:[%s2647 + $0xf2] sm:$0xff]
      %v3666 = vld [vmem:[%s2647 + $0xfa] sm:$0xff]
      %v3667 = vld [vmem:[%s2647 + $0x10a] sm:$0xff]
      %v3668 = vld [vmem:[%s2647 + $0x112] sm:$0xff]
      %v3669 = vld [vmem:[%s2647 + $0x122] sm:$0xff]
      %v3670 = vld [vmem:[%s2647 + $0x12a] sm:$0xff]
      %v3671 = vld [vmem:[%s2647 + $0x13a] sm:$0xff]
      %v3672 = vld [vmem:[%s2647 + $0x142] sm:$0xff]
      %v3673 = vld [vmem:[%s2647 + $0x152] sm:$0xff]
      %v3674 = vld [vmem:[%s2647 + $0x15a] sm:$0xff]
      %v3675 = vld [vmem:[%s2647 + $0x16a] sm:$0xff]
      %v3676 = vld [vmem:[%s2647 + $0x172] sm:$0xff]
      %3709 = vrot.lane.b32.xlu0 %v3581, 4
      %v3710 = vpop.permute.xlu0 %3709
      %3711 = vrot.lane.b32.xlu0 %v3582, 4
      %v3712 = vpop.permute.xlu0 %3711
      %3713 = vrot.lane.b32.xlu0 %v3583, 4
      %v3714 = vpop.permute.xlu0 %3713
      %3715 = vrot.lane.b32.xlu0 %v3584, 4
      %v3716 = vpop.permute.xlu0 %3715
      %3717 = vrot.lane.b32.xlu0 %v3585, 4
      %v3718 = vpop.permute.xlu0 %3717
      %3719 = vrot.lane.b32.xlu0 %v3586, 4
      %v3720 = vpop.permute.xlu0 %3719
      %3721 = vrot.lane.b32.xlu0 %v3587, 4
      %v3722 = vpop.permute.xlu0 %3721
      %3723 = vrot.lane.b32.xlu0 %v3588, 4
      %v3724 = vpop.permute.xlu0 %3723
      %3725 = vrot.lane.b32.xlu0 %v3589, 4
      %v3726 = vpop.permute.xlu0 %3725
      %3727 = vrot.lane.b32.xlu0 %v3590, 4
      %v3728 = vpop.permute.xlu0 %3727
      %3729 = vrot.lane.b32.xlu0 %v3591, 4
      %v3730 = vpop.permute.xlu0 %3729
      %3731 = vrot.lane.b32.xlu0 %v3592, 4
      %v3732 = vpop.permute.xlu0 %3731
      %3733 = vrot.lane.b32.xlu0 %v3593, 4
      %v3734 = vpop.permute.xlu0 %3733
      %3735 = vrot.lane.b32.xlu0 %v3594, 4
      %v3736 = vpop.permute.xlu0 %3735
      %3737 = vrot.lane.b32.xlu0 %v3595, 4
      %v3738 = vpop.permute.xlu0 %3737
      %3739 = vrot.lane.b32.xlu0 %v3596, 4
      %v3740 = vpop.permute.xlu0 %3739
      %3741 = vrot.lane.b32.xlu0 %v3597, 4
      %v3742 = vpop.permute.xlu0 %3741
      %3743 = vrot.lane.b32.xlu0 %v3598, 4
      %v3744 = vpop.permute.xlu0 %3743
      %3745 = vrot.lane.b32.xlu0 %v3599, 4
      %v3746 = vpop.permute.xlu0 %3745
      %3747 = vrot.lane.b32.xlu0 %v3600, 4
      %v3748 = vpop.permute.xlu0 %3747
      %3749 = vrot.lane.b32.xlu0 %v3601, 4
      %v3750 = vpop.permute.xlu0 %3749
      %3751 = vrot.lane.b32.xlu0 %v3602, 4
      %v3752 = vpop.permute.xlu0 %3751
      %3753 = vrot.lane.b32.xlu0 %v3603, 4
      %v3754 = vpop.permute.xlu0 %3753
      %3755 = vrot.lane.b32.xlu0 %v3604, 4
      %v3756 = vpop.permute.xlu0 %3755
      %3757 = vrot.lane.b32.xlu0 %v3605, 4
      %v3758 = vpop.permute.xlu0 %3757
      %3759 = vrot.lane.b32.xlu0 %v3606, 4
      %v3760 = vpop.permute.xlu0 %3759
      %3761 = vrot.lane.b32.xlu0 %v3607, 4
      %v3762 = vpop.permute.xlu0 %3761
      %3763 = vrot.lane.b32.xlu0 %v3608, 4
      %v3764 = vpop.permute.xlu0 %3763
      %3765 = vrot.lane.b32.xlu0 %v3609, 4
      %v3766 = vpop.permute.xlu0 %3765
      %3767 = vrot.lane.b32.xlu0 %v3610, 4
      %v3768 = vpop.permute.xlu0 %3767
      %3769 = vrot.lane.b32.xlu0 %v3611, 4
      %v3770 = vpop.permute.xlu0 %3769
      %3771 = vrot.lane.b32.xlu0 %v3612, 4
      %v3772 = vpop.permute.xlu0 %3771
      %3837 = vrot.lane.b32.xlu0 %v3613, 8
      %v3838 = vpop.permute.xlu0 %3837
      %3839 = vrot.lane.b32.xlu0 %v3614, 8
      %v3840 = vpop.permute.xlu0 %3839
      %3841 = vrot.lane.b32.xlu0 %v3615, 8
      %v3842 = vpop.permute.xlu0 %3841
      %3843 = vrot.lane.b32.xlu0 %v3616, 8
      %v3844 = vpop.permute.xlu0 %3843
      %3845 = vrot.lane.b32.xlu0 %v3617, 8
      %v3846 = vpop.permute.xlu0 %3845
      %3847 = vrot.lane.b32.xlu0 %v3618, 8
      %v3848 = vpop.permute.xlu0 %3847
      %3849 = vrot.lane.b32.xlu0 %v3619, 8
      %v3850 = vpop.permute.xlu0 %3849
      %3851 = vrot.lane.b32.xlu0 %v3620, 8
      %v3852 = vpop.permute.xlu0 %3851
      %3853 = vrot.lane.b32.xlu0 %v3621, 8
      %v3854 = vpop.permute.xlu0 %3853
      %3855 = vrot.lane.b32.xlu0 %v3622, 8
      %v3856 = vpop.permute.xlu0 %3855
      %3857 = vrot.lane.b32.xlu0 %v3623, 8
      %v3858 = vpop.permute.xlu0 %3857
      %3859 = vrot.lane.b32.xlu0 %v3624, 8
      %v3860 = vpop.permute.xlu0 %3859
      %3861 = vrot.lane.b32.xlu0 %v3625, 8
      %v3862 = vpop.permute.xlu0 %3861
      %3863 = vrot.lane.b32.xlu0 %v3626, 8
      %v3864 = vpop.permute.xlu0 %3863
      %3865 = vrot.lane.b32.xlu0 %v3627, 8
      %v3866 = vpop.permute.xlu0 %3865
      %3867 = vrot.lane.b32.xlu0 %v3628, 8
      %v3868 = vpop.permute.xlu0 %3867
      %3869 = vrot.lane.b32.xlu0 %v3629, 8
      %v3870 = vpop.permute.xlu0 %3869
      %3871 = vrot.lane.b32.xlu0 %v3630, 8
      %v3872 = vpop.permute.xlu0 %3871
      %3873 = vrot.lane.b32.xlu0 %v3631, 8
      %v3874 = vpop.permute.xlu0 %3873
      %3875 = vrot.lane.b32.xlu0 %v3632, 8
      %v3876 = vpop.permute.xlu0 %3875
      %3877 = vrot.lane.b32.xlu0 %v3633, 8
      %v3878 = vpop.permute.xlu0 %3877
      %3879 = vrot.lane.b32.xlu0 %v3634, 8
      %v3880 = vpop.permute.xlu0 %3879
      %3881 = vrot.lane.b32.xlu0 %v3635, 8
      %v3882 = vpop.permute.xlu0 %3881
      %3883 = vrot.lane.b32.xlu0 %v3636, 8
      %v3884 = vpop.permute.xlu0 %3883
      %3885 = vrot.lane.b32.xlu0 %v3637, 8
      %v3886 = vpop.permute.xlu0 %3885
      %3887 = vrot.lane.b32.xlu0 %v3638, 8
      %v3888 = vpop.permute.xlu0 %3887
      %3889 = vrot.lane.b32.xlu0 %v3639, 8
      %v3890 = vpop.permute.xlu0 %3889
      %3891 = vrot.lane.b32.xlu0 %v3640, 8
      %v3892 = vpop.permute.xlu0 %3891
      %3893 = vrot.lane.b32.xlu0 %v3641, 8
      %v3894 = vpop.permute.xlu0 %3893
      %3895 = vrot.lane.b32.xlu0 %v3642, 8
      %v3896 = vpop.permute.xlu0 %3895
      %3897 = vrot.lane.b32.xlu0 %v3643, 8
      %v3898 = vpop.permute.xlu0 %3897
      %3899 = vrot.lane.b32.xlu0 %v3644, 8
      %v3900 = vpop.permute.xlu0 %3899
      %3965 = vrot.lane.b32.xlu0 %v3645, 12
      %v3966 = vpop.permute.xlu0 %3965
      %3967 = vrot.lane.b32.xlu0 %v3646, 12
      %v3968 = vpop.permute.xlu0 %3967
      %3969 = vrot.lane.b32.xlu0 %v3647, 12
      %v3970 = vpop.permute.xlu0 %3969
      %3971 = vrot.lane.b32.xlu0 %v3648, 12
      %v3972 = vpop.permute.xlu0 %3971
      %3973 = vrot.lane.b32.xlu0 %v3649, 12
      %v3974 = vpop.permute.xlu0 %3973
      %3975 = vrot.lane.b32.xlu0 %v3650, 12
      %v3976 = vpop.permute.xlu0 %3975
      %3977 = vrot.lane.b32.xlu0 %v3651, 12
      %v3978 = vpop.permute.xlu0 %3977
      %3979 = vrot.lane.b32.xlu0 %v3652, 12
      %v3980 = vpop.permute.xlu0 %3979
      %3981 = vrot.lane.b32.xlu0 %v3653, 12
      %v3982 = vpop.permute.xlu0 %3981
      %3983 = vrot.lane.b32.xlu0 %v3654, 12
      %v3984 = vpop.permute.xlu0 %3983
      %3985 = vrot.lane.b32.xlu0 %v3655, 12
      %v3986 = vpop.permute.xlu0 %3985
      %3987 = vrot.lane.b32.xlu0 %v3656, 12
      %v3988 = vpop.permute.xlu0 %3987
      %3989 = vrot.lane.b32.xlu0 %v3657, 12
      %v3990 = vpop.permute.xlu0 %3989
      %3991 = vrot.lane.b32.xlu0 %v3658, 12
      %v3992 = vpop.permute.xlu0 %3991
      %3993 = vrot.lane.b32.xlu0 %v3659, 12
      %v3994 = vpop.permute.xlu0 %3993
      %3995 = vrot.lane.b32.xlu0 %v3660, 12
      %v3996 = vpop.permute.xlu0 %3995
      %3997 = vrot.lane.b32.xlu0 %v3661, 12
      %v3998 = vpop.permute.xlu0 %3997
      %3999 = vrot.lane.b32.xlu0 %v3662, 12
      %v4000 = vpop.permute.xlu0 %3999
      %4001 = vrot.lane.b32.xlu0 %v3663, 12
      %v4002 = vpop.permute.xlu0 %4001
      %4003 = vrot.lane.b32.xlu0 %v3664, 12
      %v4004 = vpop.permute.xlu0 %4003
      %4005 = vrot.lane.b32.xlu0 %v3665, 12
      %v4006 = vpop.permute.xlu0 %4005
      %4007 = vrot.lane.b32.xlu0 %v3666, 12
      %v4008 = vpop.permute.xlu0 %4007
      %4009 = vrot.lane.b32.xlu0 %v3667, 12
      %v4010 = vpop.permute.xlu0 %4009
      %4011 = vrot.lane.b32.xlu0 %v3668, 12
      %v4012 = vpop.permute.xlu0 %4011
      %4013 = vrot.lane.b32.xlu0 %v3669, 12
      %v4014 = vpop.permute.xlu0 %4013
      %4015 = vrot.lane.b32.xlu0 %v3670, 12
      %v4016 = vpop.permute.xlu0 %4015
      %4017 = vrot.lane.b32.xlu0 %v3671, 12
      %v4018 = vpop.permute.xlu0 %4017
      %4019 = vrot.lane.b32.xlu0 %v3672, 12
      %v4020 = vpop.permute.xlu0 %4019
      %4021 = vrot.lane.b32.xlu0 %v3673, 12
      %v4022 = vpop.permute.xlu0 %4021
      %4023 = vrot.lane.b32.xlu0 %v3674, 12
      %v4024 = vpop.permute.xlu0 %4023
      %4025 = vrot.lane.b32.xlu0 %v3675, 12
      %v4026 = vpop.permute.xlu0 %4025
      %4027 = vrot.lane.b32.xlu0 %v3676, 12
      %v4028 = vpop.permute.xlu0 %4027
      %v4061 = vsel %vm446, %v3549, %v3710
      %v4062 = vsel %vm446, %v3550, %v3712
      %v4063 = vsel %vm446, %v3551, %v3714
      %v4064 = vsel %vm446, %v3552, %v3716
      %v4065 = vsel %vm446, %v3553, %v3718
      %v4066 = vsel %vm446, %v3554, %v3720
      %v4067 = vsel %vm446, %v3555, %v3722
      %v4068 = vsel %vm446, %v3556, %v3724
      %v4069 = vsel %vm446, %v3557, %v3726
      %v4070 = vsel %vm446, %v3558, %v3728
      %v4071 = vsel %vm446, %v3559, %v3730
      %v4072 = vsel %vm446, %v3560, %v3732
      %v4073 = vsel %vm446, %v3561, %v3734
      %v4074 = vsel %vm446, %v3562, %v3736
      %v4075 = vsel %vm446, %v3563, %v3738
      %v4076 = vsel %vm446, %v3564, %v3740
      %v4077 = vsel %vm446, %v3565, %v3742
      %v4078 = vsel %vm446, %v3566, %v3744
      %v4079 = vsel %vm446, %v3567, %v3746
      %v4080 = vsel %vm446, %v3568, %v3748
      %v4081 = vsel %vm446, %v3569, %v3750
      %v4082 = vsel %vm446, %v3570, %v3752
      %v4083 = vsel %vm446, %v3571, %v3754
      %v4084 = vsel %vm446, %v3572, %v3756
      %v4085 = vsel %vm446, %v3573, %v3758
      %v4086 = vsel %vm446, %v3574, %v3760
      %v4087 = vsel %vm446, %v3575, %v3762
      %v4088 = vsel %vm446, %v3576, %v3764
      %v4089 = vsel %vm446, %v3577, %v3766
      %v4090 = vsel %vm446, %v3578, %v3768
      %v4091 = vsel %vm446, %v3579, %v3770
      %v4092 = vsel %vm446, %v3580, %v3772
      %v4093 = vsel %vm1062, %v4061, %v3838
      %v4094 = vsel %vm1062, %v4062, %v3840
      %v4095 = vsel %vm1062, %v4063, %v3842
      %v4096 = vsel %vm1062, %v4064, %v3844
      %v4097 = vsel %vm1062, %v4065, %v3846
      %v4098 = vsel %vm1062, %v4066, %v3848
      %v4099 = vsel %vm1062, %v4067, %v3850
      %v4100 = vsel %vm1062, %v4068, %v3852
      %v4101 = vsel %vm1062, %v4069, %v3854
      %v4102 = vsel %vm1062, %v4070, %v3856
      %v4103 = vsel %vm1062, %v4071, %v3858
      %v4104 = vsel %vm1062, %v4072, %v3860
      %v4105 = vsel %vm1062, %v4073, %v3862
      %v4106 = vsel %vm1062, %v4074, %v3864
      %v4107 = vsel %vm1062, %v4075, %v3866
      %v4108 = vsel %vm1062, %v4076, %v3868
      %v4109 = vsel %vm1062, %v4077, %v3870
      %v4110 = vsel %vm1062, %v4078, %v3872
      %v4111 = vsel %vm1062, %v4079, %v3874
      %v4112 = vsel %vm1062, %v4080, %v3876
      %v4113 = vsel %vm1062, %v4081, %v3878
      %v4114 = vsel %vm1062, %v4082, %v3880
      %v4115 = vsel %vm1062, %v4083, %v3882
      %v4116 = vsel %vm1062, %v4084, %v3884
      %v4117 = vsel %vm1062, %v4085, %v3886
      %v4118 = vsel %vm1062, %v4086, %v3888
      %v4119 = vsel %vm1062, %v4087, %v3890
      %v4120 = vsel %vm1062, %v4088, %v3892
      %v4121 = vsel %vm1062, %v4089, %v3894
      %v4122 = vsel %vm1062, %v4090, %v3896
      %v4123 = vsel %vm1062, %v4091, %v3898
      %v4124 = vsel %vm1062, %v4092, %v3900
      %v4125 = vsel %vm1095, %v4093, %v3966
      %v4126 = vsel %vm1095, %v4094, %v3968
      %v4127 = vsel %vm1095, %v4095, %v3970
      %v4128 = vsel %vm1095, %v4096, %v3972
      %v4129 = vsel %vm1095, %v4097, %v3974
      %v4130 = vsel %vm1095, %v4098, %v3976
      %v4131 = vsel %vm1095, %v4099, %v3978
      %v4132 = vsel %vm1095, %v4100, %v3980
      %v4133 = vsel %vm1095, %v4101, %v3982
      %v4134 = vsel %vm1095, %v4102, %v3984
      %v4135 = vsel %vm1095, %v4103, %v3986
      %v4136 = vsel %vm1095, %v4104, %v3988
      %v4137 = vsel %vm1095, %v4105, %v3990
      %v4138 = vsel %vm1095, %v4106, %v3992
      %v4139 = vsel %vm1095, %v4107, %v3994
      %v4140 = vsel %vm1095, %v4108, %v3996
      %v4141 = vsel %vm1095, %v4109, %v3998
      %v4142 = vsel %vm1095, %v4110, %v4000
      %v4143 = vsel %vm1095, %v4111, %v4002
      %v4144 = vsel %vm1095, %v4112, %v4004
      %v4145 = vsel %vm1095, %v4113, %v4006
      %v4146 = vsel %vm1095, %v4114, %v4008
      %v4147 = vsel %vm1095, %v4115, %v4010
      %v4148 = vsel %vm1095, %v4116, %v4012
      %v4149 = vsel %vm1095, %v4117, %v4014
      %v4150 = vsel %vm1095, %v4118, %v4016
      %v4151 = vsel %vm1095, %v4119, %v4018
      %v4152 = vsel %vm1095, %v4120, %v4020
      %v4153 = vsel %vm1095, %v4121, %v4022
      %v4154 = vsel %vm1095, %v4122, %v4024
      %v4155 = vsel %vm1095, %v4123, %v4026
      %v4156 = vsel %vm1095, %v4124, %v4028
      %s4157 = scalar_lea.vmem %s3, 48
      %v4158 = vld [vmem:[%s4157] sm:$0xff]
      %v4159 = vld [vmem:[%s4157 + $0x8] sm:$0xff]
      %v4161 = vsel %vm1136, %v4125, 0
      %v4164 = vsel %vm1136, %v4126, 0
      %v4167 = vsel %vm1136, %v4127, 0
      %v4170 = vsel %vm1136, %v4128, 0
      %v4173 = vsel %vm1136, %v4129, 0
      %v4176 = vsel %vm1136, %v4130, 0
      %v4179 = vsel %vm1136, %v4131, 0
      %v4182 = vsel %vm1136, %v4132, 0
      %v4185 = vsel %vm1136, %v4133, 0
      %v4188 = vsel %vm1136, %v4134, 0
      %v4191 = vsel %vm1136, %v4135, 0
      %v4194 = vsel %vm1136, %v4136, 0
      %v4197 = vsel %vm1136, %v4137, 0
      %v4200 = vsel %vm1136, %v4138, 0
      %v4203 = vsel %vm1136, %v4139, 0
      %v4206 = vsel %vm1136, %v4140, 0
      %v4209 = vsel %vm1136, %v4141, 0
      %v4212 = vsel %vm1136, %v4142, 0
      %v4215 = vsel %vm1136, %v4143, 0
      %v4218 = vsel %vm1136, %v4144, 0
      %v4221 = vsel %vm1136, %v4145, 0
      %v4224 = vsel %vm1136, %v4146, 0
      %v4227 = vsel %vm1136, %v4147, 0
      %v4230 = vsel %vm1136, %v4148, 0
      %v4233 = vsel %vm1136, %v4149, 0
      %v4236 = vsel %vm1136, %v4150, 0
      %v4239 = vsel %vm1136, %v4151, 0
      %v4242 = vsel %vm1136, %v4152, 0
      %v4245 = vsel %vm1136, %v4153, 0
      %v4248 = vsel %vm1136, %v4154, 0
      %v4251 = vsel %vm1136, %v4155, 0
      %v4254 = vsel %vm1136, %v4156, 0
      %4256 = vmatprep.subr.mxu0 0.0
      %4257 = vmatpush1.msra.mxu0 0.0
      %4258 = vmatprep.subr.mxu0 0.0
      %4259 = vmatpush1.msra.mxu0 0.0
      %4260 = vmatprep.subr.mxu0 0.0
      %4261 = vmatpush1.msra.mxu0 0.0
      %4262 = vmatprep.subr.mxu0 0.0
      %4263 = vmatpush1.msra.mxu0 0.0
      %4264 = vmatprep.subr.mxu0 0.0
      %4265 = vmatpush1.msra.mxu0 0.0
      %4266 = vmatprep.subr.mxu0 0.0
      %4267 = vmatpush1.msra.mxu0 0.0
      %4268 = vmatprep.subr.mxu0 0.0
      %4269 = vmatpush1.msra.mxu0 0.0
      %4270 = vmatprep.subr.mxu0 0.0
      %4271 = vmatpush1.msra.mxu0 0.0
      %4272 = vmatprep.subr.mxu0 0.0
      %4273 = vmatpush1.msra.mxu0 0.0
      %4274 = vmatprep.subr.mxu0 0.0
      %4275 = vmatpush1.msra.mxu0 0.0
      %4276 = vmatprep.subr.mxu0 0.0
      %4277 = vmatpush1.msra.mxu0 0.0
      %4278 = vmatprep.subr.mxu0 0.0
      %4279 = vmatpush1.msra.mxu0 0.0
      %4280 = vmatprep.subr.mxu0 0.0
      %4281 = vmatpush1.msra.mxu0 0.0
      %4282 = vmatprep.subr.mxu0 0.0
      %4283 = vmatpush1.msra.mxu0 0.0
      %4284 = vmatprep.subr.mxu0 0.0
      %4285 = vmatpush1.msra.mxu0 %v4159
      %4286 = vmatprep.subr.mxu0 0.0
      %4287 = vmatpush1.msra.mxu0 %v4158
      %4288 = vmatprep.subr.mxu0 0.0
      %4289 = vmatpush2.msra.mxu0 0.0
      %4290 = vmatprep.subr.mxu0 0.0
      %4291 = vmatpush2.msra.mxu0 0.0
      %4292 = vmatprep.subr.mxu0 0.0
      %4293 = vmatpush2.msra.mxu0 0.0
      %4294 = vmatprep.subr.mxu0 0.0
      %4295 = vmatpush2.msra.mxu0 0.0
      %4296 = vmatprep.subr.mxu0 0.0
      %4297 = vmatpush2.msra.mxu0 0.0
      %4298 = vmatprep.subr.mxu0 0.0
      %4299 = vmatpush2.msra.mxu0 0.0
      %4300 = vmatprep.subr.mxu0 0.0
      %4301 = vmatpush2.msra.mxu0 0.0
      %4302 = vmatprep.subr.mxu0 0.0
      %4303 = vmatpush2.msra.mxu0 0.0
      %4304 = vmatprep.subr.mxu0 0.0
      %4305 = vmatpush2.msra.mxu0 0.0
      %4306 = vmatprep.subr.mxu0 0.0
      %4307 = vmatpush2.msra.mxu0 0.0
      %4308 = vmatprep.subr.mxu0 0.0
      %4309 = vmatpush2.msra.mxu0 0.0
      %4310 = vmatprep.subr.mxu0 0.0
      %4311 = vmatpush2.msra.mxu0 0.0
      %4312 = vmatprep.subr.mxu0 0.0
      %4313 = vmatpush2.msra.mxu0 0.0
      %4314 = vmatprep.subr.mxu0 0.0
      %4315 = vmatpush2.msra.mxu0 0.0
      %4316 = vmatprep.subr.mxu0 0.0
      %4317 = vmatpush2.msra.mxu0 0.0
      %4318 = vmatprep.subr.mxu0 0.0
      %4319 = vmatpush2.msra.mxu0 0.0
      %4320 = vmatprep.mubr.f32.mxu0 0.0
      %4321 = vmatmul.mubr.f32.gmra.mxu0 %v4161
      %v4322 = vpop.f32.mrf.mxu0
      %v4323 = vadd.f32 %v1134, %v4322
      %v4324 = vpop.f32.mrf.mxu0
      %4325 = vmatprep.mubr.f32.mxu0 0.0
      %4326 = vmatmul.mubr.f32.gmra.mxu0 %v4164
      %v4327 = vpop.f32.mrf.mxu0
      %v4328 = vadd.f32 %v1134, %v4327
      %v4329 = vpop.f32.mrf.mxu0
      %4330 = vmatprep.mubr.f32.mxu0 0.0
      %4331 = vmatmul.mubr.f32.gmra.mxu0 %v4167
      %v4332 = vpop.f32.mrf.mxu0
      %v4333 = vadd.f32 %v1134, %v4332
      %v4334 = vpop.f32.mrf.mxu0
      %4335 = vmatprep.mubr.f32.mxu0 0.0
      %4336 = vmatmul.mubr.f32.gmra.mxu0 %v4170
      %v4337 = vpop.f32.mrf.mxu0
      %v4338 = vadd.f32 %v1134, %v4337
      %v4339 = vpop.f32.mrf.mxu0
      %4340 = vmatprep.mubr.f32.mxu0 0.0
      %4341 = vmatmul.mubr.f32.gmra.mxu0 %v4173
      %v4342 = vpop.f32.mrf.mxu0
      %v4343 = vadd.f32 %v1134, %v4342
      %v4344 = vpop.f32.mrf.mxu0
      %4345 = vmatprep.mubr.f32.mxu0 0.0
      %4346 = vmatmul.mubr.f32.gmra.mxu0 %v4176
      %v4347 = vpop.f32.mrf.mxu0
      %v4348 = vadd.f32 %v1134, %v4347
      %v4349 = vpop.f32.mrf.mxu0
      %4350 = vmatprep.mubr.f32.mxu0 0.0
      %4351 = vmatmul.mubr.f32.gmra.mxu0 %v4179
      %v4352 = vpop.f32.mrf.mxu0
      %v4353 = vadd.f32 %v1134, %v4352
      %v4354 = vpop.f32.mrf.mxu0
      %4355 = vmatprep.mubr.f32.mxu0 0.0
      %4356 = vmatmul.mubr.f32.gmra.mxu0 %v4182
      %v4357 = vpop.f32.mrf.mxu0
      %v4358 = vadd.f32 %v1134, %v4357
      %v4359 = vpop.f32.mrf.mxu0
      %4360 = vmatprep.mubr.f32.mxu0 0.0
      %4361 = vmatmul.mubr.f32.gmra.mxu0 %v4185
      %v4362 = vpop.f32.mrf.mxu0
      %v4363 = vadd.f32 %v1134, %v4362
      %v4364 = vpop.f32.mrf.mxu0
      %4365 = vmatprep.mubr.f32.mxu0 0.0
      %4366 = vmatmul.mubr.f32.gmra.mxu0 %v4188
      %v4367 = vpop.f32.mrf.mxu0
      %v4368 = vadd.f32 %v1134, %v4367
      %v4369 = vpop.f32.mrf.mxu0
      %4370 = vmatprep.mubr.f32.mxu0 0.0
      %4371 = vmatmul.mubr.f32.gmra.mxu0 %v4191
      %v4372 = vpop.f32.mrf.mxu0
      %v4373 = vadd.f32 %v1134, %v4372
      %v4374 = vpop.f32.mrf.mxu0
      %4375 = vmatprep.mubr.f32.mxu0 0.0
      %4376 = vmatmul.mubr.f32.gmra.mxu0 %v4194
      %v4377 = vpop.f32.mrf.mxu0
      %v4378 = vadd.f32 %v1134, %v4377
      %v4379 = vpop.f32.mrf.mxu0
      %4380 = vmatprep.mubr.f32.mxu0 0.0
      %4381 = vmatmul.mubr.f32.gmra.mxu0 %v4197
      %v4382 = vpop.f32.mrf.mxu0
      %v4383 = vadd.f32 %v1134, %v4382
      %v4384 = vpop.f32.mrf.mxu0
      %4385 = vmatprep.mubr.f32.mxu0 0.0
      %4386 = vmatmul.mubr.f32.gmra.mxu0 %v4200
      %v4387 = vpop.f32.mrf.mxu0
      %v4388 = vadd.f32 %v1134, %v4387
      %v4389 = vpop.f32.mrf.mxu0
      %4390 = vmatprep.mubr.f32.mxu0 0.0
      %4391 = vmatmul.mubr.f32.gmra.mxu0 %v4203
      %v4392 = vpop.f32.mrf.mxu0
      %v4393 = vadd.f32 %v1134, %v4392
      %v4394 = vpop.f32.mrf.mxu0
      %4395 = vmatprep.mubr.f32.mxu0 0.0
      %4396 = vmatmul.mubr.f32.gmra.mxu0 %v4206
      %v4397 = vpop.f32.mrf.mxu0
      %v4398 = vadd.f32 %v1134, %v4397
      %v4399 = vpop.f32.mrf.mxu0
      %4400 = vmatprep.mubr.f32.mxu0 0.0
      %4401 = vmatmul.mubr.f32.gmra.mxu0 %v4209
      %v4402 = vpop.f32.mrf.mxu0
      %v4403 = vadd.f32 %v1134, %v4402
      %v4404 = vpop.f32.mrf.mxu0
      %4405 = vmatprep.mubr.f32.mxu0 0.0
      %4406 = vmatmul.mubr.f32.gmra.mxu0 %v4212
      %v4407 = vpop.f32.mrf.mxu0
      %v4408 = vadd.f32 %v1134, %v4407
      %v4409 = vpop.f32.mrf.mxu0
      %4410 = vmatprep.mubr.f32.mxu0 0.0
      %4411 = vmatmul.mubr.f32.gmra.mxu0 %v4215
      %v4412 = vpop.f32.mrf.mxu0
      %v4413 = vadd.f32 %v1134, %v4412
      %v4414 = vpop.f32.mrf.mxu0
      %4415 = vmatprep.mubr.f32.mxu0 0.0
      %4416 = vmatmul.mubr.f32.gmra.mxu0 %v4218
      %v4417 = vpop.f32.mrf.mxu0
      %v4418 = vadd.f32 %v1134, %v4417
      %v4419 = vpop.f32.mrf.mxu0
      %4420 = vmatprep.mubr.f32.mxu0 0.0
      %4421 = vmatmul.mubr.f32.gmra.mxu0 %v4221
      %v4422 = vpop.f32.mrf.mxu0
      %v4423 = vadd.f32 %v1134, %v4422
      %v4424 = vpop.f32.mrf.mxu0
      %4425 = vmatprep.mubr.f32.mxu0 0.0
      %4426 = vmatmul.mubr.f32.gmra.mxu0 %v4224
      %v4427 = vpop.f32.mrf.mxu0
      %v4428 = vadd.f32 %v1134, %v4427
      %v4429 = vpop.f32.mrf.mxu0
      %4430 = vmatprep.mubr.f32.mxu0 0.0
      %4431 = vmatmul.mubr.f32.gmra.mxu0 %v4227
      %v4432 = vpop.f32.mrf.mxu0
      %v4433 = vadd.f32 %v1134, %v4432
      %v4434 = vpop.f32.mrf.mxu0
      %4435 = vmatprep.mubr.f32.mxu0 0.0
      %4436 = vmatmul.mubr.f32.gmra.mxu0 %v4230
      %v4437 = vpop.f32.mrf.mxu0
      %v4438 = vadd.f32 %v1134, %v4437
      %v4439 = vpop.f32.mrf.mxu0
      %4440 = vmatprep.mubr.f32.mxu0 0.0
      %4441 = vmatmul.mubr.f32.gmra.mxu0 %v4233
      %v4442 = vpop.f32.mrf.mxu0
      %v4443 = vadd.f32 %v1134, %v4442
      %v4444 = vpop.f32.mrf.mxu0
      %4445 = vmatprep.mubr.f32.mxu0 0.0
      %4446 = vmatmul.mubr.f32.gmra.mxu0 %v4236
      %v4447 = vpop.f32.mrf.mxu0
      %v4448 = vadd.f32 %v1134, %v4447
      %v4449 = vpop.f32.mrf.mxu0
      %4450 = vmatprep.mubr.f32.mxu0 0.0
      %4451 = vmatmul.mubr.f32.gmra.mxu0 %v4239
      %v4452 = vpop.f32.mrf.mxu0
      %v4453 = vadd.f32 %v1134, %v4452
      %v4454 = vpop.f32.mrf.mxu0
      %4455 = vmatprep.mubr.f32.mxu0 0.0
      %4456 = vmatmul.mubr.f32.gmra.mxu0 %v4242
      %v4457 = vpop.f32.mrf.mxu0
      %v4458 = vadd.f32 %v1134, %v4457
      %v4459 = vpop.f32.mrf.mxu0
      %4460 = vmatprep.mubr.f32.mxu0 0.0
      %4461 = vmatmul.mubr.f32.gmra.mxu0 %v4245
      %v4462 = vpop.f32.mrf.mxu0
      %v4463 = vadd.f32 %v1134, %v4462
      %v4464 = vpop.f32.mrf.mxu0
      %4465 = vmatprep.mubr.f32.mxu0 0.0
      %4466 = vmatmul.mubr.f32.gmra.mxu0 %v4248
      %v4467 = vpop.f32.mrf.mxu0
      %v4468 = vadd.f32 %v1134, %v4467
      %v4469 = vpop.f32.mrf.mxu0
      %4470 = vmatprep.mubr.f32.mxu0 0.0
      %4471 = vmatmul.mubr.f32.gmra.mxu0 %v4251
      %v4472 = vpop.f32.mrf.mxu0
      %v4473 = vadd.f32 %v1134, %v4472
      %v4474 = vpop.f32.mrf.mxu0
      %4475 = vmatprep.mubr.f32.mxu0 0.0
      %4476 = vmatmul.mubr.f32.gmra.mxu0 %v4254
      %v4477 = vpop.f32.mrf.mxu0
      %v4478 = vadd.f32 %v1134, %v4477
      %v4479 = vpop.f32.mrf.mxu0
      %4480 = vdwg.mxu0
      %4513 = vrot.lane.b32.xlu0 %v4323, 4
      %v4514 = vpop.permute.xlu0 %4513
      %4515 = vrot.lane.b32.xlu0 %v4328, 4
      %v4516 = vpop.permute.xlu0 %4515
      %4517 = vrot.lane.b32.xlu0 %v4333, 4
      %v4518 = vpop.permute.xlu0 %4517
      %4519 = vrot.lane.b32.xlu0 %v4338, 4
      %v4520 = vpop.permute.xlu0 %4519
      %4521 = vrot.lane.b32.xlu0 %v4343, 4
      %v4522 = vpop.permute.xlu0 %4521
      %4523 = vrot.lane.b32.xlu0 %v4348, 4
      %v4524 = vpop.permute.xlu0 %4523
      %4525 = vrot.lane.b32.xlu0 %v4353, 4
      %v4526 = vpop.permute.xlu0 %4525
      %4527 = vrot.lane.b32.xlu0 %v4358, 4
      %v4528 = vpop.permute.xlu0 %4527
      %4529 = vrot.lane.b32.xlu0 %v4363, 4
      %v4530 = vpop.permute.xlu0 %4529
      %4531 = vrot.lane.b32.xlu0 %v4368, 4
      %v4532 = vpop.permute.xlu0 %4531
      %4533 = vrot.lane.b32.xlu0 %v4373, 4
      %v4534 = vpop.permute.xlu0 %4533
      %4535 = vrot.lane.b32.xlu0 %v4378, 4
      %v4536 = vpop.permute.xlu0 %4535
      %4537 = vrot.lane.b32.xlu0 %v4383, 4
      %v4538 = vpop.permute.xlu0 %4537
      %4539 = vrot.lane.b32.xlu0 %v4388, 4
      %v4540 = vpop.permute.xlu0 %4539
      %4541 = vrot.lane.b32.xlu0 %v4393, 4
      %v4542 = vpop.permute.xlu0 %4541
      %4543 = vrot.lane.b32.xlu0 %v4398, 4
      %v4544 = vpop.permute.xlu0 %4543
      %4545 = vrot.lane.b32.xlu0 %v4403, 4
      %v4546 = vpop.permute.xlu0 %4545
      %4547 = vrot.lane.b32.xlu0 %v4408, 4
      %v4548 = vpop.permute.xlu0 %4547
      %4549 = vrot.lane.b32.xlu0 %v4413, 4
      %v4550 = vpop.permute.xlu0 %4549
      %4551 = vrot.lane.b32.xlu0 %v4418, 4
      %v4552 = vpop.permute.xlu0 %4551
      %4553 = vrot.lane.b32.xlu0 %v4423, 4
      %v4554 = vpop.permute.xlu0 %4553
      %4555 = vrot.lane.b32.xlu0 %v4428, 4
      %v4556 = vpop.permute.xlu0 %4555
      %4557 = vrot.lane.b32.xlu0 %v4433, 4
      %v4558 = vpop.permute.xlu0 %4557
      %4559 = vrot.lane.b32.xlu0 %v4438, 4
      %v4560 = vpop.permute.xlu0 %4559
      %4561 = vrot.lane.b32.xlu0 %v4443, 4
      %v4562 = vpop.permute.xlu0 %4561
      %4563 = vrot.lane.b32.xlu0 %v4448, 4
      %v4564 = vpop.permute.xlu0 %4563
      %4565 = vrot.lane.b32.xlu0 %v4453, 4
      %v4566 = vpop.permute.xlu0 %4565
      %4567 = vrot.lane.b32.xlu0 %v4458, 4
      %v4568 = vpop.permute.xlu0 %4567
      %4569 = vrot.lane.b32.xlu0 %v4463, 4
      %v4570 = vpop.permute.xlu0 %4569
      %4571 = vrot.lane.b32.xlu0 %v4468, 4
      %v4572 = vpop.permute.xlu0 %4571
      %4573 = vrot.lane.b32.xlu0 %v4473, 4
      %v4574 = vpop.permute.xlu0 %4573
      %4575 = vrot.lane.b32.xlu0 %v4478, 4
      %v4576 = vpop.permute.xlu0 %4575
      %4609 = vst.msk [vmem:[%s3516] sm:$0xff] %vm2550, %v4514
      %4610 = vst.msk [vmem:[%s3516 + $0x8] sm:$0xff] %vm2550, %v4516
      %4611 = vst.msk [vmem:[%s3516 + $0x20] sm:$0xff] %vm2550, %v4518
      %4612 = vst.msk [vmem:[%s3516 + $0x28] sm:$0xff] %vm2550, %v4520
      %4613 = vst.msk [vmem:[%s3516 + $0x40] sm:$0xff] %vm2550, %v4522
      %4614 = vst.msk [vmem:[%s3516 + $0x48] sm:$0xff] %vm2550, %v4524
      %4615 = vst.msk [vmem:[%s3516 + $0x60] sm:$0xff] %vm2550, %v4526
      %4616 = vst.msk [vmem:[%s3516 + $0x68] sm:$0xff] %vm2550, %v4528
      %4617 = vst.msk [vmem:[%s3516 + $0x80] sm:$0xff] %vm2550, %v4530
      %4618 = vst.msk [vmem:[%s3516 + $0x88] sm:$0xff] %vm2550, %v4532
      %4619 = vst.msk [vmem:[%s3516 + $0xa0] sm:$0xff] %vm2550, %v4534
      %4620 = vst.msk [vmem:[%s3516 + $0xa8] sm:$0xff] %vm2550, %v4536
      %4621 = vst.msk [vmem:[%s3516 + $0xc0] sm:$0xff] %vm2550, %v4538
      %4622 = vst.msk [vmem:[%s3516 + $0xc8] sm:$0xff] %vm2550, %v4540
      %4623 = vst.msk [vmem:[%s3516 + $0xe0] sm:$0xff] %vm2550, %v4542
      %4624 = vst.msk [vmem:[%s3516 + $0xe8] sm:$0xff] %vm2550, %v4544
      %4625 = vst.msk [vmem:[%s3516 + $0x100] sm:$0xff] %vm2550, %v4546
      %4626 = vst.msk [vmem:[%s3516 + $0x108] sm:$0xff] %vm2550, %v4548
      %4627 = vst.msk [vmem:[%s3516 + $0x120] sm:$0xff] %vm2550, %v4550
      %4628 = vst.msk [vmem:[%s3516 + $0x128] sm:$0xff] %vm2550, %v4552
      %4629 = vst.msk [vmem:[%s3516 + $0x140] sm:$0xff] %vm2550, %v4554
      %4630 = vst.msk [vmem:[%s3516 + $0x148] sm:$0xff] %vm2550, %v4556
      %4631 = vst.msk [vmem:[%s3516 + $0x160] sm:$0xff] %vm2550, %v4558
      %4632 = vst.msk [vmem:[%s3516 + $0x168] sm:$0xff] %vm2550, %v4560
      %4633 = vst.msk [vmem:[%s3516 + $0x180] sm:$0xff] %vm2550, %v4562
      %4634 = vst.msk [vmem:[%s3516 + $0x188] sm:$0xff] %vm2550, %v4564
      %4635 = vst.msk [vmem:[%s3516 + $0x1a0] sm:$0xff] %vm2550, %v4566
      %4636 = vst.msk [vmem:[%s3516 + $0x1a8] sm:$0xff] %vm2550, %v4568
      %4637 = vst.msk [vmem:[%s3516 + $0x1c0] sm:$0xff] %vm2550, %v4570
      %4638 = vst.msk [vmem:[%s3516 + $0x1c8] sm:$0xff] %vm2550, %v4572
      %4639 = vst.msk [vmem:[%s3516 + $0x1e0] sm:$0xff] %vm2550, %v4574
      %4640 = vst.msk [vmem:[%s3516 + $0x1e8] sm:$0xff] %vm2550, %v4576
      %s4641 = smul.u32 16, %s21
      %p4642 = scmp.lt.s32.totalorder %s20, 1
      %s4643 = scalar_select %p4642, %s20, 1
      %p4644 = scmp.lt.s32.totalorder %s4641, 15
      %s4645 = scalar_select %p4644, %s4641, 15
      %s4646 = smul.addr %s4645, 4
      %s4647 = smul.addr %s4643, 64
      %s4648 = sadd.s32 %s4646, %s4647
      %s4649 = smul.addr %s4648, 8
      %s4650 = scalar_lea.vmem %s5, %s4649
      // Predicated region
      $region41: #{tpu_custom_call.1} parent=39 // pred_check
        %p4651 = pneg %p190
      $region42: #{tpu_custom_call.1} parent=39 // pred_check_branch
        %4653 = sbr.rel (%p4651) target = $region44
      $region43: #{tpu_custom_call.1} parent=39 // pred_region
        %s4654 = smul.u32 16, %s21
      $region44: #{tpu_custom_call.1} parent=39 // pred_fallthru
        _
    $region40: #{tpu_custom_call.1} parent=5 // pred_fallthru
      _
    %p4655 = scmp.le.s32.totalorder 2, %s11
    // Predicated region
    $region45: #{tpu_custom_call.1} parent=5 // pred_check
      %p4656 = pneg %p4655
    $region46: #{tpu_custom_call.1} parent=5 // pred_check_branch
      %4658 = sbr.rel (%p4656) target = $region48
    $region47: #{tpu_custom_call.1} parent=5 // pred_region
      %s4659 = ssub.s32 %s11, 2
      // Predicated region
      $region49: #{tpu_custom_call.1} parent=47 // pred_check
        %p4660 = pneg %p196
      $region50: #{tpu_custom_call.1} parent=47 // pred_check_branch
        %4662 = sbr.rel (%p4660) target = $region52
      $region51: #{tpu_custom_call.1} parent=47 // pred_region
        %s4663 = smul.u32 16, %s23
        %p4664 = scmp.lt.s32.totalorder %s22, 1
        %s4665 = scalar_select %p4664, %s22, 1
        %p4666 = scmp.lt.s32.totalorder %s4663, 15
        %s4667 = scalar_select %p4666, %s4663, 15
        %s4668 = smul.addr %s4667, 4
        %s4669 = smul.addr %s4665, 64
        %s4670 = sadd.s32 %s4668, %s4669
        %s4671 = smul.addr %s4670, 8
        %s4672 = scalar_lea.vmem %s5, %s4671
      $region52: #{tpu_custom_call.1} parent=47 // pred_fallthru
        _
    $region48: #{tpu_custom_call.1} parent=5 // pred_fallthru
      _
  $region6: #{tpu_custom_call.1} parent=0 // loop_footer
    %s15 = sadd.s32 1, %s11
  $region7: #{tpu_custom_call.1} parent=0 // loop_footer_branch
    %10 = sbr.rel target = $region3
  $region8: #{tpu_custom_call.1} parent=0 // loop_exit
    _

</llo_original>
